<compile_context>
chip_gen: v6e
topology: v6e:2x2x1
jax: 0.10.0
libtpu: 0.0.40
codegen_flags: <defaults>
</compile_context>

<pallas_src>
import functools

import jax
import jax.numpy as jnp
import numpy as np
from jax.experimental import pallas as pl
from jax.experimental.pallas import tpu as pltpu

LANE = 128                      # output channel widths padded to multiples of this
MAX_TM = 256                    # max row / contraction tile (multiple of 8 & 128)
VMEM_LIMIT = 48 * 1024 * 1024   # K-tiling bounds footprint; safe on v5e/v6e/v7x
MXU_DTYPE = jnp.bfloat16        # MXU input dtype; accumulation stays f32


def _rup(x, m):
    return ((x + m - 1) // m) * m


def LP(n):
    return _rup(n, LANE)


def _choose_row_tiling(M):
    """Return (TM, Mp): one full-row block when it fits, else 256-row tiles."""
    Mp = _rup(M, 8)
    if Mp <= MAX_TM:
        return Mp, Mp
    Mp = _rup(M, MAX_TM)
    return MAX_TM, Mp


_CP_1D = pltpu.CompilerParams(dimension_semantics=("parallel",),
                              vmem_limit_bytes=VMEM_LIMIT)
_CP_2D = pltpu.CompilerParams(dimension_semantics=("parallel", "arbitrary"),
                              vmem_limit_bytes=VMEM_LIMIT)


# ----------------------------------------------------------------------------
# Pallas kernels (BN already folded into W / b at prepare time)
# ----------------------------------------------------------------------------
def _linear_kernel(relu, x_ref, w_ref, b_ref, o_ref):
    acc = jnp.dot(x_ref[...], w_ref[...], preferred_element_type=jnp.float32)
    acc = acc + b_ref[...]
    if relu:
        acc = jnp.maximum(acc, 0.0)
    o_ref[...] = acc.astype(o_ref.dtype)


def _gcn_kernel(relu, a_ref, xk_ref, w_ref, b_ref, o_ref, agg_ref):
    # K-tiled (A @ X) accumulation in f32 VMEM scratch; W-matmul epilogue at last k.
    @pl.when(pl.program_id(1) == 0)
    def _():
        agg_ref[...] = jnp.zeros_like(agg_ref)

    agg_ref[...] += jnp.dot(a_ref[...], xk_ref[...],
                            preferred_element_type=jnp.float32)

    @pl.when(pl.program_id(1) == pl.num_programs(1) - 1)
    def _():
        acc = jnp.dot(agg_ref[...].astype(w_ref.dtype), w_ref[...],
                      preferred_element_type=jnp.float32)
        acc = acc + b_ref[...]
        if relu:
            acc = jnp.maximum(acc, 0.0)
        o_ref[...] = acc.astype(o_ref.dtype)


def _sage_kernel(relu, a_ref, xk_ref, xi_ref, wl_ref, wr_ref, b_ref, o_ref, agg_ref):
    # SAGE(mean): K-tiled A_mean@X + root term X@Wr at finalize, all fused.
    @pl.when(pl.program_id(1) == 0)
    def _():
        agg_ref[...] = jnp.zeros_like(agg_ref)

    agg_ref[...] += jnp.dot(a_ref[...], xk_ref[...],
                            preferred_element_type=jnp.float32)

    @pl.when(pl.program_id(1) == pl.num_programs(1) - 1)
    def _():
        acc = jnp.dot(agg_ref[...].astype(wl_ref.dtype), wl_ref[...],
                      preferred_element_type=jnp.float32)
        acc = acc + jnp.dot(xi_ref[...], wr_ref[...],
                            preferred_element_type=jnp.float32)
        acc = acc + b_ref[...]
        if relu:
            acc = jnp.maximum(acc, 0.0)
        o_ref[...] = acc.astype(o_ref.dtype)


# ----------------------------------------------------------------------------
# Kernel wrappers
# ----------------------------------------------------------------------------
def fused_linear(x, w, b, relu=False, out_dtype=jnp.float32,
                 Mp=None, TM=None, trim_rows=True):
    """out = relu?(x @ w + b); w prepared as (K, Np) (Np multiple of 128)."""
    M, K = x.shape
    Kw, Np = w.shape
    assert K == Kw, (K, Kw)
    if Mp is None or TM is None:
        TM, Mp = _choose_row_tiling(M)
    if Mp != M:
        x = jnp.pad(x, ((0, Mp - M), (0, 0)))
    x = x.astype(MXU_DTYPE)
    out = pl.pallas_call(
        functools.partial(_linear_kernel, relu),
        out_shape=jax.ShapeDtypeStruct((Mp, Np), out_dtype),
        grid=(Mp // TM,),
        in_specs=[
            pl.BlockSpec((TM, K), lambda i: (i, 0)),    # X row tile
            pl.BlockSpec((K, Np), lambda i: (0, 0)),    # W resident
            pl.BlockSpec((1, Np), lambda i: (0, 0)),    # bias
        ],
        out_specs=pl.BlockSpec((TM, Np), lambda i: (i, 0)),
        compiler_params=_CP_1D,
    )(x, w, b)
    return out[:M] if (trim_rows and Mp != M) else out


def fused_gcn(ctx, x, w, b, relu, out_dtype=MXU_DTYPE):
    """out = relu?( (A_hat @ x) @ w + b ), K-tiled, one pallas_call per layer.
    Returns a row-padded (Mp, Np) array."""
    Mp, TM, TK = ctx["Mp"], ctx["TM"], ctx["TK"]
    M, K = x.shape
    if M != Mp:
        x = jnp.pad(x, ((0, Mp - M), (0, 0)))
    x = x.astype(MXU_DTYPE)
    Np = w.shape[1]
    out = pl.pallas_call(
        functools.partial(_gcn_kernel, relu),
        out_shape=jax.ShapeDtypeStruct((Mp, Np), out_dtype),
        grid=(Mp // TM, Mp // TK),
        in_specs=[
            pl.BlockSpec((TM, TK), lambda i, k: (i, k)),   # A_hat tile
            pl.BlockSpec((TK, K), lambda i, k: (k, 0)),    # X contraction tile
            pl.BlockSpec((K, Np), lambda i, k: (0, 0)),    # W (BN folded)
            pl.BlockSpec((1, Np), lambda i, k: (0, 0)),    # bias (BN folded)
        ],
        out_specs=pl.BlockSpec((TM, Np), lambda i, k: (i, 0)),
        scratch_shapes=[pltpu.VMEM((TM, K), jnp.float32)],
        compiler_params=_CP_2D,
    )(ctx["ahat"], x, w, b)
    return out


def fused_sage(ctx, x, wl, wr, b, relu, out_dtype=MXU_DTYPE):
    """out = relu?( (A_mean @ x) @ wl + x @ wr + b ), K-tiled, one pallas_call.
    Returns a row-padded (Mp, Np) array."""
    Mp, TM, TK = ctx["Mp"], ctx["TM"], ctx["TK"]
    M, K = x.shape
    if M != Mp:
        x = jnp.pad(x, ((0, Mp - M), (0, 0)))
    x = x.astype(MXU_DTYPE)
    Np = wl.shape[1]
    out = pl.pallas_call(
        functools.partial(_sage_kernel, relu),
        out_shape=jax.ShapeDtypeStruct((Mp, Np), out_dtype),
        grid=(Mp // TM, Mp // TK),
        in_specs=[
            pl.BlockSpec((TM, TK), lambda i, k: (i, k)),   # A_mean tile
            pl.BlockSpec((TK, K), lambda i, k: (k, 0)),    # X contraction tile
            pl.BlockSpec((TM, K), lambda i, k: (i, 0)),    # X row tile (root term)
            pl.BlockSpec((K, Np), lambda i, k: (0, 0)),    # Wl (BN folded)
            pl.BlockSpec((K, Np), lambda i, k: (0, 0)),    # Wr (BN folded)
            pl.BlockSpec((1, Np), lambda i, k: (0, 0)),    # bias (BN folded)
        ],
        out_specs=pl.BlockSpec((TM, Np), lambda i, k: (i, 0)),
        scratch_shapes=[pltpu.VMEM((TM, K), jnp.float32)],
        compiler_params=_CP_2D,
    )(ctx["amean"], x, x, wl, wr, b)
    return out


# ----------------------------------------------------------------------------
# Graph plumbing: dense normalized adjacencies, padded + bf16 ONCE per graph
# ----------------------------------------------------------------------------
def gcn_norm_adj(edge_index, n):
    src, dst = edge_index[0], edge_index[1]
    A = jnp.zeros((n, n), jnp.float32).at[dst, src].set(1.0)
    A = jnp.maximum(A, jnp.eye(n, dtype=jnp.float32))  # self loops
    deg = A.sum(axis=1)
    dinv = jax.lax.rsqrt(deg)
    return dinv[:, None] * A * dinv[None, :]


def mean_adj(edge_index, n):
    src, dst = edge_index[0], edge_index[1]
    A = jnp.zeros((n, n), jnp.float32).at[dst, src].set(1.0)
    deg = A.sum(axis=1)
    dinv = jnp.where(deg > 0, 1.0 / jnp.maximum(deg, 1.0), 0.0)
    return dinv[:, None] * A


def prep_graph(edge_index, n):
    """Per-graph context: tiling + padded bf16 adjacencies, built once."""
    TM, Mp = _choose_row_tiling(n)
    TK = Mp if Mp <= MAX_TM else MAX_TM
    ahat = gcn_norm_adj(edge_index, n)
    amean = mean_adj(edge_index, n)
    if Mp != n:
        pad = ((0, Mp - n), (0, Mp - n))
        ahat = jnp.pad(ahat, pad)
        amean = jnp.pad(amean, pad)
    return dict(M=n, Mp=Mp, TM=TM, TK=TK,
                ahat=ahat.astype(MXU_DTYPE), amean=amean.astype(MXU_DTYPE))


# ----------------------------------------------------------------------------
# Parameter init (mirrors the torch module)
# ----------------------------------------------------------------------------
def _init_linear(key, in_dim, out_dim):
    k1, k2 = jax.random.split(key)
    lim = 1.0 / np.sqrt(in_dim)
    W = jax.random.uniform(k1, (in_dim, out_dim), jnp.float32, -lim, lim)
    b = jax.random.uniform(k2, (out_dim,), jnp.float32, -lim, lim)
    return W, b


def _bn_eval(n):
    eps = 1e-5
    gamma = jnp.ones((n,), jnp.float32)
    beta = jnp.zeros((n,), jnp.float32)
    scale = gamma / jnp.sqrt(1.0 + eps)   # running_var = 1
    shift = beta                          # running_mean = 0
    return scale, shift


def init_params(key, bands_src, bands_tar, FM):
    keys = iter(jax.random.split(key, 64))
    lin = lambda i, o: _init_linear(next(keys), i, o)

    def feat_src_p():
        W1, b1 = lin(FM, 2 * FM)
        s1, t1 = _bn_eval(2 * FM)
        Wl, bl = lin(2 * FM, 4 * FM)
        Wr, _ = lin(2 * FM, 4 * FM)
        s2, t2 = _bn_eval(4 * FM)
        return dict(W1=W1, b1=b1, bn1_s=s1, bn1_b=t1,
                    Wl=Wl, bl=bl, Wr=Wr, bn2_s=s2, bn2_b=t2)

    def feat_tar_p():
        W1, b1 = lin(FM, 2 * FM)
        s1, t1 = _bn_eval(2 * FM)
        W2, b2 = lin(2 * FM, 4 * FM)
        s2, t2 = _bn_eval(4 * FM)
        return dict(W1=W1, b1=b1, bn1_s=s1, bn1_b=t1,
                    W2=W2, b2=b2, bn2_s=s2, bn2_b=t2)

    p = {}
    p["dc_T1_src"] = lin(bands_src, FM)
    p["dc_T2_src"] = lin(bands_src, FM)
    p["dc_T1_tar"] = lin(bands_tar, FM)
    p["dc_T2_tar"] = lin(bands_tar, FM)
    p["fe_T1_src"] = feat_src_p()
    p["fe_T2_src"] = feat_src_p()
    p["fe_T1_tar"] = feat_tar_p()
    p["fe_T2_tar"] = feat_tar_p()

    W1, b1 = lin(8 * FM, 16 * FM)
    s1, t1 = _bn_eval(16 * FM)
    Wl, bl = lin(16 * FM, 16 * FM)
    Wr, _ = lin(16 * FM, 16 * FM)
    s2, t2 = _bn_eval(16 * FM)
    p["gcn_shared"] = dict(W1=W1, b1=b1, bn1_s=s1, bn1_b=t1,
                           Wl=Wl, bl=bl, Wr=Wr, bn2_s=s2, bn2_b=t2)

    def cls_p(in_dim, class_num):
        dims = [in_dim, 32 * 8, 32 * 4, 32 * 2, 16, class_num]
        return [lin(dims[i], dims[i + 1]) for i in range(5)]

    p["cls_src"] = cls_p(16 * FM, 2)
    p["cls_tar"] = cls_p(16 * FM, 2)
    return p


# ----------------------------------------------------------------------------
# Device-layout preparation: BN folded, branch pairs fused block-diagonally,
# lane-padded (multiples of 128), weights cast to bf16.
# ----------------------------------------------------------------------------
def _fold_bn(W, b, scale, shift):
    return W * scale[None, :], b * scale + shift


def prepare_params(p, bands_src, bands_tar, FM):
    LPFM, LP2, LP4, LP16 = LP(FM), LP(2 * FM), LP(4 * FM), LP(16 * FM)

    def place(pieces, K_in, N_out):
        """pieces: list of (W_block, b_block_or_None, row_off, col_off)."""
        W = jnp.zeros((K_in, N_out), jnp.float32)
        bv = jnp.zeros((1, N_out), jnp.float32)
        for Wb, bb, ro, co in pieces:
            W = W.at[ro:ro + Wb.shape[0], co:co + Wb.shape[1]].set(Wb)
            if bb is not None:
                bv = bv.at[0, co:co + bb.shape[0]].set(bb)
        return W.astype(MXU_DTYPE), bv

    q = {}

    # --- dimension-conversion linears, T1/T2 branch-fused per domain ---
    def dc_pair(key1, key2, bands):
        W1, b1 = p[key1]
        W2, b2 = p[key2]
        return place([(W1, b1, 0, 0), (W2, b2, bands, LPFM)],
                     K_in=2 * bands, N_out=2 * LPFM)

    q["dc_src"] = dc_pair("dc_T1_src", "dc_T2_src", bands_src)
    q["dc_tar"] = dc_pair("dc_T1_tar", "dc_T2_tar", bands_tar)

    # --- feature-extraction, T1/T2 branch-fused (src: GCN->SAGE) ---
    def fe_src_pair(fp1, fp2):
        W1a, b1a = _fold_bn(fp1["W1"], fp1["b1"], fp1["bn1_s"], fp1["bn1_b"])
        W1b, b1b = _fold_bn(fp2["W1"], fp2["b1"], fp2["bn1_s"], fp2["bn1_b"])
        W1, b1 = place([(W1a, b1a, 0, 0), (W1b, b1b, LPFM, LP2)],
                       K_in=2 * LPFM, N_out=2 * LP2)
        Wla, bla = _fold_bn(fp1["Wl"], fp1["bl"], fp1["bn2_s"], fp1["bn2_b"])
        Wlb, blb = _fold_bn(fp2["Wl"], fp2["bl"], fp2["bn2_s"], fp2["bn2_b"])
        Wra = fp1["Wr"] * fp1["bn2_s"][None, :]
        Wrb = fp2["Wr"] * fp2["bn2_s"][None, :]
        Wl, bl = place([(Wla, bla, 0, 0), (Wlb, blb, LP2, LP4)],
                       K_in=2 * LP2, N_out=2 * LP4)
        Wr, _ = place([(Wra, None, 0, 0), (Wrb, None, LP2, LP4)],
                      K_in=2 * LP2, N_out=2 * LP4)
        return dict(W1=W1, b1=b1, Wl=Wl, Wr=Wr, bl=bl)

    q["fe_src"] = fe_src_pair(p["fe_T1_src"], p["fe_T2_src"])

    # --- feature-extraction, T1/T2 branch-fused (tar: GCN->GCN) ---
    def fe_tar_pair(fp1, fp2):
        W1a, b1a = _fold_bn(fp1["W1"], fp1["b1"], fp1["bn1_s"], fp1["bn1_b"])
        W1b, b1b = _fold_bn(fp2["W1"], fp2["b1"], fp2["bn1_s"], fp2["bn1_b"])
        W1, b1 = place([(W1a, b1a, 0, 0), (W1b, b1b, LPFM, LP2)],
                       K_in=2 * LPFM, N_out=2 * LP2)
        W2a, b2a = _fold_bn(fp1["W2"], fp1["b2"], fp1["bn2_s"], fp1["bn2_b"])
        W2b, b2b = _fold_bn(fp2["W2"], fp2["b2"], fp2["bn2_s"], fp2["bn2_b"])
        W2, b2 = place([(W2a, b2a, 0, 0), (W2b, b2b, LP2, LP4)],
                       K_in=2 * LP2, N_out=2 * LP4)
        return dict(W1=W1, b1=b1, W2=W2, b2=b2)

    q["fe_tar"] = fe_tar_pair(p["fe_T1_tar"], p["fe_T2_tar"])

    # --- gcn_shared consumes the [branch1 | branch2] lane-padded diff slab ---
    gsp = p["gcn_shared"]
    W1g, b1g = _fold_bn(gsp["W1"], gsp["b1"], gsp["bn1_s"], gsp["bn1_b"])
    W1, b1 = place([(W1g[:4 * FM], b1g, 0, 0), (W1g[4 * FM:], None, LP4, 0)],
                   K_in=2 * LP4, N_out=LP16)
    Wlg, blg = _fold_bn(gsp["Wl"], gsp["bl"], gsp["bn2_s"], gsp["bn2_b"])
    Wrg = gsp["Wr"] * gsp["bn2_s"][None, :]
    Wl, bl = place([(Wlg, blg, 0, 0)], K_in=LP16, N_out=LP16)
    Wr, _ = place([(Wrg, None, 0, 0)], K_in=LP16, N_out=LP16)
    q["gcn_shared"] = dict(W1=W1, b1=b1, Wl=Wl, Wr=Wr, bl=bl)

    # --- classifiers (lane-padded chain) ---
    def prep_cls(layers, k_in):
        out = []
        for (W, b) in layers:
            N = W.shape[1]
            Wp, bp = place([(W, b, 0, 0)], K_in=k_in, N_out=LP(N))
            out.append((Wp, bp))
            k_in = LP(N)
        return out

    q["cls_src"] = prep_cls(p["cls_src"], LP16)
    q["cls_tar"] = prep_cls(p["cls_tar"], LP16)
    return q


# ----------------------------------------------------------------------------
# net_need_name.forward
# ----------------------------------------------------------------------------
def net_need_name_forward(params,
                          data_T1_src, data_T2_src, data_T1_tar, data_T2_tar,
                          A_src, A_tar, A_changed, A_unchanged,
                          Q_src, Q_tar,
                          idx_unch_src, idx_ch_src, idx_unch_tar, idx_ch_tar,
                          *, FM):
    n_src = data_T1_src.shape[0]
    n_tar = data_T1_tar.shape[0]
    g_src = prep_graph(A_src, n_src)
    g_tar = prep_graph(A_tar, n_tar)

    # dimension conversion: both T1/T2 branches of a domain in ONE pallas_call
    x_src = fused_linear(jnp.concatenate([data_T1_src, data_T2_src], axis=1),
                         *params["dc_src"], relu=False, out_dtype=MXU_DTYPE,
                         Mp=g_src["Mp"], TM=g_src["TM"], trim_rows=False)
    x_tar = fused_linear(jnp.concatenate([data_T1_tar, data_T2_tar], axis=1),
                         *params["dc_tar"], relu=False, out_dtype=MXU_DTYPE,
                         Mp=g_tar["Mp"], TM=g_tar["TM"], trim_rows=False)

    # raw feature extraction, T1/T2 branch-fused (src: GCN->SAGE, tar: GCN->GCN)
    fs = params["fe_src"]
    x_src = fused_gcn(g_src, x_src, fs["W1"], fs["b1"], relu=True)
    diff_src = fused_sage(g_src, x_src, fs["Wl"], fs["Wr"], fs["bl"], relu=True)

    ft = params["fe_tar"]
    x_tar = fused_gcn(g_tar, x_tar, ft["W1"], ft["b1"], relu=True)
    diff_tar = fused_gcn(g_tar, x_tar, ft["W2"], ft["b2"], relu=True)

    # diff_src / diff_tar are already the lane-padded [T1 | T2] difference slabs
    diff_unch = jnp.concatenate([jnp.take(diff_src, idx_unch_src, axis=0),
                                 jnp.take(diff_tar, idx_unch_tar, axis=0)], axis=0)
    diff_ch = jnp.concatenate([jnp.take(diff_src, idx_ch_src, axis=0),
                               jnp.take(diff_tar, idx_ch_tar, axis=0)], axis=0)
    n_unch_src = idx_unch_src.shape[0]
    n_ch_src = idx_ch_src.shape[0]
    n_unch = diff_unch.shape[0]
    n_ch = diff_ch.shape[0]

    g_unch = prep_graph(A_unchanged, n_unch)
    g_ch = prep_graph(A_changed, n_ch)

    gs = params["gcn_shared"]

    def gcn_shared(ctx, x, relu, out_dtype):
        h = fused_gcn(ctx, x, gs["W1"], gs["b1"], relu=relu, out_dtype=MXU_DTYPE)
        return fused_sage(ctx, h, gs["Wl"], gs["Wr"], gs["bl"],
                          relu=relu, out_dtype=out_dtype)

    rep_unch = gcn_shared(g_unch, diff_unch, relu=False, out_dtype=jnp.float32)
    rep_ch = gcn_shared(g_ch, diff_ch, relu=False, out_dtype=jnp.float32)

    C16 = 16 * FM
    final_unch_src = rep_unch[0:n_unch_src, :C16]
    final_ch_src = rep_ch[0:n_ch_src, :C16]
    final_unch_tar = rep_unch[n_unch_src:n_unch, :C16]
    final_ch_tar = rep_ch[n_ch_src:n_ch, :C16]

    feat_s = gcn_shared(g_src, diff_src, relu=True, out_dtype=jnp.float32)
    feat_t = gcn_shared(g_tar, diff_tar, relu=True, out_dtype=jnp.float32)

    def classifier(x, layers, Mp, TM):
        for (W, b) in layers[:-1]:
            x = fused_linear(x, W, b, relu=True, out_dtype=MXU_DTYPE,
                             Mp=Mp, TM=TM, trim_rows=False)
        W, b = layers[-1]
        return fused_linear(x, W, b, relu=False, out_dtype=jnp.float32,
                            Mp=Mp, TM=TM, trim_rows=False)

    logits_src = classifier(feat_s, params["cls_src"], g_src["Mp"], g_src["TM"])
    logits_tar = classifier(feat_t, params["cls_tar"], g_tar["Mp"], g_tar["TM"])

    out_src_sp = logits_src[:n_src, :2]
    out_tar_sp = logits_tar[:n_tar, :2]

    # Q @ logits through the same fused linear kernel (lane-dense output)
    zb_s = jnp.zeros((1, logits_src.shape[1]), jnp.float32)
    zb_t = jnp.zeros((1, logits_tar.shape[1]), jnp.float32)
    out_src = fused_linear(Q_src, logits_src[:n_src], zb_s)[:, :2]
    out_tar = fused_linear(Q_tar, logits_tar[:n_tar], zb_t)[:, :2]

    return [final_unch_src, final_ch_src, final_unch_tar, final_ch_tar,
            feat_s[:n_src, :C16], feat_t[:n_tar, :C16],
            out_src_sp, out_tar_sp, out_src, out_tar]


# ----------------------------------------------------------------------------
# demo
# ----------------------------------------------------------------------------
def ring_edges(n):
    idx = np.arange(n)
    src = np.concatenate([idx, (idx + 1) % n])
    dst = np.concatenate([(idx + 1) % n, idx])
    return jnp.asarray(np.stack([src, dst]), dtype=jnp.int32)


if __name__ == "__main__":
    key = jax.random.PRNGKey(0)
    bands_src, bands_tar, FM = 6, 5, 4
    N_src, N_tar = 16, 12
    P_src, P_tar = 20, 15

    k = jax.random.split(key, 8)
    data_T1_src = jax.random.normal(k[0], (N_src, bands_src), jnp.float32)
    data_T2_src = jax.random.normal(k[1], (N_src, bands_src), jnp.float32)
    data_T1_tar = jax.random.normal(k[2], (N_tar, bands_tar), jnp.float32)
    data_T2_tar = jax.random.normal(k[3], (N_tar, bands_tar), jnp.float32)
    Q_src = jax.random.uniform(k[4], (P_src, N_src), jnp.float32)
    Q_tar = jax.random.uniform(k[5], (P_tar, N_tar), jnp.float32)

    A_src = ring_edges(N_src)
    A_tar = ring_edges(N_tar)

    idx_unch_src = jnp.array([0, 2, 4, 6, 8], jnp.int32)
    idx_ch_src = jnp.array([1, 3, 5, 7], jnp.int32)
    idx_unch_tar = jnp.array([0, 3, 6, 9], jnp.int32)
    idx_ch_tar = jnp.array([1, 4, 7], jnp.int32)

    A_unchanged = ring_edges(idx_unch_src.shape[0] + idx_unch_tar.shape[0])
    A_changed = ring_edges(idx_ch_src.shape[0] + idx_ch_tar.shape[0])

    raw_params = init_params(jax.random.PRNGKey(42), bands_src, bands_tar, FM)
    params = prepare_params(raw_params, bands_src, bands_tar, FM)

    fwd = jax.jit(functools.partial(net_need_name_forward, FM=FM))

    outs = fwd(params,
               data_T1_src, data_T2_src, data_T1_tar, data_T2_tar,
               A_src, A_tar, A_changed, A_unchanged,
               Q_src, Q_tar,
               idx_unch_src, idx_ch_src, idx_unch_tar, idx_ch_tar)

    for o in outs:
        jax.block_until_ready(o)

    expected = [
        (5, 16 * FM), (4, 16 * FM), (4, 16 * FM), (3, 16 * FM),
        (N_src, 16 * FM), (N_tar, 16 * FM),
        (N_src, 2), (N_tar, 2), (P_src, 2), (P_tar, 2),
    ]
    assert [tuple(o.shape) for o in outs] == expected, [tuple(o.shape) for o in outs]
    assert all(bool(jnp.all(jnp.isfinite(o))) for o in outs)
    print("KERNEL_OK")
</pallas_src>

<mosaic_0001>
module attributes {stable_mosaic.version = 11 : i64} {
  func.func @_linear_kernel(%arg0: i32, %arg1: memref<16x10xbf16, #tpu.memory_space<vmem>>, %arg2: memref<10x256xbf16, #tpu.memory_space<vmem>>, %arg3: memref<1x256xf32, #tpu.memory_space<vmem>>, %arg4: memref<16x256xbf16, #tpu.memory_space<vmem>>) attributes {dimension_semantics = [#tpu.dimension_semantics<parallel>], iteration_bounds = array<i64: 1>, scalar_prefetch = 0 : i64, scratch_operands = 0 : i64, tpu.core_type = #tpu.core_type<tc>, window_params = [{transform_indices = @transform_0, window_bounds = array<i64: 16, 10>}, {pipeline_mode = #tpu.pipeline_mode<synchronous>, transform_indices = @transform_1, window_bounds = array<i64: 10, 256>}, {pipeline_mode = #tpu.pipeline_mode<synchronous>, transform_indices = @transform_2, window_bounds = array<i64: 1, 256>}, {transform_indices = @transform_3, window_bounds = array<i64: 16, 256>}]} {
    %c0 = arith.constant 0 : index
    %c0_0 = arith.constant 0 : index
    %0 = vector.load %arg1[%c0, %c0_0] : memref<16x10xbf16, #tpu.memory_space<vmem>>, vector<16x10xbf16>
    %c0_1 = arith.constant 0 : index
    %c0_2 = arith.constant 0 : index
    %1 = vector.load %arg2[%c0_1, %c0_2] : memref<10x256xbf16, #tpu.memory_space<vmem>>, vector<10x256xbf16>
    %cst = arith.constant dense<0.000000e+00> : vector<16x256xf32>
    %2 = tpu.matmul %0, %1, %cst {dimension_numbers = #tpu.dot_dimension_numbers<[1], [0], [0], [1], [0, 0, 1, 1], [], []>} : vector<16x10xbf16>, vector<10x256xbf16>, vector<16x256xf32> -> vector<16x256xf32>
    %c0_3 = arith.constant 0 : index
    %c0_4 = arith.constant 0 : index
    %3 = vector.load %arg3[%c0_3, %c0_4] : memref<1x256xf32, #tpu.memory_space<vmem>>, vector<1x256xf32>
    %4 = vector.broadcast %3 : vector<1x256xf32> to vector<16x256xf32>
    %5 = arith.addf %2, %4 : vector<16x256xf32>
    %6 = arith.truncf %5 : vector<16x256xf32> to vector<16x256xbf16>
    %c0_5 = arith.constant 0 : index
    %c0_6 = arith.constant 0 : index
    %7 = vector.load %arg4[%c0_5, %c0_6] : memref<16x256xbf16, #tpu.memory_space<vmem>>, vector<16x256xbf16>
    tpu.vector_store %arg4[%c0_5, %c0_6], %6 {strides = array<i32>} : memref<16x256xbf16, #tpu.memory_space<vmem>>, vector<16x256xbf16>,
    return
  }
  func.func @transform_0(%arg0: i32) -> (i32, i32) {
    %c0_i32 = arith.constant 0 : i32
    %c0_i32_0 = arith.constant 0 : i32
    return %arg0, %c0_i32 : i32, i32
  }
  func.func @transform_1(%arg0: i32) -> (i32, i32) {
    %c0_i32 = arith.constant 0 : i32
    %c0_i32_0 = arith.constant 0 : i32
    %c0_i32_1 = arith.constant 0 : i32
    return %c0_i32, %c0_i32_0 : i32, i32
  }
  func.func @transform_2(%arg0: i32) -> (i32, i32) {
    %c0_i32 = arith.constant 0 : i32
    %c0_i32_0 = arith.constant 0 : i32
    %c0_i32_1 = arith.constant 0 : i32
    return %c0_i32, %c0_i32_0 : i32, i32
  }
  func.func @transform_3(%arg0: i32) -> (i32, i32) {
    %c0_i32 = arith.constant 0 : i32
    %c0_i32_0 = arith.constant 0 : i32
    return %arg0, %c0_i32 : i32, i32
  }
}

module attributes {stable_mosaic.version = 11 : i64} {
  func.func @_gcn_kernel(%arg0: i32, %arg1: i32, %arg2: memref<16x16xbf16, #tpu.memory_space<vmem>>, %arg3: memref<16x256xbf16, #tpu.memory_space<vmem>>, %arg4: memref<256x256xbf16, #tpu.memory_space<vmem>>, %arg5: memref<1x256xf32, #tpu.memory_space<vmem>>, %arg6: memref<16x256xbf16, #tpu.memory_space<vmem>>, %arg7: memref<16x256xf32, #tpu.memory_space<vmem>>) attributes {dimension_semantics = [#tpu.dimension_semantics<parallel>, #tpu.dimension_semantics<arbitrary>], iteration_bounds = array<i64: 1, 1>, scalar_prefetch = 0 : i64, scratch_operands = 1 : i64, tpu.core_type = #tpu.core_type<tc>, window_params = [{transform_indices = @transform_0, window_bounds = array<i64: 16, 16>}, {transform_indices = @transform_1, window_bounds = array<i64: 16, 256>}, {pipeline_mode = #tpu.pipeline_mode<synchronous>, transform_indices = @transform_2, window_bounds = array<i64: 256, 256>}, {pipeline_mode = #tpu.pipeline_mode<synchronous>, transform_indices = @transform_3, window_bounds = array<i64: 1, 256>}, {transform_indices = @transform_4, window_bounds = array<i64: 16, 256>}]} {
    %c0_i32 = arith.constant 0 : i32
    %0 = arith.cmpi eq, %arg1, %c0_i32 : i32
    %1 = arith.extui %0 : i1 to i32
    %c0_i32_0 = arith.constant 0 : i32
    %2 = arith.cmpi ne, %1, %c0_i32_0 : i32
    scf.if %2 {
      %cst_10 = arith.constant 0.000000e+00 : f32
      %12 = vector.broadcast %cst_10 : f32 to vector<16x256xf32>
      %c0_11 = arith.constant 0 : index
      %c0_12 = arith.constant 0 : index
      %13 = vector.load %arg7[%c0_11, %c0_12] : memref<16x256xf32, #tpu.memory_space<vmem>>, vector<16x256xf32>
      tpu.vector_store %arg7[%c0_11, %c0_12], %12 {strides = array<i32>} : memref<16x256xf32, #tpu.memory_space<vmem>>, vector<16x256xf32>,
    } else {
    }
    %c0 = arith.constant 0 : index
    %c0_1 = arith.constant 0 : index
    %3 = vector.load %arg7[%c0, %c0_1] : memref<16x256xf32, #tpu.memory_space<vmem>>, vector<16x256xf32>
    %c0_2 = arith.constant 0 : index
    %c0_3 = arith.constant 0 : index
    %4 = vector.load %arg2[%c0_2, %c0_3] : memref<16x16xbf16, #tpu.memory_space<vmem>>, vector<16x16xbf16>
    %c0_4 = arith.constant 0 : index
    %c0_5 = arith.constant 0 : index
    %5 = vector.load %arg3[%c0_4, %c0_5] : memref<16x256xbf16, #tpu.memory_space<vmem>>, vector<16x256xbf16>
    %cst = arith.constant dense<0.000000e+00> : vector<16x256xf32>
    %6 = tpu.matmul %4, %5, %cst {dimension_numbers = #tpu.dot_dimension_numbers<[1], [0], [0], [1], [0, 0, 1, 1], [], []>} : vector<16x16xbf16>, vector<16x256xbf16>, vector<16x256xf32> -> vector<16x256xf32>
    %7 = arith.addf %3, %6 : vector<16x256xf32>
    %c0_6 = arith.constant 0 : index
    %c0_7 = arith.constant 0 : index
    %8 = vector.load %arg7[%c0_6, %c0_7] : memref<16x256xf32, #tpu.memory_space<vmem>>, vector<16x256xf32>
    tpu.vector_store %arg7[%c0_6, %c0_7], %7 {strides = array<i32>} : memref<16x256xf32, #tpu.memory_space<vmem>>, vector<16x256xf32>,
    %c0_i32_8 = arith.constant 0 : i32
    %9 = arith.cmpi eq, %arg1, %c0_i32_8 : i32
    %10 = arith.extui %9 : i1 to i32
    %c0_i32_9 = arith.constant 0 : i32
    %11 = arith.cmpi ne, %10, %c0_i32_9 : i32
    scf.if %11 {
      %c0_10 = arith.constant 0 : index
      %c0_11 = arith.constant 0 : index
      %12 = vector.load %arg7[%c0_10, %c0_11] : memref<16x256xf32, #tpu.memory_space<vmem>>, vector<16x256xf32>
      %13 = arith.truncf %12 : vector<16x256xf32> to vector<16x256xbf16>
      %c0_12 = arith.constant 0 : index
      %c0_13 = arith.constant 0 : index
      %14 = vector.load %arg4[%c0_12, %c0_13] : memref<256x256xbf16, #tpu.memory_space<vmem>>, vector<256x256xbf16>
      %cst_14 = arith.constant dense<0.000000e+00> : vector<16x256xf32>
      %15 = tpu.matmul %13, %14, %cst_14 {dimension_numbers = #tpu.dot_dimension_numbers<[1], [0], [0], [1], [0, 0, 1, 1], [], []>} : vector<16x256xbf16>, vector<256x256xbf16>, vector<16x256xf32> -> vector<16x256xf32>
      %c0_15 = arith.constant 0 : index
      %c0_16 = arith.constant 0 : index
      %16 = vector.load %arg5[%c0_15, %c0_16] : memref<1x256xf32, #tpu.memory_space<vmem>>, vector<1x256xf32>
      %17 = vector.broadcast %16 : vector<1x256xf32> to vector<16x256xf32>
      %18 = arith.addf %15, %17 : vector<16x256xf32>
      %cst_17 = arith.constant 0.000000e+00 : f32
      %19 = vector.broadcast %cst_17 : f32 to vector<16x256xf32>
      %20 = arith.maximumf %18, %19 : vector<16x256xf32>
      %21 = arith.truncf %20 : vector<16x256xf32> to vector<16x256xbf16>
      %c0_18 = arith.constant 0 : index
      %c0_19 = arith.constant 0 : index
      %22 = vector.load %arg6[%c0_18, %c0_19] : memref<16x256xbf16, #tpu.memory_space<vmem>>, vector<16x256xbf16>
      tpu.vector_store %arg6[%c0_18, %c0_19], %21 {strides = array<i32>} : memref<16x256xbf16, #tpu.memory_space<vmem>>, vector<16x256xbf16>,
    } else {
    }
    return
  }
  func.func @transform_0(%arg0: i32, %arg1: i32) -> (i32, i32) {
    %c0_i32 = arith.constant 0 : i32
    return %arg0, %arg1 : i32, i32
  }
  func.func @transform_1(%arg0: i32, %arg1: i32) -> (i32, i32) {
    %c0_i32 = arith.constant 0 : i32
    %c0_i32_0 = arith.constant 0 : i32
    return %arg1, %c0_i32 : i32, i32
  }
  func.func @transform_2(%arg0: i32, %arg1: i32) -> (i32, i32) {
    %c0_i32 = arith.constant 0 : i32
    %c0_i32_0 = arith.constant 0 : i32
    %c0_i32_1 = arith.constant 0 : i32
    return %c0_i32, %c0_i32_0 : i32, i32
  }
  func.func @transform_3(%arg0: i32, %arg1: i32) -> (i32, i32) {
    %c0_i32 = arith.constant 0 : i32
    %c0_i32_0 = arith.constant 0 : i32
    %c0_i32_1 = arith.constant 0 : i32
    return %c0_i32, %c0_i32_0 : i32, i32
  }
  func.func @transform_4(%arg0: i32, %arg1: i32) -> (i32, i32) {
    %c0_i32 = arith.constant 0 : i32
    %c0_i32_0 = arith.constant 0 : i32
    return %arg0, %c0_i32 : i32, i32
  }
}

module attributes {stable_mosaic.version = 11 : i64} {
  func.func @_sage_kernel(%arg0: i32, %arg1: i32, %arg2: memref<16x16xbf16, #tpu.memory_space<vmem>>, %arg3: memref<16x256xbf16, #tpu.memory_space<vmem>>, %arg4: memref<16x256xbf16, #tpu.memory_space<vmem>>, %arg5: memref<256x256xbf16, #tpu.memory_space<vmem>>, %arg6: memref<256x256xbf16, #tpu.memory_space<vmem>>, %arg7: memref<1x256xf32, #tpu.memory_space<vmem>>, %arg8: memref<16x256xbf16, #tpu.memory_space<vmem>>, %arg9: memref<16x256xf32, #tpu.memory_space<vmem>>) attributes {dimension_semantics = [#tpu.dimension_semantics<parallel>, #tpu.dimension_semantics<arbitrary>], iteration_bounds = array<i64: 1, 1>, scalar_prefetch = 0 : i64, scratch_operands = 1 : i64, tpu.core_type = #tpu.core_type<tc>, window_params = [{transform_indices = @transform_0, window_bounds = array<i64: 16, 16>}, {transform_indices = @transform_1, window_bounds = array<i64: 16, 256>}, {transform_indices = @transform_2, window_bounds = array<i64: 16, 256>}, {pipeline_mode = #tpu.pipeline_mode<synchronous>, transform_indices = @transform_3, window_bounds = array<i64: 256, 256>}, {pipeline_mode = #tpu.pipeline_mode<synchronous>, transform_indices = @transform_4, window_bounds = array<i64: 256, 256>}, {pipeline_mode = #tpu.pipeline_mode<synchronous>, transform_indices = @transform_5, window_bounds = array<i64: 1, 256>}, {transform_indices = @transform_6, window_bounds = array<i64: 16, 256>}]} {
    %c0_i32 = arith.constant 0 : i32
    %0 = arith.cmpi eq, %arg1, %c0_i32 : i32
    %1 = arith.extui %0 : i1 to i32
    %c0_i32_0 = arith.constant 0 : i32
    %2 = arith.cmpi ne, %1, %c0_i32_0 : i32
    scf.if %2 {
      %cst_10 = arith.constant 0.000000e+00 : f32
      %12 = vector.broadcast %cst_10 : f32 to vector<16x256xf32>
      %c0_11 = arith.constant 0 : index
      %c0_12 = arith.constant 0 : index
      %13 = vector.load %arg9[%c0_11, %c0_12] : memref<16x256xf32, #tpu.memory_space<vmem>>, vector<16x256xf32>
      tpu.vector_store %arg9[%c0_11, %c0_12], %12 {strides = array<i32>} : memref<16x256xf32, #tpu.memory_space<vmem>>, vector<16x256xf32>,
    } else {
    }
    %c0 = arith.constant 0 : index
    %c0_1 = arith.constant 0 : index
    %3 = vector.load %arg9[%c0, %c0_1] : memref<16x256xf32, #tpu.memory_space<vmem>>, vector<16x256xf32>
    %c0_2 = arith.constant 0 : index
    %c0_3 = arith.constant 0 : index
    %4 = vector.load %arg2[%c0_2, %c0_3] : memref<16x16xbf16, #tpu.memory_space<vmem>>, vector<16x16xbf16>
    %c0_4 = arith.constant 0 : index
    %c0_5 = arith.constant 0 : index
    %5 = vector.load %arg3[%c0_4, %c0_5] : memref<16x256xbf16, #tpu.memory_space<vmem>>, vector<16x256xbf16>
    %cst = arith.constant dense<0.000000e+00> : vector<16x256xf32>
    %6 = tpu.matmul %4, %5, %cst {dimension_numbers = #tpu.dot_dimension_numbers<[1], [0], [0], [1], [0, 0, 1, 1], [], []>} : vector<16x16xbf16>, vector<16x256xbf16>, vector<16x256xf32> -> vector<16x256xf32>
    %7 = arith.addf %3, %6 : vector<16x256xf32>
    %c0_6 = arith.constant 0 : index
    %c0_7 = arith.constant 0 : index
    %8 = vector.load %arg9[%c0_6, %c0_7] : memref<16x256xf32, #tpu.memory_space<vmem>>, vector<16x256xf32>
    tpu.vector_store %arg9[%c0_6, %c0_7], %7 {strides = array<i32>} : memref<16x256xf32, #tpu.memory_space<vmem>>, vector<16x256xf32>,
    %c0_i32_8 = arith.constant 0 : i32
    %9 = arith.cmpi eq, %arg1, %c0_i32_8 : i32
    %10 = arith.extui %9 : i1 to i32
    %c0_i32_9 = arith.constant 0 : i32
    %11 = arith.cmpi ne, %10, %c0_i32_9 : i32
    scf.if %11 {
      %c0_10 = arith.constant 0 : index
      %c0_11 = arith.constant 0 : index
      %12 = vector.load %arg9[%c0_10, %c0_11] : memref<16x256xf32, #tpu.memory_space<vmem>>, vector<16x256xf32>
      %13 = arith.truncf %12 : vector<16x256xf32> to vector<16x256xbf16>
      %c0_12 = arith.constant 0 : index
      %c0_13 = arith.constant 0 : index
      %14 = vector.load %arg5[%c0_12, %c0_13] : memref<256x256xbf16, #tpu.memory_space<vmem>>, vector<256x256xbf16>
      %cst_14 = arith.constant dense<0.000000e+00> : vector<16x256xf32>
      %15 = tpu.matmul %13, %14, %cst_14 {dimension_numbers = #tpu.dot_dimension_numbers<[1], [0], [0], [1], [0, 0, 1, 1], [], []>} : vector<16x256xbf16>, vector<256x256xbf16>, vector<16x256xf32> -> vector<16x256xf32>
      %c0_15 = arith.constant 0 : index
      %c0_16 = arith.constant 0 : index
      %16 = vector.load %arg4[%c0_15, %c0_16] : memref<16x256xbf16, #tpu.memory_space<vmem>>, vector<16x256xbf16>
      %c0_17 = arith.constant 0 : index
      %c0_18 = arith.constant 0 : index
      %17 = vector.load %arg6[%c0_17, %c0_18] : memref<256x256xbf16, #tpu.memory_space<vmem>>, vector<256x256xbf16>
      %cst_19 = arith.constant dense<0.000000e+00> : vector<16x256xf32>
      %18 = tpu.matmul %16, %17, %cst_19 {dimension_numbers = #tpu.dot_dimension_numbers<[1], [0], [0], [1], [0, 0, 1, 1], [], []>} : vector<16x256xbf16>, vector<256x256xbf16>, vector<16x256xf32> -> vector<16x256xf32>
      %19 = arith.addf %15, %18 : vector<16x256xf32>
      %c0_20 = arith.constant 0 : index
      %c0_21 = arith.constant 0 : index
      %20 = vector.load %arg7[%c0_20, %c0_21] : memref<1x256xf32, #tpu.memory_space<vmem>>, vector<1x256xf32>
      %21 = vector.broadcast %20 : vector<1x256xf32> to vector<16x256xf32>
      %22 = arith.addf %19, %21 : vector<16x256xf32>
      %cst_22 = arith.constant 0.000000e+00 : f32
      %23 = vector.broadcast %cst_22 : f32 to vector<16x256xf32>
      %24 = arith.maximumf %22, %23 : vector<16x256xf32>
      %25 = arith.truncf %24 : vector<16x256xf32> to vector<16x256xbf16>
      %c0_23 = arith.constant 0 : index
      %c0_24 = arith.constant 0 : index
      %26 = vector.load %arg8[%c0_23, %c0_24] : memref<16x256xbf16, #tpu.memory_space<vmem>>, vector<16x256xbf16>
      tpu.vector_store %arg8[%c0_23, %c0_24], %25 {strides = array<i32>} : memref<16x256xbf16, #tpu.memory_space<vmem>>, vector<16x256xbf16>,
    } else {
    }
    return
  }
  func.func @transform_0(%arg0: i32, %arg1: i32) -> (i32, i32) {
    %c0_i32 = arith.constant 0 : i32
    return %arg0, %arg1 : i32, i32
  }
  func.func @transform_1(%arg0: i32, %arg1: i32) -> (i32, i32) {
    %c0_i32 = arith.constant 0 : i32
    %c0_i32_0 = arith.constant 0 : i32
    return %arg1, %c0_i32 : i32, i32
  }
  func.func @transform_2(%arg0: i32, %arg1: i32) -> (i32, i32) {
    %c0_i32 = arith.constant 0 : i32
    %c0_i32_0 = arith.constant 0 : i32
    return %arg0, %c0_i32 : i32, i32
  }
  func.func @transform_3(%arg0: i32, %arg1: i32) -> (i32, i32) {
    %c0_i32 = arith.constant 0 : i32
    %c0_i32_0 = arith.constant 0 : i32
    %c0_i32_1 = arith.constant 0 : i32
    return %c0_i32, %c0_i32_0 : i32, i32
  }
  func.func @transform_4(%arg0: i32, %arg1: i32) -> (i32, i32) {
    %c0_i32 = arith.constant 0 : i32
    %c0_i32_0 = arith.constant 0 : i32
    %c0_i32_1 = arith.constant 0 : i32
    return %c0_i32, %c0_i32_0 : i32, i32
  }
  func.func @transform_5(%arg0: i32, %arg1: i32) -> (i32, i32) {
    %c0_i32 = arith.constant 0 : i32
    %c0_i32_0 = arith.constant 0 : i32
    %c0_i32_1 = arith.constant 0 : i32
    return %c0_i32, %c0_i32_0 : i32, i32
  }
  func.func @transform_6(%arg0: i32, %arg1: i32) -> (i32, i32) {
    %c0_i32 = arith.constant 0 : i32
    %c0_i32_0 = arith.constant 0 : i32
    return %arg0, %c0_i32 : i32, i32
  }
}

module attributes {stable_mosaic.version = 11 : i64} {
  func.func @_linear_kernel(%arg0: i32, %arg1: memref<16x12xbf16, #tpu.memory_space<vmem>>, %arg2: memref<12x256xbf16, #tpu.memory_space<vmem>>, %arg3: memref<1x256xf32, #tpu.memory_space<vmem>>, %arg4: memref<16x256xbf16, #tpu.memory_space<vmem>>) attributes {dimension_semantics = [#tpu.dimension_semantics<parallel>], iteration_bounds = array<i64: 1>, scalar_prefetch = 0 : i64, scratch_operands = 0 : i64, tpu.core_type = #tpu.core_type<tc>, window_params = [{transform_indices = @transform_0, window_bounds = array<i64: 16, 12>}, {pipeline_mode = #tpu.pipeline_mode<synchronous>, transform_indices = @transform_1, window_bounds = array<i64: 12, 256>}, {pipeline_mode = #tpu.pipeline_mode<synchronous>, transform_indices = @transform_2, window_bounds = array<i64: 1, 256>}, {transform_indices = @transform_3, window_bounds = array<i64: 16, 256>}]} {
    %c0 = arith.constant 0 : index
    %c0_0 = arith.constant 0 : index
    %0 = vector.load %arg1[%c0, %c0_0] : memref<16x12xbf16, #tpu.memory_space<vmem>>, vector<16x12xbf16>
    %c0_1 = arith.constant 0 : index
    %c0_2 = arith.constant 0 : index
    %1 = vector.load %arg2[%c0_1, %c0_2] : memref<12x256xbf16, #tpu.memory_space<vmem>>, vector<12x256xbf16>
    %cst = arith.constant dense<0.000000e+00> : vector<16x256xf32>
    %2 = tpu.matmul %0, %1, %cst {dimension_numbers = #tpu.dot_dimension_numbers<[1], [0], [0], [1], [0, 0, 1, 1], [], []>} : vector<16x12xbf16>, vector<12x256xbf16>, vector<16x256xf32> -> vector<16x256xf32>
    %c0_3 = arith.constant 0 : index
    %c0_4 = arith.constant 0 : index
    %3 = vector.load %arg3[%c0_3, %c0_4] : memref<1x256xf32, #tpu.memory_space<vmem>>, vector<1x256xf32>
    %4 = vector.broadcast %3 : vector<1x256xf32> to vector<16x256xf32>
    %5 = arith.addf %2, %4 : vector<16x256xf32>
    %6 = arith.truncf %5 : vector<16x256xf32> to vector<16x256xbf16>
    %c0_5 = arith.constant 0 : index
    %c0_6 = arith.constant 0 : index
    %7 = vector.load %arg4[%c0_5, %c0_6] : memref<16x256xbf16, #tpu.memory_space<vmem>>, vector<16x256xbf16>
    tpu.vector_store %arg4[%c0_5, %c0_6], %6 {strides = array<i32>} : memref<16x256xbf16, #tpu.memory_space<vmem>>, vector<16x256xbf16>,
    return
  }
  func.func @transform_0(%arg0: i32) -> (i32, i32) {
    %c0_i32 = arith.constant 0 : i32
    %c0_i32_0 = arith.constant 0 : i32
    return %arg0, %c0_i32 : i32, i32
  }
  func.func @transform_1(%arg0: i32) -> (i32, i32) {
    %c0_i32 = arith.constant 0 : i32
    %c0_i32_0 = arith.constant 0 : i32
    %c0_i32_1 = arith.constant 0 : i32
    return %c0_i32, %c0_i32_0 : i32, i32
  }
  func.func @transform_2(%arg0: i32) -> (i32, i32) {
    %c0_i32 = arith.constant 0 : i32
    %c0_i32_0 = arith.constant 0 : i32
    %c0_i32_1 = arith.constant 0 : i32
    return %c0_i32, %c0_i32_0 : i32, i32
  }
  func.func @transform_3(%arg0: i32) -> (i32, i32) {
    %c0_i32 = arith.constant 0 : i32
    %c0_i32_0 = arith.constant 0 : i32
    return %arg0, %c0_i32 : i32, i32
  }
}

module attributes {stable_mosaic.version = 11 : i64} {
  func.func @_gcn_kernel(%arg0: i32, %arg1: i32, %arg2: memref<8x8xbf16, #tpu.memory_space<vmem>>, %arg3: memref<8x256xbf16, #tpu.memory_space<vmem>>, %arg4: memref<256x128xbf16, #tpu.memory_space<vmem>>, %arg5: memref<1x128xf32, #tpu.memory_space<vmem>>, %arg6: memref<8x128xbf16, #tpu.memory_space<vmem>>, %arg7: memref<8x256xf32, #tpu.memory_space<vmem>>) attributes {dimension_semantics = [#tpu.dimension_semantics<parallel>, #tpu.dimension_semantics<arbitrary>], iteration_bounds = array<i64: 1, 1>, scalar_prefetch = 0 : i64, scratch_operands = 1 : i64, tpu.core_type = #tpu.core_type<tc>, window_params = [{transform_indices = @transform_0, window_bounds = array<i64: 8, 8>}, {transform_indices = @transform_1, window_bounds = array<i64: 8, 256>}, {pipeline_mode = #tpu.pipeline_mode<synchronous>, transform_indices = @transform_2, window_bounds = array<i64: 256, 128>}, {pipeline_mode = #tpu.pipeline_mode<synchronous>, transform_indices = @transform_3, window_bounds = array<i64: 1, 128>}, {transform_indices = @transform_4, window_bounds = array<i64: 8, 128>}]} {
    %c0_i32 = arith.constant 0 : i32
    %0 = arith.cmpi eq, %arg1, %c0_i32 : i32
    %1 = arith.extui %0 : i1 to i32
    %c0_i32_0 = arith.constant 0 : i32
    %2 = arith.cmpi ne, %1, %c0_i32_0 : i32
    scf.if %2 {
      %cst_10 = arith.constant 0.000000e+00 : f32
      %12 = vector.broadcast %cst_10 : f32 to vector<8x256xf32>
      %c0_11 = arith.constant 0 : index
      %c0_12 = arith.constant 0 : index
      %13 = vector.load %arg7[%c0_11, %c0_12] : memref<8x256xf32, #tpu.memory_space<vmem>>, vector<8x256xf32>
      tpu.vector_store %arg7[%c0_11, %c0_12], %12 {strides = array<i32>} : memref<8x256xf32, #tpu.memory_space<vmem>>, vector<8x256xf32>,
    } else {
    }
    %c0 = arith.constant 0 : index
    %c0_1 = arith.constant 0 : index
    %3 = vector.load %arg7[%c0, %c0_1] : memref<8x256xf32, #tpu.memory_space<vmem>>, vector<8x256xf32>
    %c0_2 = arith.constant 0 : index
    %c0_3 = arith.constant 0 : index
    %4 = vector.load %arg2[%c0_2, %c0_3] : memref<8x8xbf16, #tpu.memory_space<vmem>>, vector<8x8xbf16>
    %c0_4 = arith.constant 0 : index
    %c0_5 = arith.constant 0 : index
    %5 = vector.load %arg3[%c0_4, %c0_5] : memref<8x256xbf16, #tpu.memory_space<vmem>>, vector<8x256xbf16>
    %cst = arith.constant dense<0.000000e+00> : vector<8x256xf32>
    %6 = tpu.matmul %4, %5, %cst {dimension_numbers = #tpu.dot_dimension_numbers<[1], [0], [0], [1], [0, 0, 1, 1], [], []>} : vector<8x8xbf16>, vector<8x256xbf16>, vector<8x256xf32> -> vector<8x256xf32>
    %7 = arith.addf %3, %6 : vector<8x256xf32>
    %c0_6 = arith.constant 0 : index
    %c0_7 = arith.constant 0 : index
    %8 = vector.load %arg7[%c0_6, %c0_7] : memref<8x256xf32, #tpu.memory_space<vmem>>, vector<8x256xf32>
    tpu.vector_store %arg7[%c0_6, %c0_7], %7 {strides = array<i32>} : memref<8x256xf32, #tpu.memory_space<vmem>>, vector<8x256xf32>,
    %c0_i32_8 = arith.constant 0 : i32
    %9 = arith.cmpi eq, %arg1, %c0_i32_8 : i32
    %10 = arith.extui %9 : i1 to i32
    %c0_i32_9 = arith.constant 0 : i32
    %11 = arith.cmpi ne, %10, %c0_i32_9 : i32
    scf.if %11 {
      %c0_10 = arith.constant 0 : index
      %c0_11 = arith.constant 0 : index
      %12 = vector.load %arg7[%c0_10, %c0_11] : memref<8x256xf32, #tpu.memory_space<vmem>>, vector<8x256xf32>
      %13 = arith.truncf %12 : vector<8x256xf32> to vector<8x256xbf16>
      %c0_12 = arith.constant 0 : index
      %c0_13 = arith.constant 0 : index
      %14 = vector.load %arg4[%c0_12, %c0_13] : memref<256x128xbf16, #tpu.memory_space<vmem>>, vector<256x128xbf16>
      %cst_14 = arith.constant dense<0.000000e+00> : vector<8x128xf32>
      %15 = tpu.matmul %13, %14, %cst_14 {dimension_numbers = #tpu.dot_dimension_numbers<[1], [0], [0], [1], [0, 0, 1, 1], [], []>} : vector<8x256xbf16>, vector<256x128xbf16>, vector<8x128xf32> -> vector<8x128xf32>
      %c0_15 = arith.constant 0 : index
      %c0_16 = arith.constant 0 : index
      %16 = vector.load %arg5[%c0_15, %c0_16] : memref<1x128xf32, #tpu.memory_space<vmem>>, vector<1x128xf32>
      %17 = vector.broadcast %16 : vector<1x128xf32> to vector<8x128xf32>
      %18 = arith.addf %15, %17 : vector<8x128xf32>
      %19 = arith.truncf %18 : vector<8x128xf32> to vector<8x128xbf16>
      %c0_17 = arith.constant 0 : index
      %c0_18 = arith.constant 0 : index
      %20 = vector.load %arg6[%c0_17, %c0_18] : memref<8x128xbf16, #tpu.memory_space<vmem>>, vector<8x128xbf16>
      tpu.vector_store %arg6[%c0_17, %c0_18], %19 {strides = array<i32>} : memref<8x128xbf16, #tpu.memory_space<vmem>>, vector<8x128xbf16>,
    } else {
    }
    return
  }
  func.func @transform_0(%arg0: i32, %arg1: i32) -> (i32, i32) {
    %c0_i32 = arith.constant 0 : i32
    return %arg0, %arg1 : i32, i32
  }
  func.func @transform_1(%arg0: i32, %arg1: i32) -> (i32, i32) {
    %c0_i32 = arith.constant 0 : i32
    %c0_i32_0 = arith.constant 0 : i32
    return %arg1, %c0_i32 : i32, i32
  }
  func.func @transform_2(%arg0: i32, %arg1: i32) -> (i32, i32) {
    %c0_i32 = arith.constant 0 : i32
    %c0_i32_0 = arith.constant 0 : i32
    %c0_i32_1 = arith.constant 0 : i32
    return %c0_i32, %c0_i32_0 : i32, i32
  }
  func.func @transform_3(%arg0: i32, %arg1: i32) -> (i32, i32) {
    %c0_i32 = arith.constant 0 : i32
    %c0_i32_0 = arith.constant 0 : i32
    %c0_i32_1 = arith.constant 0 : i32
    return %c0_i32, %c0_i32_0 : i32, i32
  }
  func.func @transform_4(%arg0: i32, %arg1: i32) -> (i32, i32) {
    %c0_i32 = arith.constant 0 : i32
    %c0_i32_0 = arith.constant 0 : i32
    return %arg0, %c0_i32 : i32, i32
  }
}

module attributes {stable_mosaic.version = 11 : i64} {
  func.func @_sage_kernel(%arg0: i32, %arg1: i32, %arg2: memref<8x8xbf16, #tpu.memory_space<vmem>>, %arg3: memref<8x128xbf16, #tpu.memory_space<vmem>>, %arg4: memref<8x128xbf16, #tpu.memory_space<vmem>>, %arg5: memref<128x128xbf16, #tpu.memory_space<vmem>>, %arg6: memref<128x128xbf16, #tpu.memory_space<vmem>>, %arg7: memref<1x128xf32, #tpu.memory_space<vmem>>, %arg8: memref<8x128xf32, #tpu.memory_space<vmem>>, %arg9: memref<8x128xf32, #tpu.memory_space<vmem>>) attributes {dimension_semantics = [#tpu.dimension_semantics<parallel>, #tpu.dimension_semantics<arbitrary>], iteration_bounds = array<i64: 1, 1>, scalar_prefetch = 0 : i64, scratch_operands = 1 : i64, tpu.core_type = #tpu.core_type<tc>, window_params = [{transform_indices = @transform_0, window_bounds = array<i64: 8, 8>}, {transform_indices = @transform_1, window_bounds = array<i64: 8, 128>}, {transform_indices = @transform_2, window_bounds = array<i64: 8, 128>}, {pipeline_mode = #tpu.pipeline_mode<synchronous>, transform_indices = @transform_3, window_bounds = array<i64: 128, 128>}, {pipeline_mode = #tpu.pipeline_mode<synchronous>, transform_indices = @transform_4, window_bounds = array<i64: 128, 128>}, {pipeline_mode = #tpu.pipeline_mode<synchronous>, transform_indices = @transform_5, window_bounds = array<i64: 1, 128>}, {transform_indices = @transform_6, window_bounds = array<i64: 8, 128>}]} {
    %c0_i32 = arith.constant 0 : i32
    %0 = arith.cmpi eq, %arg1, %c0_i32 : i32
    %1 = arith.extui %0 : i1 to i32
    %c0_i32_0 = arith.constant 0 : i32
    %2 = arith.cmpi ne, %1, %c0_i32_0 : i32
    scf.if %2 {
      %cst_10 = arith.constant 0.000000e+00 : f32
      %12 = vector.broadcast %cst_10 : f32 to vector<8x128xf32>
      %c0_11 = arith.constant 0 : index
      %c0_12 = arith.constant 0 : index
      %13 = vector.load %arg9[%c0_11, %c0_12] : memref<8x128xf32, #tpu.memory_space<vmem>>, vector<8x128xf32>
      tpu.vector_store %arg9[%c0_11, %c0_12], %12 {strides = array<i32>} : memref<8x128xf32, #tpu.memory_space<vmem>>, vector<8x128xf32>,
    } else {
    }
    %c0 = arith.constant 0 : index
    %c0_1 = arith.constant 0 : index
    %3 = vector.load %arg9[%c0, %c0_1] : memref<8x128xf32, #tpu.memory_space<vmem>>, vector<8x128xf32>
    %c0_2 = arith.constant 0 : index
    %c0_3 = arith.constant 0 : index
    %4 = vector.load %arg2[%c0_2, %c0_3] : memref<8x8xbf16, #tpu.memory_space<vmem>>, vector<8x8xbf16>
    %c0_4 = arith.constant 0 : index
    %c0_5 = arith.constant 0 : index
    %5 = vector.load %arg3[%c0_4, %c0_5] : memref<8x128xbf16, #tpu.memory_space<vmem>>, vector<8x128xbf16>
    %cst = arith.constant dense<0.000000e+00> : vector<8x128xf32>
    %6 = tpu.matmul %4, %5, %cst {dimension_numbers = #tpu.dot_dimension_numbers<[1], [0], [0], [1], [0, 0, 1, 1], [], []>} : vector<8x8xbf16>, vector<8x128xbf16>, vector<8x128xf32> -> vector<8x128xf32>
    %7 = arith.addf %3, %6 : vector<8x128xf32>
    %c0_6 = arith.constant 0 : index
    %c0_7 = arith.constant 0 : index
    %8 = vector.load %arg9[%c0_6, %c0_7] : memref<8x128xf32, #tpu.memory_space<vmem>>, vector<8x128xf32>
    tpu.vector_store %arg9[%c0_6, %c0_7], %7 {strides = array<i32>} : memref<8x128xf32, #tpu.memory_space<vmem>>, vector<8x128xf32>,
    %c0_i32_8 = arith.constant 0 : i32
    %9 = arith.cmpi eq, %arg1, %c0_i32_8 : i32
    %10 = arith.extui %9 : i1 to i32
    %c0_i32_9 = arith.constant 0 : i32
    %11 = arith.cmpi ne, %10, %c0_i32_9 : i32
    scf.if %11 {
      %c0_10 = arith.constant 0 : index
      %c0_11 = arith.constant 0 : index
      %12 = vector.load %arg9[%c0_10, %c0_11] : memref<8x128xf32, #tpu.memory_space<vmem>>, vector<8x128xf32>
      %13 = arith.truncf %12 : vector<8x128xf32> to vector<8x128xbf16>
      %c0_12 = arith.constant 0 : index
      %c0_13 = arith.constant 0 : index
      %14 = vector.load %arg5[%c0_12, %c0_13] : memref<128x128xbf16, #tpu.memory_space<vmem>>, vector<128x128xbf16>
      %cst_14 = arith.constant dense<0.000000e+00> : vector<8x128xf32>
      %15 = tpu.matmul %13, %14, %cst_14 {dimension_numbers = #tpu.dot_dimension_numbers<[1], [0], [0], [1], [0, 0, 1, 1], [], []>} : vector<8x128xbf16>, vector<128x128xbf16>, vector<8x128xf32> -> vector<8x128xf32>
      %c0_15 = arith.constant 0 : index
      %c0_16 = arith.constant 0 : index
      %16 = vector.load %arg4[%c0_15, %c0_16] : memref<8x128xbf16, #tpu.memory_space<vmem>>, vector<8x128xbf16>
      %c0_17 = arith.constant 0 : index
      %c0_18 = arith.constant 0 : index
      %17 = vector.load %arg6[%c0_17, %c0_18] : memref<128x128xbf16, #tpu.memory_space<vmem>>, vector<128x128xbf16>
      %cst_19 = arith.constant dense<0.000000e+00> : vector<8x128xf32>
      %18 = tpu.matmul %16, %17, %cst_19 {dimension_numbers = #tpu.dot_dimension_numbers<[1], [0], [0], [1], [0, 0, 1, 1], [], []>} : vector<8x128xbf16>, vector<128x128xbf16>, vector<8x128xf32> -> vector<8x128xf32>
      %19 = arith.addf %15, %18 : vector<8x128xf32>
      %c0_20 = arith.constant 0 : index
      %c0_21 = arith.constant 0 : index
      %20 = vector.load %arg7[%c0_20, %c0_21] : memref<1x128xf32, #tpu.memory_space<vmem>>, vector<1x128xf32>
      %21 = vector.broadcast %20 : vector<1x128xf32> to vector<8x128xf32>
      %22 = arith.addf %19, %21 : vector<8x128xf32>
      %c0_22 = arith.constant 0 : index
      %c0_23 = arith.constant 0 : index
      %23 = vector.load %arg8[%c0_22, %c0_23] : memref<8x128xf32, #tpu.memory_space<vmem>>, vector<8x128xf32>
      tpu.vector_store %arg8[%c0_22, %c0_23], %22 {strides = array<i32>} : memref<8x128xf32, #tpu.memory_space<vmem>>, vector<8x128xf32>,
    } else {
    }
    return
  }
  func.func @transform_0(%arg0: i32, %arg1: i32) -> (i32, i32) {
    %c0_i32 = arith.constant 0 : i32
    return %arg0, %arg1 : i32, i32
  }
  func.func @transform_1(%arg0: i32, %arg1: i32) -> (i32, i32) {
    %c0_i32 = arith.constant 0 : i32
    %c0_i32_0 = arith.constant 0 : i32
    return %arg1, %c0_i32 : i32, i32
  }
  func.func @transform_2(%arg0: i32, %arg1: i32) -> (i32, i32) {
    %c0_i32 = arith.constant 0 : i32
    %c0_i32_0 = arith.constant 0 : i32
    return %arg0, %c0_i32 : i32, i32
  }
  func.func @transform_3(%arg0: i32, %arg1: i32) -> (i32, i32) {
    %c0_i32 = arith.constant 0 : i32
    %c0_i32_0 = arith.constant 0 : i32
    %c0_i32_1 = arith.constant 0 : i32
    return %c0_i32, %c0_i32_0 : i32, i32
  }
  func.func @transform_4(%arg0: i32, %arg1: i32) -> (i32, i32) {
    %c0_i32 = arith.constant 0 : i32
    %c0_i32_0 = arith.constant 0 : i32
    %c0_i32_1 = arith.constant 0 : i32
    return %c0_i32, %c0_i32_0 : i32, i32
  }
  func.func @transform_5(%arg0: i32, %arg1: i32) -> (i32, i32) {
    %c0_i32 = arith.constant 0 : i32
    %c0_i32_0 = arith.constant 0 : i32
    %c0_i32_1 = arith.constant 0 : i32
    return %c0_i32, %c0_i32_0 : i32, i32
  }
  func.func @transform_6(%arg0: i32, %arg1: i32) -> (i32, i32) {
    %c0_i32 = arith.constant 0 : i32
    %c0_i32_0 = arith.constant 0 : i32
    return %arg0, %c0_i32 : i32, i32
  }
}

module attributes {stable_mosaic.version = 11 : i64} {
  func.func @_gcn_kernel(%arg0: i32, %arg1: i32, %arg2: memref<16x16xbf16, #tpu.memory_space<vmem>>, %arg3: memref<16x256xbf16, #tpu.memory_space<vmem>>, %arg4: memref<256x128xbf16, #tpu.memory_space<vmem>>, %arg5: memref<1x128xf32, #tpu.memory_space<vmem>>, %arg6: memref<16x128xbf16, #tpu.memory_space<vmem>>, %arg7: memref<16x256xf32, #tpu.memory_space<vmem>>) attributes {dimension_semantics = [#tpu.dimension_semantics<parallel>, #tpu.dimension_semantics<arbitrary>], iteration_bounds = array<i64: 1, 1>, scalar_prefetch = 0 : i64, scratch_operands = 1 : i64, tpu.core_type = #tpu.core_type<tc>, window_params = [{transform_indices = @transform_0, window_bounds = array<i64: 16, 16>}, {transform_indices = @transform_1, window_bounds = array<i64: 16, 256>}, {pipeline_mode = #tpu.pipeline_mode<synchronous>, transform_indices = @transform_2, window_bounds = array<i64: 256, 128>}, {pipeline_mode = #tpu.pipeline_mode<synchronous>, transform_indices = @transform_3, window_bounds = array<i64: 1, 128>}, {transform_indices = @transform_4, window_bounds = array<i64: 16, 128>}]} {
    %c0_i32 = arith.constant 0 : i32
    %0 = arith.cmpi eq, %arg1, %c0_i32 : i32
    %1 = arith.extui %0 : i1 to i32
    %c0_i32_0 = arith.constant 0 : i32
    %2 = arith.cmpi ne, %1, %c0_i32_0 : i32
    scf.if %2 {
      %cst_10 = arith.constant 0.000000e+00 : f32
      %12 = vector.broadcast %cst_10 : f32 to vector<16x256xf32>
      %c0_11 = arith.constant 0 : index
      %c0_12 = arith.constant 0 : index
      %13 = vector.load %arg7[%c0_11, %c0_12] : memref<16x256xf32, #tpu.memory_space<vmem>>, vector<16x256xf32>
      tpu.vector_store %arg7[%c0_11, %c0_12], %12 {strides = array<i32>} : memref<16x256xf32, #tpu.memory_space<vmem>>, vector<16x256xf32>,
    } else {
    }
    %c0 = arith.constant 0 : index
    %c0_1 = arith.constant 0 : index
    %3 = vector.load %arg7[%c0, %c0_1] : memref<16x256xf32, #tpu.memory_space<vmem>>, vector<16x256xf32>
    %c0_2 = arith.constant 0 : index
    %c0_3 = arith.constant 0 : index
    %4 = vector.load %arg2[%c0_2, %c0_3] : memref<16x16xbf16, #tpu.memory_space<vmem>>, vector<16x16xbf16>
    %c0_4 = arith.constant 0 : index
    %c0_5 = arith.constant 0 : index
    %5 = vector.load %arg3[%c0_4, %c0_5] : memref<16x256xbf16, #tpu.memory_space<vmem>>, vector<16x256xbf16>
    %cst = arith.constant dense<0.000000e+00> : vector<16x256xf32>
    %6 = tpu.matmul %4, %5, %cst {dimension_numbers = #tpu.dot_dimension_numbers<[1], [0], [0], [1], [0, 0, 1, 1], [], []>} : vector<16x16xbf16>, vector<16x256xbf16>, vector<16x256xf32> -> vector<16x256xf32>
    %7 = arith.addf %3, %6 : vector<16x256xf32>
    %c0_6 = arith.constant 0 : index
    %c0_7 = arith.constant 0 : index
    %8 = vector.load %arg7[%c0_6, %c0_7] : memref<16x256xf32, #tpu.memory_space<vmem>>, vector<16x256xf32>
    tpu.vector_store %arg7[%c0_6, %c0_7], %7 {strides = array<i32>} : memref<16x256xf32, #tpu.memory_space<vmem>>, vector<16x256xf32>,
    %c0_i32_8 = arith.constant 0 : i32
    %9 = arith.cmpi eq, %arg1, %c0_i32_8 : i32
    %10 = arith.extui %9 : i1 to i32
    %c0_i32_9 = arith.constant 0 : i32
    %11 = arith.cmpi ne, %10, %c0_i32_9 : i32
    scf.if %11 {
      %c0_10 = arith.constant 0 : index
      %c0_11 = arith.constant 0 : index
      %12 = vector.load %arg7[%c0_10, %c0_11] : memref<16x256xf32, #tpu.memory_space<vmem>>, vector<16x256xf32>
      %13 = arith.truncf %12 : vector<16x256xf32> to vector<16x256xbf16>
      %c0_12 = arith.constant 0 : index
      %c0_13 = arith.constant 0 : index
      %14 = vector.load %arg4[%c0_12, %c0_13] : memref<256x128xbf16, #tpu.memory_space<vmem>>, vector<256x128xbf16>
      %cst_14 = arith.constant dense<0.000000e+00> : vector<16x128xf32>
      %15 = tpu.matmul %13, %14, %cst_14 {dimension_numbers = #tpu.dot_dimension_numbers<[1], [0], [0], [1], [0, 0, 1, 1], [], []>} : vector<16x256xbf16>, vector<256x128xbf16>, vector<16x128xf32> -> vector<16x128xf32>
      %c0_15 = arith.constant 0 : index
      %c0_16 = arith.constant 0 : index
      %16 = vector.load %arg5[%c0_15, %c0_16] : memref<1x128xf32, #tpu.memory_space<vmem>>, vector<1x128xf32>
      %17 = vector.broadcast %16 : vector<1x128xf32> to vector<16x128xf32>
      %18 = arith.addf %15, %17 : vector<16x128xf32>
      %19 = arith.truncf %18 : vector<16x128xf32> to vector<16x128xbf16>
      %c0_17 = arith.constant 0 : index
      %c0_18 = arith.constant 0 : index
      %20 = vector.load %arg6[%c0_17, %c0_18] : memref<16x128xbf16, #tpu.memory_space<vmem>>, vector<16x128xbf16>
      tpu.vector_store %arg6[%c0_17, %c0_18], %19 {strides = array<i32>} : memref<16x128xbf16, #tpu.memory_space<vmem>>, vector<16x128xbf16>,
    } else {
    }
    return
  }
  func.func @transform_0(%arg0: i32, %arg1: i32) -> (i32, i32) {
    %c0_i32 = arith.constant 0 : i32
    return %arg0, %arg1 : i32, i32
  }
  func.func @transform_1(%arg0: i32, %arg1: i32) -> (i32, i32) {
    %c0_i32 = arith.constant 0 : i32
    %c0_i32_0 = arith.constant 0 : i32
    return %arg1, %c0_i32 : i32, i32
  }
  func.func @transform_2(%arg0: i32, %arg1: i32) -> (i32, i32) {
    %c0_i32 = arith.constant 0 : i32
    %c0_i32_0 = arith.constant 0 : i32
    %c0_i32_1 = arith.constant 0 : i32
    return %c0_i32, %c0_i32_0 : i32, i32
  }
  func.func @transform_3(%arg0: i32, %arg1: i32) -> (i32, i32) {
    %c0_i32 = arith.constant 0 : i32
    %c0_i32_0 = arith.constant 0 : i32
    %c0_i32_1 = arith.constant 0 : i32
    return %c0_i32, %c0_i32_0 : i32, i32
  }
  func.func @transform_4(%arg0: i32, %arg1: i32) -> (i32, i32) {
    %c0_i32 = arith.constant 0 : i32
    %c0_i32_0 = arith.constant 0 : i32
    return %arg0, %c0_i32 : i32, i32
  }
}

module attributes {stable_mosaic.version = 11 : i64} {
  func.func @_sage_kernel(%arg0: i32, %arg1: i32, %arg2: memref<16x16xbf16, #tpu.memory_space<vmem>>, %arg3: memref<16x128xbf16, #tpu.memory_space<vmem>>, %arg4: memref<16x128xbf16, #tpu.memory_space<vmem>>, %arg5: memref<128x128xbf16, #tpu.memory_space<vmem>>, %arg6: memref<128x128xbf16, #tpu.memory_space<vmem>>, %arg7: memref<1x128xf32, #tpu.memory_space<vmem>>, %arg8: memref<16x128xf32, #tpu.memory_space<vmem>>, %arg9: memref<16x128xf32, #tpu.memory_space<vmem>>) attributes {dimension_semantics = [#tpu.dimension_semantics<parallel>, #tpu.dimension_semantics<arbitrary>], iteration_bounds = array<i64: 1, 1>, scalar_prefetch = 0 : i64, scratch_operands = 1 : i64, tpu.core_type = #tpu.core_type<tc>, window_params = [{transform_indices = @transform_0, window_bounds = array<i64: 16, 16>}, {transform_indices = @transform_1, window_bounds = array<i64: 16, 128>}, {transform_indices = @transform_2, window_bounds = array<i64: 16, 128>}, {pipeline_mode = #tpu.pipeline_mode<synchronous>, transform_indices = @transform_3, window_bounds = array<i64: 128, 128>}, {pipeline_mode = #tpu.pipeline_mode<synchronous>, transform_indices = @transform_4, window_bounds = array<i64: 128, 128>}, {pipeline_mode = #tpu.pipeline_mode<synchronous>, transform_indices = @transform_5, window_bounds = array<i64: 1, 128>}, {transform_indices = @transform_6, window_bounds = array<i64: 16, 128>}]} {
    %c0_i32 = arith.constant 0 : i32
    %0 = arith.cmpi eq, %arg1, %c0_i32 : i32
    %1 = arith.extui %0 : i1 to i32
    %c0_i32_0 = arith.constant 0 : i32
    %2 = arith.cmpi ne, %1, %c0_i32_0 : i32
    scf.if %2 {
      %cst_10 = arith.constant 0.000000e+00 : f32
      %12 = vector.broadcast %cst_10 : f32 to vector<16x128xf32>
      %c0_11 = arith.constant 0 : index
      %c0_12 = arith.constant 0 : index
      %13 = vector.load %arg9[%c0_11, %c0_12] : memref<16x128xf32, #tpu.memory_space<vmem>>, vector<16x128xf32>
      tpu.vector_store %arg9[%c0_11, %c0_12], %12 {strides = array<i32>} : memref<16x128xf32, #tpu.memory_space<vmem>>, vector<16x128xf32>,
    } else {
    }
    %c0 = arith.constant 0 : index
    %c0_1 = arith.constant 0 : index
    %3 = vector.load %arg9[%c0, %c0_1] : memref<16x128xf32, #tpu.memory_space<vmem>>, vector<16x128xf32>
    %c0_2 = arith.constant 0 : index
    %c0_3 = arith.constant 0 : index
    %4 = vector.load %arg2[%c0_2, %c0_3] : memref<16x16xbf16, #tpu.memory_space<vmem>>, vector<16x16xbf16>
    %c0_4 = arith.constant 0 : index
    %c0_5 = arith.constant 0 : index
    %5 = vector.load %arg3[%c0_4, %c0_5] : memref<16x128xbf16, #tpu.memory_space<vmem>>, vector<16x128xbf16>
    %cst = arith.constant dense<0.000000e+00> : vector<16x128xf32>
    %6 = tpu.matmul %4, %5, %cst {dimension_numbers = #tpu.dot_dimension_numbers<[1], [0], [0], [1], [0, 0, 1, 1], [], []>} : vector<16x16xbf16>, vector<16x128xbf16>, vector<16x128xf32> -> vector<16x128xf32>
    %7 = arith.addf %3, %6 : vector<16x128xf32>
    %c0_6 = arith.constant 0 : index
    %c0_7 = arith.constant 0 : index
    %8 = vector.load %arg9[%c0_6, %c0_7] : memref<16x128xf32, #tpu.memory_space<vmem>>, vector<16x128xf32>
    tpu.vector_store %arg9[%c0_6, %c0_7], %7 {strides = array<i32>} : memref<16x128xf32, #tpu.memory_space<vmem>>, vector<16x128xf32>,
    %c0_i32_8 = arith.constant 0 : i32
    %9 = arith.cmpi eq, %arg1, %c0_i32_8 : i32
    %10 = arith.extui %9 : i1 to i32
    %c0_i32_9 = arith.constant 0 : i32
    %11 = arith.cmpi ne, %10, %c0_i32_9 : i32
    scf.if %11 {
      %c0_10 = arith.constant 0 : index
      %c0_11 = arith.constant 0 : index
      %12 = vector.load %arg9[%c0_10, %c0_11] : memref<16x128xf32, #tpu.memory_space<vmem>>, vector<16x128xf32>
      %13 = arith.truncf %12 : vector<16x128xf32> to vector<16x128xbf16>
      %c0_12 = arith.constant 0 : index
      %c0_13 = arith.constant 0 : index
      %14 = vector.load %arg5[%c0_12, %c0_13] : memref<128x128xbf16, #tpu.memory_space<vmem>>, vector<128x128xbf16>
      %cst_14 = arith.constant dense<0.000000e+00> : vector<16x128xf32>
      %15 = tpu.matmul %13, %14, %cst_14 {dimension_numbers = #tpu.dot_dimension_numbers<[1], [0], [0], [1], [0, 0, 1, 1], [], []>} : vector<16x128xbf16>, vector<128x128xbf16>, vector<16x128xf32> -> vector<16x128xf32>
      %c0_15 = arith.constant 0 : index
      %c0_16 = arith.constant 0 : index
      %16 = vector.load %arg4[%c0_15, %c0_16] : memref<16x128xbf16, #tpu.memory_space<vmem>>, vector<16x128xbf16>
      %c0_17 = arith.constant 0 : index
      %c0_18 = arith.constant 0 : index
      %17 = vector.load %arg6[%c0_17, %c0_18] : memref<128x128xbf16, #tpu.memory_space<vmem>>, vector<128x128xbf16>
      %cst_19 = arith.constant dense<0.000000e+00> : vector<16x128xf32>
      %18 = tpu.matmul %16, %17, %cst_19 {dimension_numbers = #tpu.dot_dimension_numbers<[1], [0], [0], [1], [0, 0, 1, 1], [], []>} : vector<16x128xbf16>, vector<128x128xbf16>, vector<16x128xf32> -> vector<16x128xf32>
      %19 = arith.addf %15, %18 : vector<16x128xf32>
      %c0_20 = arith.constant 0 : index
      %c0_21 = arith.constant 0 : index
      %20 = vector.load %arg7[%c0_20, %c0_21] : memref<1x128xf32, #tpu.memory_space<vmem>>, vector<1x128xf32>
      %21 = vector.broadcast %20 : vector<1x128xf32> to vector<16x128xf32>
      %22 = arith.addf %19, %21 : vector<16x128xf32>
      %c0_22 = arith.constant 0 : index
      %c0_23 = arith.constant 0 : index
      %23 = vector.load %arg8[%c0_22, %c0_23] : memref<16x128xf32, #tpu.memory_space<vmem>>, vector<16x128xf32>
      tpu.vector_store %arg8[%c0_22, %c0_23], %22 {strides = array<i32>} : memref<16x128xf32, #tpu.memory_space<vmem>>, vector<16x128xf32>,
    } else {
    }
    return
  }
  func.func @transform_0(%arg0: i32, %arg1: i32) -> (i32, i32) {
    %c0_i32 = arith.constant 0 : i32
    return %arg0, %arg1 : i32, i32
  }
  func.func @transform_1(%arg0: i32, %arg1: i32) -> (i32, i32) {
    %c0_i32 = arith.constant 0 : i32
    %c0_i32_0 = arith.constant 0 : i32
    return %arg1, %c0_i32 : i32, i32
  }
  func.func @transform_2(%arg0: i32, %arg1: i32) -> (i32, i32) {
    %c0_i32 = arith.constant 0 : i32
    %c0_i32_0 = arith.constant 0 : i32
    return %arg0, %c0_i32 : i32, i32
  }
  func.func @transform_3(%arg0: i32, %arg1: i32) -> (i32, i32) {
    %c0_i32 = arith.constant 0 : i32
    %c0_i32_0 = arith.constant 0 : i32
    %c0_i32_1 = arith.constant 0 : i32
    return %c0_i32, %c0_i32_0 : i32, i32
  }
  func.func @transform_4(%arg0: i32, %arg1: i32) -> (i32, i32) {
    %c0_i32 = arith.constant 0 : i32
    %c0_i32_0 = arith.constant 0 : i32
    %c0_i32_1 = arith.constant 0 : i32
    return %c0_i32, %c0_i32_0 : i32, i32
  }
  func.func @transform_5(%arg0: i32, %arg1: i32) -> (i32, i32) {
    %c0_i32 = arith.constant 0 : i32
    %c0_i32_0 = arith.constant 0 : i32
    %c0_i32_1 = arith.constant 0 : i32
    return %c0_i32, %c0_i32_0 : i32, i32
  }
  func.func @transform_6(%arg0: i32, %arg1: i32) -> (i32, i32) {
    %c0_i32 = arith.constant 0 : i32
    %c0_i32_0 = arith.constant 0 : i32
    return %arg0, %c0_i32 : i32, i32
  }
}

module attributes {stable_mosaic.version = 11 : i64} {
  func.func @_gcn_kernel(%arg0: i32, %arg1: i32, %arg2: memref<16x16xbf16, #tpu.memory_space<vmem>>, %arg3: memref<16x256xbf16, #tpu.memory_space<vmem>>, %arg4: memref<256x128xbf16, #tpu.memory_space<vmem>>, %arg5: memref<1x128xf32, #tpu.memory_space<vmem>>, %arg6: memref<16x128xbf16, #tpu.memory_space<vmem>>, %arg7: memref<16x256xf32, #tpu.memory_space<vmem>>) attributes {dimension_semantics = [#tpu.dimension_semantics<parallel>, #tpu.dimension_semantics<arbitrary>], iteration_bounds = array<i64: 1, 1>, scalar_prefetch = 0 : i64, scratch_operands = 1 : i64, tpu.core_type = #tpu.core_type<tc>, window_params = [{transform_indices = @transform_0, window_bounds = array<i64: 16, 16>}, {transform_indices = @transform_1, window_bounds = array<i64: 16, 256>}, {pipeline_mode = #tpu.pipeline_mode<synchronous>, transform_indices = @transform_2, window_bounds = array<i64: 256, 128>}, {pipeline_mode = #tpu.pipeline_mode<synchronous>, transform_indices = @transform_3, window_bounds = array<i64: 1, 128>}, {transform_indices = @transform_4, window_bounds = array<i64: 16, 128>}]} {
    %c0_i32 = arith.constant 0 : i32
    %0 = arith.cmpi eq, %arg1, %c0_i32 : i32
    %1 = arith.extui %0 : i1 to i32
    %c0_i32_0 = arith.constant 0 : i32
    %2 = arith.cmpi ne, %1, %c0_i32_0 : i32
    scf.if %2 {
      %cst_10 = arith.constant 0.000000e+00 : f32
      %12 = vector.broadcast %cst_10 : f32 to vector<16x256xf32>
      %c0_11 = arith.constant 0 : index
      %c0_12 = arith.constant 0 : index
      %13 = vector.load %arg7[%c0_11, %c0_12] : memref<16x256xf32, #tpu.memory_space<vmem>>, vector<16x256xf32>
      tpu.vector_store %arg7[%c0_11, %c0_12], %12 {strides = array<i32>} : memref<16x256xf32, #tpu.memory_space<vmem>>, vector<16x256xf32>,
    } else {
    }
    %c0 = arith.constant 0 : index
    %c0_1 = arith.constant 0 : index
    %3 = vector.load %arg7[%c0, %c0_1] : memref<16x256xf32, #tpu.memory_space<vmem>>, vector<16x256xf32>
    %c0_2 = arith.constant 0 : index
    %c0_3 = arith.constant 0 : index
    %4 = vector.load %arg2[%c0_2, %c0_3] : memref<16x16xbf16, #tpu.memory_space<vmem>>, vector<16x16xbf16>
    %c0_4 = arith.constant 0 : index
    %c0_5 = arith.constant 0 : index
    %5 = vector.load %arg3[%c0_4, %c0_5] : memref<16x256xbf16, #tpu.memory_space<vmem>>, vector<16x256xbf16>
    %cst = arith.constant dense<0.000000e+00> : vector<16x256xf32>
    %6 = tpu.matmul %4, %5, %cst {dimension_numbers = #tpu.dot_dimension_numbers<[1], [0], [0], [1], [0, 0, 1, 1], [], []>} : vector<16x16xbf16>, vector<16x256xbf16>, vector<16x256xf32> -> vector<16x256xf32>
    %7 = arith.addf %3, %6 : vector<16x256xf32>
    %c0_6 = arith.constant 0 : index
    %c0_7 = arith.constant 0 : index
    %8 = vector.load %arg7[%c0_6, %c0_7] : memref<16x256xf32, #tpu.memory_space<vmem>>, vector<16x256xf32>
    tpu.vector_store %arg7[%c0_6, %c0_7], %7 {strides = array<i32>} : memref<16x256xf32, #tpu.memory_space<vmem>>, vector<16x256xf32>,
    %c0_i32_8 = arith.constant 0 : i32
    %9 = arith.cmpi eq, %arg1, %c0_i32_8 : i32
    %10 = arith.extui %9 : i1 to i32
    %c0_i32_9 = arith.constant 0 : i32
    %11 = arith.cmpi ne, %10, %c0_i32_9 : i32
    scf.if %11 {
      %c0_10 = arith.constant 0 : index
      %c0_11 = arith.constant 0 : index
      %12 = vector.load %arg7[%c0_10, %c0_11] : memref<16x256xf32, #tpu.memory_space<vmem>>, vector<16x256xf32>
      %13 = arith.truncf %12 : vector<16x256xf32> to vector<16x256xbf16>
      %c0_12 = arith.constant 0 : index
      %c0_13 = arith.constant 0 : index
      %14 = vector.load %arg4[%c0_12, %c0_13] : memref<256x128xbf16, #tpu.memory_space<vmem>>, vector<256x128xbf16>
      %cst_14 = arith.constant dense<0.000000e+00> : vector<16x128xf32>
      %15 = tpu.matmul %13, %14, %cst_14 {dimension_numbers = #tpu.dot_dimension_numbers<[1], [0], [0], [1], [0, 0, 1, 1], [], []>} : vector<16x256xbf16>, vector<256x128xbf16>, vector<16x128xf32> -> vector<16x128xf32>
      %c0_15 = arith.constant 0 : index
      %c0_16 = arith.constant 0 : index
      %16 = vector.load %arg5[%c0_15, %c0_16] : memref<1x128xf32, #tpu.memory_space<vmem>>, vector<1x128xf32>
      %17 = vector.broadcast %16 : vector<1x128xf32> to vector<16x128xf32>
      %18 = arith.addf %15, %17 : vector<16x128xf32>
      %cst_17 = arith.constant 0.000000e+00 : f32
      %19 = vector.broadcast %cst_17 : f32 to vector<16x128xf32>
      %20 = arith.maximumf %18, %19 : vector<16x128xf32>
      %21 = arith.truncf %20 : vector<16x128xf32> to vector<16x128xbf16>
      %c0_18 = arith.constant 0 : index
      %c0_19 = arith.constant 0 : index
      %22 = vector.load %arg6[%c0_18, %c0_19] : memref<16x128xbf16, #tpu.memory_space<vmem>>, vector<16x128xbf16>
      tpu.vector_store %arg6[%c0_18, %c0_19], %21 {strides = array<i32>} : memref<16x128xbf16, #tpu.memory_space<vmem>>, vector<16x128xbf16>,
    } else {
    }
    return
  }
  func.func @transform_0(%arg0: i32, %arg1: i32) -> (i32, i32) {
    %c0_i32 = arith.constant 0 : i32
    return %arg0, %arg1 : i32, i32
  }
  func.func @transform_1(%arg0: i32, %arg1: i32) -> (i32, i32) {
    %c0_i32 = arith.constant 0 : i32
    %c0_i32_0 = arith.constant 0 : i32
    return %arg1, %c0_i32 : i32, i32
  }
  func.func @transform_2(%arg0: i32, %arg1: i32) -> (i32, i32) {
    %c0_i32 = arith.constant 0 : i32
    %c0_i32_0 = arith.constant 0 : i32
    %c0_i32_1 = arith.constant 0 : i32
    return %c0_i32, %c0_i32_0 : i32, i32
  }
  func.func @transform_3(%arg0: i32, %arg1: i32) -> (i32, i32) {
    %c0_i32 = arith.constant 0 : i32
    %c0_i32_0 = arith.constant 0 : i32
    %c0_i32_1 = arith.constant 0 : i32
    return %c0_i32, %c0_i32_0 : i32, i32
  }
  func.func @transform_4(%arg0: i32, %arg1: i32) -> (i32, i32) {
    %c0_i32 = arith.constant 0 : i32
    %c0_i32_0 = arith.constant 0 : i32
    return %arg0, %c0_i32 : i32, i32
  }
}

module attributes {stable_mosaic.version = 11 : i64} {
  func.func @_sage_kernel(%arg0: i32, %arg1: i32, %arg2: memref<16x16xbf16, #tpu.memory_space<vmem>>, %arg3: memref<16x128xbf16, #tpu.memory_space<vmem>>, %arg4: memref<16x128xbf16, #tpu.memory_space<vmem>>, %arg5: memref<128x128xbf16, #tpu.memory_space<vmem>>, %arg6: memref<128x128xbf16, #tpu.memory_space<vmem>>, %arg7: memref<1x128xf32, #tpu.memory_space<vmem>>, %arg8: memref<16x128xf32, #tpu.memory_space<vmem>>, %arg9: memref<16x128xf32, #tpu.memory_space<vmem>>) attributes {dimension_semantics = [#tpu.dimension_semantics<parallel>, #tpu.dimension_semantics<arbitrary>], iteration_bounds = array<i64: 1, 1>, scalar_prefetch = 0 : i64, scratch_operands = 1 : i64, tpu.core_type = #tpu.core_type<tc>, window_params = [{transform_indices = @transform_0, window_bounds = array<i64: 16, 16>}, {transform_indices = @transform_1, window_bounds = array<i64: 16, 128>}, {transform_indices = @transform_2, window_bounds = array<i64: 16, 128>}, {pipeline_mode = #tpu.pipeline_mode<synchronous>, transform_indices = @transform_3, window_bounds = array<i64: 128, 128>}, {pipeline_mode = #tpu.pipeline_mode<synchronous>, transform_indices = @transform_4, window_bounds = array<i64: 128, 128>}, {pipeline_mode = #tpu.pipeline_mode<synchronous>, transform_indices = @transform_5, window_bounds = array<i64: 1, 128>}, {transform_indices = @transform_6, window_bounds = array<i64: 16, 128>}]} {
    %c0_i32 = arith.constant 0 : i32
    %0 = arith.cmpi eq, %arg1, %c0_i32 : i32
    %1 = arith.extui %0 : i1 to i32
    %c0_i32_0 = arith.constant 0 : i32
    %2 = arith.cmpi ne, %1, %c0_i32_0 : i32
    scf.if %2 {
      %cst_10 = arith.constant 0.000000e+00 : f32
      %12 = vector.broadcast %cst_10 : f32 to vector<16x128xf32>
      %c0_11 = arith.constant 0 : index
      %c0_12 = arith.constant 0 : index
      %13 = vector.load %arg9[%c0_11, %c0_12] : memref<16x128xf32, #tpu.memory_space<vmem>>, vector<16x128xf32>
      tpu.vector_store %arg9[%c0_11, %c0_12], %12 {strides = array<i32>} : memref<16x128xf32, #tpu.memory_space<vmem>>, vector<16x128xf32>,
    } else {
    }
    %c0 = arith.constant 0 : index
    %c0_1 = arith.constant 0 : index
    %3 = vector.load %arg9[%c0, %c0_1] : memref<16x128xf32, #tpu.memory_space<vmem>>, vector<16x128xf32>
    %c0_2 = arith.constant 0 : index
    %c0_3 = arith.constant 0 : index
    %4 = vector.load %arg2[%c0_2, %c0_3] : memref<16x16xbf16, #tpu.memory_space<vmem>>, vector<16x16xbf16>
    %c0_4 = arith.constant 0 : index
    %c0_5 = arith.constant 0 : index
    %5 = vector.load %arg3[%c0_4, %c0_5] : memref<16x128xbf16, #tpu.memory_space<vmem>>, vector<16x128xbf16>
    %cst = arith.constant dense<0.000000e+00> : vector<16x128xf32>
    %6 = tpu.matmul %4, %5, %cst {dimension_numbers = #tpu.dot_dimension_numbers<[1], [0], [0], [1], [0, 0, 1, 1], [], []>} : vector<16x16xbf16>, vector<16x128xbf16>, vector<16x128xf32> -> vector<16x128xf32>
    %7 = arith.addf %3, %6 : vector<16x128xf32>
    %c0_6 = arith.constant 0 : index
    %c0_7 = arith.constant 0 : index
    %8 = vector.load %arg9[%c0_6, %c0_7] : memref<16x128xf32, #tpu.memory_space<vmem>>, vector<16x128xf32>
    tpu.vector_store %arg9[%c0_6, %c0_7], %7 {strides = array<i32>} : memref<16x128xf32, #tpu.memory_space<vmem>>, vector<16x128xf32>,
    %c0_i32_8 = arith.constant 0 : i32
    %9 = arith.cmpi eq, %arg1, %c0_i32_8 : i32
    %10 = arith.extui %9 : i1 to i32
    %c0_i32_9 = arith.constant 0 : i32
    %11 = arith.cmpi ne, %10, %c0_i32_9 : i32
    scf.if %11 {
      %c0_10 = arith.constant 0 : index
      %c0_11 = arith.constant 0 : index
      %12 = vector.load %arg9[%c0_10, %c0_11] : memref<16x128xf32, #tpu.memory_space<vmem>>, vector<16x128xf32>
      %13 = arith.truncf %12 : vector<16x128xf32> to vector<16x128xbf16>
      %c0_12 = arith.constant 0 : index
      %c0_13 = arith.constant 0 : index
      %14 = vector.load %arg5[%c0_12, %c0_13] : memref<128x128xbf16, #tpu.memory_space<vmem>>, vector<128x128xbf16>
      %cst_14 = arith.constant dense<0.000000e+00> : vector<16x128xf32>
      %15 = tpu.matmul %13, %14, %cst_14 {dimension_numbers = #tpu.dot_dimension_numbers<[1], [0], [0], [1], [0, 0, 1, 1], [], []>} : vector<16x128xbf16>, vector<128x128xbf16>, vector<16x128xf32> -> vector<16x128xf32>
      %c0_15 = arith.constant 0 : index
      %c0_16 = arith.constant 0 : index
      %16 = vector.load %arg4[%c0_15, %c0_16] : memref<16x128xbf16, #tpu.memory_space<vmem>>, vector<16x128xbf16>
      %c0_17 = arith.constant 0 : index
      %c0_18 = arith.constant 0 : index
      %17 = vector.load %arg6[%c0_17, %c0_18] : memref<128x128xbf16, #tpu.memory_space<vmem>>, vector<128x128xbf16>
      %cst_19 = arith.constant dense<0.000000e+00> : vector<16x128xf32>
      %18 = tpu.matmul %16, %17, %cst_19 {dimension_numbers = #tpu.dot_dimension_numbers<[1], [0], [0], [1], [0, 0, 1, 1], [], []>} : vector<16x128xbf16>, vector<128x128xbf16>, vector<16x128xf32> -> vector<16x128xf32>
      %19 = arith.addf %15, %18 : vector<16x128xf32>
      %c0_20 = arith.constant 0 : index
      %c0_21 = arith.constant 0 : index
      %20 = vector.load %arg7[%c0_20, %c0_21] : memref<1x128xf32, #tpu.memory_space<vmem>>, vector<1x128xf32>
      %21 = vector.broadcast %20 : vector<1x128xf32> to vector<16x128xf32>
      %22 = arith.addf %19, %21 : vector<16x128xf32>
      %cst_22 = arith.constant 0.000000e+00 : f32
      %23 = vector.broadcast %cst_22 : f32 to vector<16x128xf32>
      %24 = arith.maximumf %22, %23 : vector<16x128xf32>
      %c0_23 = arith.constant 0 : index
      %c0_24 = arith.constant 0 : index
      %25 = vector.load %arg8[%c0_23, %c0_24] : memref<16x128xf32, #tpu.memory_space<vmem>>, vector<16x128xf32>
      tpu.vector_store %arg8[%c0_23, %c0_24], %24 {strides = array<i32>} : memref<16x128xf32, #tpu.memory_space<vmem>>, vector<16x128xf32>,
    } else {
    }
    return
  }
  func.func @transform_0(%arg0: i32, %arg1: i32) -> (i32, i32) {
    %c0_i32 = arith.constant 0 : i32
    return %arg0, %arg1 : i32, i32
  }
  func.func @transform_1(%arg0: i32, %arg1: i32) -> (i32, i32) {
    %c0_i32 = arith.constant 0 : i32
    %c0_i32_0 = arith.constant 0 : i32
    return %arg1, %c0_i32 : i32, i32
  }
  func.func @transform_2(%arg0: i32, %arg1: i32) -> (i32, i32) {
    %c0_i32 = arith.constant 0 : i32
    %c0_i32_0 = arith.constant 0 : i32
    return %arg0, %c0_i32 : i32, i32
  }
  func.func @transform_3(%arg0: i32, %arg1: i32) -> (i32, i32) {
    %c0_i32 = arith.constant 0 : i32
    %c0_i32_0 = arith.constant 0 : i32
    %c0_i32_1 = arith.constant 0 : i32
    return %c0_i32, %c0_i32_0 : i32, i32
  }
  func.func @transform_4(%arg0: i32, %arg1: i32) -> (i32, i32) {
    %c0_i32 = arith.constant 0 : i32
    %c0_i32_0 = arith.constant 0 : i32
    %c0_i32_1 = arith.constant 0 : i32
    return %c0_i32, %c0_i32_0 : i32, i32
  }
  func.func @transform_5(%arg0: i32, %arg1: i32) -> (i32, i32) {
    %c0_i32 = arith.constant 0 : i32
    %c0_i32_0 = arith.constant 0 : i32
    %c0_i32_1 = arith.constant 0 : i32
    return %c0_i32, %c0_i32_0 : i32, i32
  }
  func.func @transform_6(%arg0: i32, %arg1: i32) -> (i32, i32) {
    %c0_i32 = arith.constant 0 : i32
    %c0_i32_0 = arith.constant 0 : i32
    return %arg0, %c0_i32 : i32, i32
  }
}

module attributes {stable_mosaic.version = 11 : i64} {
  func.func @_linear_kernel(%arg0: i32, %arg1: memref<16x128xbf16, #tpu.memory_space<vmem>>, %arg2: memref<128x256xbf16, #tpu.memory_space<vmem>>, %arg3: memref<1x256xf32, #tpu.memory_space<vmem>>, %arg4: memref<16x256xbf16, #tpu.memory_space<vmem>>) attributes {dimension_semantics = [#tpu.dimension_semantics<parallel>], iteration_bounds = array<i64: 1>, scalar_prefetch = 0 : i64, scratch_operands = 0 : i64, tpu.core_type = #tpu.core_type<tc>, window_params = [{transform_indices = @transform_0, window_bounds = array<i64: 16, 128>}, {pipeline_mode = #tpu.pipeline_mode<synchronous>, transform_indices = @transform_1, window_bounds = array<i64: 128, 256>}, {pipeline_mode = #tpu.pipeline_mode<synchronous>, transform_indices = @transform_2, window_bounds = array<i64: 1, 256>}, {transform_indices = @transform_3, window_bounds = array<i64: 16, 256>}]} {
    %c0 = arith.constant 0 : index
    %c0_0 = arith.constant 0 : index
    %0 = vector.load %arg1[%c0, %c0_0] : memref<16x128xbf16, #tpu.memory_space<vmem>>, vector<16x128xbf16>
    %c0_1 = arith.constant 0 : index
    %c0_2 = arith.constant 0 : index
    %1 = vector.load %arg2[%c0_1, %c0_2] : memref<128x256xbf16, #tpu.memory_space<vmem>>, vector<128x256xbf16>
    %cst = arith.constant dense<0.000000e+00> : vector<16x256xf32>
    %2 = tpu.matmul %0, %1, %cst {dimension_numbers = #tpu.dot_dimension_numbers<[1], [0], [0], [1], [0, 0, 1, 1], [], []>} : vector<16x128xbf16>, vector<128x256xbf16>, vector<16x256xf32> -> vector<16x256xf32>
    %c0_3 = arith.constant 0 : index
    %c0_4 = arith.constant 0 : index
    %3 = vector.load %arg3[%c0_3, %c0_4] : memref<1x256xf32, #tpu.memory_space<vmem>>, vector<1x256xf32>
    %4 = vector.broadcast %3 : vector<1x256xf32> to vector<16x256xf32>
    %5 = arith.addf %2, %4 : vector<16x256xf32>
    %cst_5 = arith.constant 0.000000e+00 : f32
    %6 = vector.broadcast %cst_5 : f32 to vector<16x256xf32>
    %7 = arith.maximumf %5, %6 : vector<16x256xf32>
    %8 = arith.truncf %7 : vector<16x256xf32> to vector<16x256xbf16>
    %c0_6 = arith.constant 0 : index
    %c0_7 = arith.constant 0 : index
    %9 = vector.load %arg4[%c0_6, %c0_7] : memref<16x256xbf16, #tpu.memory_space<vmem>>, vector<16x256xbf16>
    tpu.vector_store %arg4[%c0_6, %c0_7], %8 {strides = array<i32>} : memref<16x256xbf16, #tpu.memory_space<vmem>>, vector<16x256xbf16>,
    return
  }
  func.func @transform_0(%arg0: i32) -> (i32, i32) {
    %c0_i32 = arith.constant 0 : i32
    %c0_i32_0 = arith.constant 0 : i32
    return %arg0, %c0_i32 : i32, i32
  }
  func.func @transform_1(%arg0: i32) -> (i32, i32) {
    %c0_i32 = arith.constant 0 : i32
    %c0_i32_0 = arith.constant 0 : i32
    %c0_i32_1 = arith.constant 0 : i32
    return %c0_i32, %c0_i32_0 : i32, i32
  }
  func.func @transform_2(%arg0: i32) -> (i32, i32) {
    %c0_i32 = arith.constant 0 : i32
    %c0_i32_0 = arith.constant 0 : i32
    %c0_i32_1 = arith.constant 0 : i32
    return %c0_i32, %c0_i32_0 : i32, i32
  }
  func.func @transform_3(%arg0: i32) -> (i32, i32) {
    %c0_i32 = arith.constant 0 : i32
    %c0_i32_0 = arith.constant 0 : i32
    return %arg0, %c0_i32 : i32, i32
  }
}

module attributes {stable_mosaic.version = 11 : i64} {
  func.func @_linear_kernel(%arg0: i32, %arg1: memref<16x256xbf16, #tpu.memory_space<vmem>>, %arg2: memref<256x128xbf16, #tpu.memory_space<vmem>>, %arg3: memref<1x128xf32, #tpu.memory_space<vmem>>, %arg4: memref<16x128xbf16, #tpu.memory_space<vmem>>) attributes {dimension_semantics = [#tpu.dimension_semantics<parallel>], iteration_bounds = array<i64: 1>, scalar_prefetch = 0 : i64, scratch_operands = 0 : i64, tpu.core_type = #tpu.core_type<tc>, window_params = [{transform_indices = @transform_0, window_bounds = array<i64: 16, 256>}, {pipeline_mode = #tpu.pipeline_mode<synchronous>, transform_indices = @transform_1, window_bounds = array<i64: 256, 128>}, {pipeline_mode = #tpu.pipeline_mode<synchronous>, transform_indices = @transform_2, window_bounds = array<i64: 1, 128>}, {transform_indices = @transform_3, window_bounds = array<i64: 16, 128>}]} {
    %c0 = arith.constant 0 : index
    %c0_0 = arith.constant 0 : index
    %0 = vector.load %arg1[%c0, %c0_0] : memref<16x256xbf16, #tpu.memory_space<vmem>>, vector<16x256xbf16>
    %c0_1 = arith.constant 0 : index
    %c0_2 = arith.constant 0 : index
    %1 = vector.load %arg2[%c0_1, %c0_2] : memref<256x128xbf16, #tpu.memory_space<vmem>>, vector<256x128xbf16>
    %cst = arith.constant dense<0.000000e+00> : vector<16x128xf32>
    %2 = tpu.matmul %0, %1, %cst {dimension_numbers = #tpu.dot_dimension_numbers<[1], [0], [0], [1], [0, 0, 1, 1], [], []>} : vector<16x256xbf16>, vector<256x128xbf16>, vector<16x128xf32> -> vector<16x128xf32>
    %c0_3 = arith.constant 0 : index
    %c0_4 = arith.constant 0 : index
    %3 = vector.load %arg3[%c0_3, %c0_4] : memref<1x128xf32, #tpu.memory_space<vmem>>, vector<1x128xf32>
    %4 = vector.broadcast %3 : vector<1x128xf32> to vector<16x128xf32>
    %5 = arith.addf %2, %4 : vector<16x128xf32>
    %cst_5 = arith.constant 0.000000e+00 : f32
    %6 = vector.broadcast %cst_5 : f32 to vector<16x128xf32>
    %7 = arith.maximumf %5, %6 : vector<16x128xf32>
    %8 = arith.truncf %7 : vector<16x128xf32> to vector<16x128xbf16>
    %c0_6 = arith.constant 0 : index
    %c0_7 = arith.constant 0 : index
    %9 = vector.load %arg4[%c0_6, %c0_7] : memref<16x128xbf16, #tpu.memory_space<vmem>>, vector<16x128xbf16>
    tpu.vector_store %arg4[%c0_6, %c0_7], %8 {strides = array<i32>} : memref<16x128xbf16, #tpu.memory_space<vmem>>, vector<16x128xbf16>,
    return
  }
  func.func @transform_0(%arg0: i32) -> (i32, i32) {
    %c0_i32 = arith.constant 0 : i32
    %c0_i32_0 = arith.constant 0 : i32
    return %arg0, %c0_i32 : i32, i32
  }
  func.func @transform_1(%arg0: i32) -> (i32, i32) {
    %c0_i32 = arith.constant 0 : i32
    %c0_i32_0 = arith.constant 0 : i32
    %c0_i32_1 = arith.constant 0 : i32
    return %c0_i32, %c0_i32_0 : i32, i32
  }
  func.func @transform_2(%arg0: i32) -> (i32, i32) {
    %c0_i32 = arith.constant 0 : i32
    %c0_i32_0 = arith.constant 0 : i32
    %c0_i32_1 = arith.constant 0 : i32
    return %c0_i32, %c0_i32_0 : i32, i32
  }
  func.func @transform_3(%arg0: i32) -> (i32, i32) {
    %c0_i32 = arith.constant 0 : i32
    %c0_i32_0 = arith.constant 0 : i32
    return %arg0, %c0_i32 : i32, i32
  }
}

module attributes {stable_mosaic.version = 11 : i64} {
  func.func @_linear_kernel(%arg0: i32, %arg1: memref<16x128xbf16, #tpu.memory_space<vmem>>, %arg2: memref<128x128xbf16, #tpu.memory_space<vmem>>, %arg3: memref<1x128xf32, #tpu.memory_space<vmem>>, %arg4: memref<16x128xbf16, #tpu.memory_space<vmem>>) attributes {dimension_semantics = [#tpu.dimension_semantics<parallel>], iteration_bounds = array<i64: 1>, scalar_prefetch = 0 : i64, scratch_operands = 0 : i64, tpu.core_type = #tpu.core_type<tc>, window_params = [{transform_indices = @transform_0, window_bounds = array<i64: 16, 128>}, {pipeline_mode = #tpu.pipeline_mode<synchronous>, transform_indices = @transform_1, window_bounds = array<i64: 128, 128>}, {pipeline_mode = #tpu.pipeline_mode<synchronous>, transform_indices = @transform_2, window_bounds = array<i64: 1, 128>}, {transform_indices = @transform_3, window_bounds = array<i64: 16, 128>}]} {
    %c0 = arith.constant 0 : index
    %c0_0 = arith.constant 0 : index
    %0 = vector.load %arg1[%c0, %c0_0] : memref<16x128xbf16, #tpu.memory_space<vmem>>, vector<16x128xbf16>
    %c0_1 = arith.constant 0 : index
    %c0_2 = arith.constant 0 : index
    %1 = vector.load %arg2[%c0_1, %c0_2] : memref<128x128xbf16, #tpu.memory_space<vmem>>, vector<128x128xbf16>
    %cst = arith.constant dense<0.000000e+00> : vector<16x128xf32>
    %2 = tpu.matmul %0, %1, %cst {dimension_numbers = #tpu.dot_dimension_numbers<[1], [0], [0], [1], [0, 0, 1, 1], [], []>} : vector<16x128xbf16>, vector<128x128xbf16>, vector<16x128xf32> -> vector<16x128xf32>
    %c0_3 = arith.constant 0 : index
    %c0_4 = arith.constant 0 : index
    %3 = vector.load %arg3[%c0_3, %c0_4] : memref<1x128xf32, #tpu.memory_space<vmem>>, vector<1x128xf32>
    %4 = vector.broadcast %3 : vector<1x128xf32> to vector<16x128xf32>
    %5 = arith.addf %2, %4 : vector<16x128xf32>
    %cst_5 = arith.constant 0.000000e+00 : f32
    %6 = vector.broadcast %cst_5 : f32 to vector<16x128xf32>
    %7 = arith.maximumf %5, %6 : vector<16x128xf32>
    %8 = arith.truncf %7 : vector<16x128xf32> to vector<16x128xbf16>
    %c0_6 = arith.constant 0 : index
    %c0_7 = arith.constant 0 : index
    %9 = vector.load %arg4[%c0_6, %c0_7] : memref<16x128xbf16, #tpu.memory_space<vmem>>, vector<16x128xbf16>
    tpu.vector_store %arg4[%c0_6, %c0_7], %8 {strides = array<i32>} : memref<16x128xbf16, #tpu.memory_space<vmem>>, vector<16x128xbf16>,
    return
  }
  func.func @transform_0(%arg0: i32) -> (i32, i32) {
    %c0_i32 = arith.constant 0 : i32
    %c0_i32_0 = arith.constant 0 : i32
    return %arg0, %c0_i32 : i32, i32
  }
  func.func @transform_1(%arg0: i32) -> (i32, i32) {
    %c0_i32 = arith.constant 0 : i32
    %c0_i32_0 = arith.constant 0 : i32
    %c0_i32_1 = arith.constant 0 : i32
    return %c0_i32, %c0_i32_0 : i32, i32
  }
  func.func @transform_2(%arg0: i32) -> (i32, i32) {
    %c0_i32 = arith.constant 0 : i32
    %c0_i32_0 = arith.constant 0 : i32
    %c0_i32_1 = arith.constant 0 : i32
    return %c0_i32, %c0_i32_0 : i32, i32
  }
  func.func @transform_3(%arg0: i32) -> (i32, i32) {
    %c0_i32 = arith.constant 0 : i32
    %c0_i32_0 = arith.constant 0 : i32
    return %arg0, %c0_i32 : i32, i32
  }
}

module attributes {stable_mosaic.version = 11 : i64} {
  func.func @_linear_kernel(%arg0: i32, %arg1: memref<16x128xbf16, #tpu.memory_space<vmem>>, %arg2: memref<128x128xbf16, #tpu.memory_space<vmem>>, %arg3: memref<1x128xf32, #tpu.memory_space<vmem>>, %arg4: memref<16x128xf32, #tpu.memory_space<vmem>>) attributes {dimension_semantics = [#tpu.dimension_semantics<parallel>], iteration_bounds = array<i64: 1>, scalar_prefetch = 0 : i64, scratch_operands = 0 : i64, tpu.core_type = #tpu.core_type<tc>, window_params = [{transform_indices = @transform_0, window_bounds = array<i64: 16, 128>}, {pipeline_mode = #tpu.pipeline_mode<synchronous>, transform_indices = @transform_1, window_bounds = array<i64: 128, 128>}, {pipeline_mode = #tpu.pipeline_mode<synchronous>, transform_indices = @transform_2, window_bounds = array<i64: 1, 128>}, {transform_indices = @transform_3, window_bounds = array<i64: 16, 128>}]} {
    %c0 = arith.constant 0 : index
    %c0_0 = arith.constant 0 : index
    %0 = vector.load %arg1[%c0, %c0_0] : memref<16x128xbf16, #tpu.memory_space<vmem>>, vector<16x128xbf16>
    %c0_1 = arith.constant 0 : index
    %c0_2 = arith.constant 0 : index
    %1 = vector.load %arg2[%c0_1, %c0_2] : memref<128x128xbf16, #tpu.memory_space<vmem>>, vector<128x128xbf16>
    %cst = arith.constant dense<0.000000e+00> : vector<16x128xf32>
    %2 = tpu.matmul %0, %1, %cst {dimension_numbers = #tpu.dot_dimension_numbers<[1], [0], [0], [1], [0, 0, 1, 1], [], []>} : vector<16x128xbf16>, vector<128x128xbf16>, vector<16x128xf32> -> vector<16x128xf32>
    %c0_3 = arith.constant 0 : index
    %c0_4 = arith.constant 0 : index
    %3 = vector.load %arg3[%c0_3, %c0_4] : memref<1x128xf32, #tpu.memory_space<vmem>>, vector<1x128xf32>
    %4 = vector.broadcast %3 : vector<1x128xf32> to vector<16x128xf32>
    %5 = arith.addf %2, %4 : vector<16x128xf32>
    %c0_5 = arith.constant 0 : index
    %c0_6 = arith.constant 0 : index
    %6 = vector.load %arg4[%c0_5, %c0_6] : memref<16x128xf32, #tpu.memory_space<vmem>>, vector<16x128xf32>
    tpu.vector_store %arg4[%c0_5, %c0_6], %5 {strides = array<i32>} : memref<16x128xf32, #tpu.memory_space<vmem>>, vector<16x128xf32>,
    return
  }
  func.func @transform_0(%arg0: i32) -> (i32, i32) {
    %c0_i32 = arith.constant 0 : i32
    %c0_i32_0 = arith.constant 0 : i32
    return %arg0, %c0_i32 : i32, i32
  }
  func.func @transform_1(%arg0: i32) -> (i32, i32) {
    %c0_i32 = arith.constant 0 : i32
    %c0_i32_0 = arith.constant 0 : i32
    %c0_i32_1 = arith.constant 0 : i32
    return %c0_i32, %c0_i32_0 : i32, i32
  }
  func.func @transform_2(%arg0: i32) -> (i32, i32) {
    %c0_i32 = arith.constant 0 : i32
    %c0_i32_0 = arith.constant 0 : i32
    %c0_i32_1 = arith.constant 0 : i32
    return %c0_i32, %c0_i32_0 : i32, i32
  }
  func.func @transform_3(%arg0: i32) -> (i32, i32) {
    %c0_i32 = arith.constant 0 : i32
    %c0_i32_0 = arith.constant 0 : i32
    return %arg0, %c0_i32 : i32, i32
  }
}

module attributes {stable_mosaic.version = 11 : i64} {
  func.func @_linear_kernel(%arg0: i32, %arg1: memref<16x12xbf16, #tpu.memory_space<vmem>>, %arg2: memref<12x128xf32, #tpu.memory_space<vmem>>, %arg3: memref<1x128xf32, #tpu.memory_space<vmem>>, %arg4: memref<16x128xf32, #tpu.memory_space<vmem>>) attributes {dimension_semantics = [#tpu.dimension_semantics<parallel>], iteration_bounds = array<i64: 1>, scalar_prefetch = 0 : i64, scratch_operands = 0 : i64, tpu.core_type = #tpu.core_type<tc>, window_params = [{transform_indices = @transform_0, window_bounds = array<i64: 16, 12>}, {pipeline_mode = #tpu.pipeline_mode<synchronous>, transform_indices = @transform_1, window_bounds = array<i64: 12, 128>}, {pipeline_mode = #tpu.pipeline_mode<synchronous>, transform_indices = @transform_2, window_bounds = array<i64: 1, 128>}, {transform_indices = @transform_3, window_bounds = array<i64: 16, 128>}]} {
    %c0 = arith.constant 0 : index
    %c0_0 = arith.constant 0 : index
    %0 = vector.load %arg1[%c0, %c0_0] : memref<16x12xbf16, #tpu.memory_space<vmem>>, vector<16x12xbf16>
    %c0_1 = arith.constant 0 : index
    %c0_2 = arith.constant 0 : index
    %1 = vector.load %arg2[%c0_1, %c0_2] : memref<12x128xf32, #tpu.memory_space<vmem>>, vector<12x128xf32>
    %cst = arith.constant dense<0.000000e+00> : vector<16x128xf32>
    %2 = tpu.matmul %0, %1, %cst {dimension_numbers = #tpu.dot_dimension_numbers<[1], [0], [0], [1], [0, 0, 1, 1], [], []>} : vector<16x12xbf16>, vector<12x128xf32>, vector<16x128xf32> -> vector<16x128xf32>
    %c0_3 = arith.constant 0 : index
    %c0_4 = arith.constant 0 : index
    %3 = vector.load %arg3[%c0_3, %c0_4] : memref<1x128xf32, #tpu.memory_space<vmem>>, vector<1x128xf32>
    %4 = vector.broadcast %3 : vector<1x128xf32> to vector<16x128xf32>
    %5 = arith.addf %2, %4 : vector<16x128xf32>
    %c0_5 = arith.constant 0 : index
    %c0_6 = arith.constant 0 : index
    %6 = vector.load %arg4[%c0_5, %c0_6] : memref<16x128xf32, #tpu.memory_space<vmem>>, vector<16x128xf32>
    tpu.vector_store %arg4[%c0_5, %c0_6], %5 {strides = array<i32>} : memref<16x128xf32, #tpu.memory_space<vmem>>, vector<16x128xf32>,
    return
  }
  func.func @transform_0(%arg0: i32) -> (i32, i32) {
    %c0_i32 = arith.constant 0 : i32
    %c0_i32_0 = arith.constant 0 : i32
    return %arg0, %c0_i32 : i32, i32
  }
  func.func @transform_1(%arg0: i32) -> (i32, i32) {
    %c0_i32 = arith.constant 0 : i32
    %c0_i32_0 = arith.constant 0 : i32
    %c0_i32_1 = arith.constant 0 : i32
    return %c0_i32, %c0_i32_0 : i32, i32
  }
  func.func @transform_2(%arg0: i32) -> (i32, i32) {
    %c0_i32 = arith.constant 0 : i32
    %c0_i32_0 = arith.constant 0 : i32
    %c0_i32_1 = arith.constant 0 : i32
    return %c0_i32, %c0_i32_0 : i32, i32
  }
  func.func @transform_3(%arg0: i32) -> (i32, i32) {
    %c0_i32 = arith.constant 0 : i32
    %c0_i32_0 = arith.constant 0 : i32
    return %arg0, %c0_i32 : i32, i32
  }
}

module attributes {stable_mosaic.version = 11 : i64} {
  func.func @_linear_kernel(%arg0: i32, %arg1: memref<24x16xbf16, #tpu.memory_space<vmem>>, %arg2: memref<16x128xf32, #tpu.memory_space<vmem>>, %arg3: memref<1x128xf32, #tpu.memory_space<vmem>>, %arg4: memref<24x128xf32, #tpu.memory_space<vmem>>) attributes {dimension_semantics = [#tpu.dimension_semantics<parallel>], iteration_bounds = array<i64: 1>, scalar_prefetch = 0 : i64, scratch_operands = 0 : i64, tpu.core_type = #tpu.core_type<tc>, window_params = [{transform_indices = @transform_0, window_bounds = array<i64: 24, 16>}, {pipeline_mode = #tpu.pipeline_mode<synchronous>, transform_indices = @transform_1, window_bounds = array<i64: 16, 128>}, {pipeline_mode = #tpu.pipeline_mode<synchronous>, transform_indices = @transform_2, window_bounds = array<i64: 1, 128>}, {transform_indices = @transform_3, window_bounds = array<i64: 24, 128>}]} {
    %c0 = arith.constant 0 : index
    %c0_0 = arith.constant 0 : index
    %0 = vector.load %arg1[%c0, %c0_0] : memref<24x16xbf16, #tpu.memory_space<vmem>>, vector<24x16xbf16>
    %c0_1 = arith.constant 0 : index
    %c0_2 = arith.constant 0 : index
    %1 = vector.load %arg2[%c0_1, %c0_2] : memref<16x128xf32, #tpu.memory_space<vmem>>, vector<16x128xf32>
    %cst = arith.constant dense<0.000000e+00> : vector<24x128xf32>
    %2 = tpu.matmul %0, %1, %cst {dimension_numbers = #tpu.dot_dimension_numbers<[1], [0], [0], [1], [0, 0, 1, 1], [], []>} : vector<24x16xbf16>, vector<16x128xf32>, vector<24x128xf32> -> vector<24x128xf32>
    %c0_3 = arith.constant 0 : index
    %c0_4 = arith.constant 0 : index
    %3 = vector.load %arg3[%c0_3, %c0_4] : memref<1x128xf32, #tpu.memory_space<vmem>>, vector<1x128xf32>
    %4 = vector.broadcast %3 : vector<1x128xf32> to vector<24x128xf32>
    %5 = arith.addf %2, %4 : vector<24x128xf32>
    %c0_5 = arith.constant 0 : index
    %c0_6 = arith.constant 0 : index
    %6 = vector.load %arg4[%c0_5, %c0_6] : memref<24x128xf32, #tpu.memory_space<vmem>>, vector<24x128xf32>
    tpu.vector_store %arg4[%c0_5, %c0_6], %5 {strides = array<i32>} : memref<24x128xf32, #tpu.memory_space<vmem>>, vector<24x128xf32>,
    return
  }
  func.func @transform_0(%arg0: i32) -> (i32, i32) {
    %c0_i32 = arith.constant 0 : i32
    %c0_i32_0 = arith.constant 0 : i32
    return %arg0, %c0_i32 : i32, i32
  }
  func.func @transform_1(%arg0: i32) -> (i32, i32) {
    %c0_i32 = arith.constant 0 : i32
    %c0_i32_0 = arith.constant 0 : i32
    %c0_i32_1 = arith.constant 0 : i32
    return %c0_i32, %c0_i32_0 : i32, i32
  }
  func.func @transform_2(%arg0: i32) -> (i32, i32) {
    %c0_i32 = arith.constant 0 : i32
    %c0_i32_0 = arith.constant 0 : i32
    %c0_i32_1 = arith.constant 0 : i32
    return %c0_i32, %c0_i32_0 : i32, i32
  }
  func.func @transform_3(%arg0: i32) -> (i32, i32) {
    %c0_i32 = arith.constant 0 : i32
    %c0_i32_0 = arith.constant 0 : i32
    return %arg0, %c0_i32 : i32, i32
  }
}

</mosaic_0001>

<llo_original>
// kernel: net_need_name_forward.27
$region0: #{net_need_name_forward.27}
  #allocation0 [shape = 'u32[]', space=smem, size = 0x4, offset = 0x4, fixed_abs, tag = 'smem constant byte address 0x4 - core index']
  #allocation1 [shape = 'u32[144,128]{1,0:T(1,128)}', space=vmem, size = 0x12000, scoped, tag = 'internal scratch']
  %s0 = inlined_call_operand.vmem [shape: bf16[16,10], index: 0, kind: input, shape index: {}]
  %s1 = inlined_call_operand.vmem [shape: bf16[10,256], index: 1, kind: input, shape index: {}]
  %s2 = inlined_call_operand.vmem [shape: f32[1,256], index: 2, kind: input, shape index: {}]
  %s3 = inlined_call_operand.vmem [shape: bf16[16,256], index: 3, kind: output, shape index: {}]
  %s4 = sld [smem:[#allocation0]]
  $region22: #{net_need_name_forward.27} parent=0
    _
  %s6 = ssub.s32 1, %s4
  %s7 = scalar_select 0, %s6, %s4
  // Predicated region
  $region2: #{net_need_name_forward.27} parent=0 // pred_check
    _
  $region3: #{net_need_name_forward.27} parent=0 // pred_check_branch
    %9 = sbr.rel (0) target = $region5
  $region4: #{net_need_name_forward.27} parent=0 // pred_region
    _
  $region5: #{net_need_name_forward.27} parent=0 // pred_fallthru
    _
  // Predicated region
  $region6: #{net_need_name_forward.27} parent=0 // pred_check
    _
  $region7: #{net_need_name_forward.27} parent=0 // pred_check_branch
    %11 = sbr.rel (0) target = $region9
  $region8: #{net_need_name_forward.27} parent=0 // pred_region
    _
  $region9: #{net_need_name_forward.27} parent=0 // pred_fallthru
    _
  // Predicated region
  $region10: #{net_need_name_forward.27} parent=0 // pred_check
    _
  $region11: #{net_need_name_forward.27} parent=0 // pred_check_branch
    %13 = sbr.rel (0) target = $region13
  $region12: #{net_need_name_forward.27} parent=0 // pred_region
    _
  $region13: #{net_need_name_forward.27} parent=0 // pred_fallthru
    _
  %v15 = vld [vmem:[%s0] sm:$0xf]
  %v16 = vld [vmem:[%s0 + $0x4] sm:$0xf]
  %v17 = vld [vmem:[%s1] sm:$0xff]
  %v18 = vld [vmem:[%s1 + $0x8] sm:$0x11]
  %v19 = vld [vmem:[%s2] sm:$0x3]
  %v21 = vlaneseq
  %v22 = vshrl.u32 %v21, 7
  %v23 = vsub.s32 0, %v22
  %v24 = vrot.slane %v19, %v23
  %v25 = vlaneseq
  %v26 = vshrl.u32 %v25, 7
  %v27 = vsub.s32 1, %v26
  %v28 = vrot.slane %v19, %v27
  %v33 = vunpack.c.l.b16 %v15
  %v34 = vunpack.c.l.b16 %v16
  %v35 = vpack.c.b16 %v34, %v33
  %v38 = vunpack.c.l.b16 %v17
  %v39 = vunpack.c.h.b16 %v17
  %v40 = vunpack.c.l.b16 %v18
  %v41 = vunpack.c.h.b16 %v18
  %v42 = vpack.c.b16 %v40, %v38
  %v43 = vpack.c.b16 %v41, %v39
  %vm44 = vcmask 80896
  %v46 = vsel %vm44, %v35, 0
  %vm48 = vcmask 1044480
  %v50 = vsel %vm48, %v42, 0
  %v53 = vsel %vm48, %v43, 0
  %55 = vmatprep.subr.bf16.mxu0 0
  %56 = vmatpush1.bf16.msra.mxu0 0
  %57 = vmatprep.subr.bf16.mxu0 0
  %58 = vmatpush1.bf16.msra.mxu0 0
  %59 = vmatprep.subr.bf16.mxu0 0
  %60 = vmatpush1.bf16.msra.mxu0 0
  %61 = vmatprep.subr.bf16.mxu0 0
  %62 = vmatpush1.bf16.msra.mxu0 0
  %63 = vmatprep.subr.bf16.mxu0 0
  %64 = vmatpush1.bf16.msra.mxu0 0
  %65 = vmatprep.subr.bf16.mxu0 0
  %66 = vmatpush1.bf16.msra.mxu0 0
  %67 = vmatprep.subr.bf16.mxu0 0
  %68 = vmatpush1.bf16.msra.mxu0 0
  %69 = vmatprep.subr.bf16.mxu0 %v53
  %70 = vmatpush1.bf16.msra.mxu0 %v50
  %71 = vmatprep.subr.bf16.mxu0 0
  %72 = vmatpush2.bf16.msra.mxu0 0
  %73 = vmatprep.subr.bf16.mxu0 0
  %74 = vmatpush2.bf16.msra.mxu0 0
  %75 = vmatprep.subr.bf16.mxu0 0
  %76 = vmatpush2.bf16.msra.mxu0 0
  %77 = vmatprep.subr.bf16.mxu0 0
  %78 = vmatpush2.bf16.msra.mxu0 0
  %79 = vmatprep.subr.bf16.mxu0 0
  %80 = vmatpush2.bf16.msra.mxu0 0
  %81 = vmatprep.subr.bf16.mxu0 0
  %82 = vmatpush2.bf16.msra.mxu0 0
  %83 = vmatprep.subr.bf16.mxu0 0
  %84 = vmatpush2.bf16.msra.mxu0 0
  %85 = vmatprep.subr.bf16.mxu0 0
  %86 = vmatpush2.bf16.msra.mxu0 0
  %87 = vmatprep.mubr.bf16.mxu0 0
  %88 = vmatmul.mubr.bf16.gmra.mxu0 %v46
  %v89 = vpop.f32.mrf.mxu0
  %v90 = vadd.f32 %v24, %v89
  %v91 = vpop.f32.mrf.mxu0
  %v92 = vadd.f32 %v28, %v91
  %v93 = vpop.f32.mrf.mxu0
  %v94 = vadd.f32 %v24, %v93
  %v95 = vpop.f32.mrf.mxu0
  %v96 = vadd.f32 %v28, %v95
  %97 = vdwg.mxu0
  %v98 = vpack.c.bf16 %v94, %v90
  %v99 = vpack.c.bf16 %v96, %v92
  %v102 = vunpack.c.l.b16 %v98
  %v103 = vunpack.c.l.b16 %v99
  %v104 = vunpack.c.h.b16 %v98
  %v105 = vunpack.c.h.b16 %v99
  %v106 = vpack.c.b16 %v103, %v102
  %v107 = vpack.c.b16 %v105, %v104
  %110 = vst [vmem:[%s3] sm:$0xff] %v106
  %111 = vst [vmem:[%s3 + $0x8] sm:$0xff] %v107
  // Predicated region
  $region14: #{net_need_name_forward.27} parent=0 // pred_check
    _
  $region15: #{net_need_name_forward.27} parent=0 // pred_check_branch
    %113 = sbr.rel (0) target = $region17
  $region16: #{net_need_name_forward.27} parent=0 // pred_region
    _
  $region17: #{net_need_name_forward.27} parent=0 // pred_fallthru
    _
  // Predicated region
  $region18: #{net_need_name_forward.27} parent=0 // pred_check
    _
  $region19: #{net_need_name_forward.27} parent=0 // pred_check_branch
    %115 = sbr.rel (0) target = $region21
  $region20: #{net_need_name_forward.27} parent=0 // pred_region
    _
  $region21: #{net_need_name_forward.27} parent=0 // pred_fallthru
    _

// kernel: net_need_name_forward.30
$region0: #{net_need_name_forward.30}
  #allocation0 [shape = 'u32[]', space=smem, size = 0x4, offset = 0x4, fixed_abs, tag = 'smem constant byte address 0x4 - core index']
  #allocation1 [shape = 'u32[144,128]{1,0:T(1,128)}', space=vmem, size = 0x12000, scoped, tag = 'internal scratch']
  #allocation2 [shape = 'f32[16,256]{1,0:T(8,128)}', space=vmem, size = 0x4000, scoped, tag = 'scratch operand']
  %s0 = inlined_call_operand.vmem [shape: bf16[16,16], index: 0, kind: input, shape index: {}]
  %s1 = inlined_call_operand.vmem [shape: bf16[16,256], index: 1, kind: input, shape index: {}]
  %s2 = inlined_call_operand.vmem [shape: bf16[256,256], index: 2, kind: input, shape index: {}]
  %s3 = inlined_call_operand.vmem [shape: f32[1,256], index: 3, kind: input, shape index: {}]
  %s4 = inlined_call_operand.vmem [shape: bf16[16,256], index: 4, kind: output, shape index: {}]
  %s5 = sld [smem:[#allocation0]]
  $region34: #{net_need_name_forward.30} parent=0
    _
  %s7 = ssub.s32 1, %s5
  %s8 = scalar_select 0, %s7, %s5
  // Predicated region
  $region2: #{net_need_name_forward.30} parent=0 // pred_check
    _
  $region3: #{net_need_name_forward.30} parent=0 // pred_check_branch
    %10 = sbr.rel (0) target = $region5
  $region4: #{net_need_name_forward.30} parent=0 // pred_region
    _
  $region5: #{net_need_name_forward.30} parent=0 // pred_fallthru
    _
  // Predicated region
  $region6: #{net_need_name_forward.30} parent=0 // pred_check
    _
  $region7: #{net_need_name_forward.30} parent=0 // pred_check_branch
    %12 = sbr.rel (0) target = $region9
  $region8: #{net_need_name_forward.30} parent=0 // pred_region
    _
  $region9: #{net_need_name_forward.30} parent=0 // pred_fallthru
    _
  // Predicated region
  $region10: #{net_need_name_forward.30} parent=0 // pred_check
    _
  $region11: #{net_need_name_forward.30} parent=0 // pred_check_branch
    %14 = sbr.rel (0) target = $region13
  $region12: #{net_need_name_forward.30} parent=0 // pred_region
    _
  $region13: #{net_need_name_forward.30} parent=0 // pred_fallthru
    _
  // Predicated region
  $region14: #{net_need_name_forward.30} parent=0 // pred_check
    _
  $region15: #{net_need_name_forward.30} parent=0 // pred_check_branch
    %16 = sbr.rel (0) target = $region17
  $region16: #{net_need_name_forward.30} parent=0 // pred_region
    _
  $region17: #{net_need_name_forward.30} parent=0 // pred_fallthru
    _
  %p18 = scmp.eq.s32.totalorder 0, 0
  // Predicated region
  $region18: #{net_need_name_forward.30} parent=0 // pred_check
    %p19 = pneg %p18
  $region19: #{net_need_name_forward.30} parent=0 // pred_check_branch
    %21 = sbr.rel (%p19) target = $region21
  $region20: #{net_need_name_forward.30} parent=0 // pred_region
    %22 = vst [vmem:[#allocation2] sm:$0xff] 0.0
    %23 = vst [vmem:[#allocation2 + $0x8] sm:$0xff] 0.0
    %24 = vst [vmem:[#allocation2 + $0x10] sm:$0xff] 0.0
    %25 = vst [vmem:[#allocation2 + $0x18] sm:$0xff] 0.0
  $region21: #{net_need_name_forward.30} parent=0 // pred_fallthru
    _
  %v26 = vld [vmem:[#allocation2] sm:$0xff]
  %v27 = vld [vmem:[#allocation2 + $0x8] sm:$0xff]
  %v28 = vld [vmem:[#allocation2 + $0x10] sm:$0xff]
  %v29 = vld [vmem:[#allocation2 + $0x18] sm:$0xff]
  %v30 = vld [vmem:[%s0] sm:$0xf]
  %v31 = vld [vmem:[%s0 + $0x4] sm:$0xf]
  %v32 = vld [vmem:[%s1] sm:$0xff]
  %v33 = vld [vmem:[%s1 + $0x8] sm:$0xff]
  %v36 = vunpack.c.l.b16 %v30
  %v37 = vunpack.c.l.b16 %v31
  %v38 = vpack.c.b16 %v37, %v36
  %v41 = vunpack.c.l.b16 %v32
  %v42 = vunpack.c.h.b16 %v32
  %v43 = vunpack.c.l.b16 %v33
  %v44 = vunpack.c.h.b16 %v33
  %v45 = vpack.c.b16 %v43, %v41
  %v46 = vpack.c.b16 %v44, %v42
  %vm49 = vcmask 130048
  %v51 = vsel %vm49, %v38, 0
  %53 = vmatprep.subr.bf16.mxu0 0
  %54 = vmatpush1.bf16.msra.mxu0 0
  %55 = vmatprep.subr.bf16.mxu0 0
  %56 = vmatpush1.bf16.msra.mxu0 0
  %57 = vmatprep.subr.bf16.mxu0 0
  %58 = vmatpush1.bf16.msra.mxu0 0
  %59 = vmatprep.subr.bf16.mxu0 0
  %60 = vmatpush1.bf16.msra.mxu0 0
  %61 = vmatprep.subr.bf16.mxu0 0
  %62 = vmatpush1.bf16.msra.mxu0 0
  %63 = vmatprep.subr.bf16.mxu0 0
  %64 = vmatpush1.bf16.msra.mxu0 0
  %65 = vmatprep.subr.bf16.mxu0 0
  %66 = vmatpush1.bf16.msra.mxu0 0
  %67 = vmatprep.subr.bf16.mxu0 %v46
  %68 = vmatpush1.bf16.msra.mxu0 %v45
  %69 = vmatprep.subr.bf16.mxu0 0
  %70 = vmatpush2.bf16.msra.mxu0 0
  %71 = vmatprep.subr.bf16.mxu0 0
  %72 = vmatpush2.bf16.msra.mxu0 0
  %73 = vmatprep.subr.bf16.mxu0 0
  %74 = vmatpush2.bf16.msra.mxu0 0
  %75 = vmatprep.subr.bf16.mxu0 0
  %76 = vmatpush2.bf16.msra.mxu0 0
  %77 = vmatprep.subr.bf16.mxu0 0
  %78 = vmatpush2.bf16.msra.mxu0 0
  %79 = vmatprep.subr.bf16.mxu0 0
  %80 = vmatpush2.bf16.msra.mxu0 0
  %81 = vmatprep.subr.bf16.mxu0 0
  %82 = vmatpush2.bf16.msra.mxu0 0
  %83 = vmatprep.subr.bf16.mxu0 0
  %84 = vmatpush2.bf16.msra.mxu0 0
  %85 = vmatprep.mubr.bf16.mxu0 0
  %86 = vmatmul.mubr.bf16.gmra.mxu0 %v51
  %v87 = vpop.f32.mrf.mxu0
  %v88 = vadd.f32 0.0, %v87
  %v89 = vpop.f32.mrf.mxu0
  %v90 = vadd.f32 0.0, %v89
  %v91 = vpop.f32.mrf.mxu0
  %v92 = vadd.f32 0.0, %v91
  %v93 = vpop.f32.mrf.mxu0
  %v94 = vadd.f32 0.0, %v93
  %95 = vdwg.mxu0
  %v96 = vadd.f32 %v26, %v88
  %v97 = vadd.f32 %v27, %v90
  %v98 = vadd.f32 %v28, %v92
  %v99 = vadd.f32 %v29, %v94
  %100 = vst [vmem:[#allocation2] sm:$0xff] %v96
  %101 = vst [vmem:[#allocation2 + $0x8] sm:$0xff] %v97
  %102 = vst [vmem:[#allocation2 + $0x10] sm:$0xff] %v98
  %103 = vst [vmem:[#allocation2 + $0x18] sm:$0xff] %v99
  // Predicated region
  $region22: #{net_need_name_forward.30} parent=0 // pred_check
    %p104 = pneg %p18
  $region23: #{net_need_name_forward.30} parent=0 // pred_check_branch
    %106 = sbr.rel (%p104) target = $region25
  $region24: #{net_need_name_forward.30} parent=0 // pred_region
    %v107 = vld [vmem:[#allocation2] sm:$0xff]
    %v108 = vld [vmem:[#allocation2 + $0x8] sm:$0xff]
    %v109 = vld [vmem:[#allocation2 + $0x10] sm:$0xff]
    %v110 = vld [vmem:[#allocation2 + $0x18] sm:$0xff]
    %v111 = vpack.c.bf16 %v109, %v107
    %v112 = vpack.c.bf16 %v110, %v108
    %v113 = vld [vmem:[%s2] sm:$0xff]
    %v114 = vld [vmem:[%s2 + $0x8] sm:$0xff]
    %v115 = vld [vmem:[%s2 + $0x10] sm:$0xff]
    %v116 = vld [vmem:[%s2 + $0x18] sm:$0xff]
    %v117 = vld [vmem:[%s2 + $0x20] sm:$0xff]
    %v118 = vld [vmem:[%s2 + $0x28] sm:$0xff]
    %v119 = vld [vmem:[%s2 + $0x30] sm:$0xff]
    %v120 = vld [vmem:[%s2 + $0x38] sm:$0xff]
    %v121 = vld [vmem:[%s2 + $0x40] sm:$0xff]
    %v122 = vld [vmem:[%s2 + $0x48] sm:$0xff]
    %v123 = vld [vmem:[%s2 + $0x50] sm:$0xff]
    %v124 = vld [vmem:[%s2 + $0x58] sm:$0xff]
    %v125 = vld [vmem:[%s2 + $0x60] sm:$0xff]
    %v126 = vld [vmem:[%s2 + $0x68] sm:$0xff]
    %v127 = vld [vmem:[%s2 + $0x70] sm:$0xff]
    %v128 = vld [vmem:[%s2 + $0x78] sm:$0xff]
    %v129 = vld [vmem:[%s2 + $0x80] sm:$0xff]
    %v130 = vld [vmem:[%s2 + $0x88] sm:$0xff]
    %v131 = vld [vmem:[%s2 + $0x90] sm:$0xff]
    %v132 = vld [vmem:[%s2 + $0x98] sm:$0xff]
    %v133 = vld [vmem:[%s2 + $0xa0] sm:$0xff]
    %v134 = vld [vmem:[%s2 + $0xa8] sm:$0xff]
    %v135 = vld [vmem:[%s2 + $0xb0] sm:$0xff]
    %v136 = vld [vmem:[%s2 + $0xb8] sm:$0xff]
    %v137 = vld [vmem:[%s2 + $0xc0] sm:$0xff]
    %v138 = vld [vmem:[%s2 + $0xc8] sm:$0xff]
    %v139 = vld [vmem:[%s2 + $0xd0] sm:$0xff]
    %v140 = vld [vmem:[%s2 + $0xd8] sm:$0xff]
    %v141 = vld [vmem:[%s2 + $0xe0] sm:$0xff]
    %v142 = vld [vmem:[%s2 + $0xe8] sm:$0xff]
    %v143 = vld [vmem:[%s2 + $0xf0] sm:$0xff]
    %v144 = vld [vmem:[%s2 + $0xf8] sm:$0xff]
    %v145 = vld [vmem:[%s3] sm:$0x3]
    %v147 = vlaneseq
    %v148 = vshrl.u32 %v147, 7
    %v149 = vsub.s32 0, %v148
    %v150 = vrot.slane %v145, %v149
    %v151 = vlaneseq
    %v152 = vshrl.u32 %v151, 7
    %v153 = vsub.s32 1, %v152
    %v154 = vrot.slane %v145, %v153
    %v189 = vunpack.c.l.b16 %v113
    %v190 = vunpack.c.h.b16 %v113
    %v191 = vunpack.c.l.b16 %v114
    %v192 = vunpack.c.h.b16 %v114
    %v193 = vunpack.c.l.b16 %v115
    %v194 = vunpack.c.h.b16 %v115
    %v195 = vunpack.c.l.b16 %v116
    %v196 = vunpack.c.h.b16 %v116
    %v197 = vunpack.c.l.b16 %v117
    %v198 = vunpack.c.h.b16 %v117
    %v199 = vunpack.c.l.b16 %v118
    %v200 = vunpack.c.h.b16 %v118
    %v201 = vunpack.c.l.b16 %v119
    %v202 = vunpack.c.h.b16 %v119
    %v203 = vunpack.c.l.b16 %v120
    %v204 = vunpack.c.h.b16 %v120
    %v205 = vunpack.c.l.b16 %v121
    %v206 = vunpack.c.h.b16 %v121
    %v207 = vunpack.c.l.b16 %v122
    %v208 = vunpack.c.h.b16 %v122
    %v209 = vunpack.c.l.b16 %v123
    %v210 = vunpack.c.h.b16 %v123
    %v211 = vunpack.c.l.b16 %v124
    %v212 = vunpack.c.h.b16 %v124
    %v213 = vunpack.c.l.b16 %v125
    %v214 = vunpack.c.h.b16 %v125
    %v215 = vunpack.c.l.b16 %v126
    %v216 = vunpack.c.h.b16 %v126
    %v217 = vunpack.c.l.b16 %v127
    %v218 = vunpack.c.h.b16 %v127
    %v219 = vunpack.c.l.b16 %v128
    %v220 = vunpack.c.h.b16 %v128
    %v221 = vunpack.c.l.b16 %v129
    %v222 = vunpack.c.h.b16 %v129
    %v223 = vunpack.c.l.b16 %v130
    %v224 = vunpack.c.h.b16 %v130
    %v225 = vunpack.c.l.b16 %v131
    %v226 = vunpack.c.h.b16 %v131
    %v227 = vunpack.c.l.b16 %v132
    %v228 = vunpack.c.h.b16 %v132
    %v229 = vunpack.c.l.b16 %v133
    %v230 = vunpack.c.h.b16 %v133
    %v231 = vunpack.c.l.b16 %v134
    %v232 = vunpack.c.h.b16 %v134
    %v233 = vunpack.c.l.b16 %v135
    %v234 = vunpack.c.h.b16 %v135
    %v235 = vunpack.c.l.b16 %v136
    %v236 = vunpack.c.h.b16 %v136
    %v237 = vunpack.c.l.b16 %v137
    %v238 = vunpack.c.h.b16 %v137
    %v239 = vunpack.c.l.b16 %v138
    %v240 = vunpack.c.h.b16 %v138
    %v241 = vunpack.c.l.b16 %v139
    %v242 = vunpack.c.h.b16 %v139
    %v243 = vunpack.c.l.b16 %v140
    %v244 = vunpack.c.h.b16 %v140
    %v245 = vunpack.c.l.b16 %v141
    %v246 = vunpack.c.h.b16 %v141
    %v247 = vunpack.c.l.b16 %v142
    %v248 = vunpack.c.h.b16 %v142
    %v249 = vunpack.c.l.b16 %v143
    %v250 = vunpack.c.h.b16 %v143
    %v251 = vunpack.c.l.b16 %v144
    %v252 = vunpack.c.h.b16 %v144
    %v253 = vpack.c.b16 %v191, %v189
    %v254 = vpack.c.b16 %v192, %v190
    %v255 = vpack.c.b16 %v195, %v193
    %v256 = vpack.c.b16 %v196, %v194
    %v257 = vpack.c.b16 %v199, %v197
    %v258 = vpack.c.b16 %v200, %v198
    %v259 = vpack.c.b16 %v203, %v201
    %v260 = vpack.c.b16 %v204, %v202
    %v261 = vpack.c.b16 %v207, %v205
    %v262 = vpack.c.b16 %v208, %v206
    %v263 = vpack.c.b16 %v211, %v209
    %v264 = vpack.c.b16 %v212, %v210
    %v265 = vpack.c.b16 %v215, %v213
    %v266 = vpack.c.b16 %v216, %v214
    %v267 = vpack.c.b16 %v219, %v217
    %v268 = vpack.c.b16 %v220, %v218
    %v269 = vpack.c.b16 %v223, %v221
    %v270 = vpack.c.b16 %v224, %v222
    %v271 = vpack.c.b16 %v227, %v225
    %v272 = vpack.c.b16 %v228, %v226
    %v273 = vpack.c.b16 %v231, %v229
    %v274 = vpack.c.b16 %v232, %v230
    %v275 = vpack.c.b16 %v235, %v233
    %v276 = vpack.c.b16 %v236, %v234
    %v277 = vpack.c.b16 %v239, %v237
    %v278 = vpack.c.b16 %v240, %v238
    %v279 = vpack.c.b16 %v243, %v241
    %v280 = vpack.c.b16 %v244, %v242
    %v281 = vpack.c.b16 %v247, %v245
    %v282 = vpack.c.b16 %v248, %v246
    %v283 = vpack.c.b16 %v251, %v249
    %v284 = vpack.c.b16 %v252, %v250
    %317 = vmatprep.subr.bf16.mxu0 %v268
    %318 = vmatpush1.bf16.msra.mxu0 %v267
    %319 = vmatprep.subr.bf16.mxu0 %v266
    %320 = vmatpush1.bf16.msra.mxu0 %v265
    %321 = vmatprep.subr.bf16.mxu0 %v264
    %322 = vmatpush1.bf16.msra.mxu0 %v263
    %323 = vmatprep.subr.bf16.mxu0 %v262
    %324 = vmatpush1.bf16.msra.mxu0 %v261
    %325 = vmatprep.subr.bf16.mxu0 %v260
    %326 = vmatpush1.bf16.msra.mxu0 %v259
    %327 = vmatprep.subr.bf16.mxu0 %v258
    %328 = vmatpush1.bf16.msra.mxu0 %v257
    %329 = vmatprep.subr.bf16.mxu0 %v256
    %330 = vmatpush1.bf16.msra.mxu0 %v255
    %331 = vmatprep.subr.bf16.mxu0 %v254
    %332 = vmatpush1.bf16.msra.mxu0 %v253
    %333 = vmatprep.subr.bf16.mxu0 %v284
    %334 = vmatpush2.bf16.msra.mxu0 %v283
    %335 = vmatprep.subr.bf16.mxu0 %v282
    %336 = vmatpush2.bf16.msra.mxu0 %v281
    %337 = vmatprep.subr.bf16.mxu0 %v280
    %338 = vmatpush2.bf16.msra.mxu0 %v279
    %339 = vmatprep.subr.bf16.mxu0 %v278
    %340 = vmatpush2.bf16.msra.mxu0 %v277
    %341 = vmatprep.subr.bf16.mxu0 %v276
    %342 = vmatpush2.bf16.msra.mxu0 %v275
    %343 = vmatprep.subr.bf16.mxu0 %v274
    %344 = vmatpush2.bf16.msra.mxu0 %v273
    %345 = vmatprep.subr.bf16.mxu0 %v272
    %346 = vmatpush2.bf16.msra.mxu0 %v271
    %347 = vmatprep.subr.bf16.mxu0 %v270
    %348 = vmatpush2.bf16.msra.mxu0 %v269
    %349 = vmatprep.mubr.bf16.mxu0 %v112
    %350 = vmatmul.mubr.bf16.gmra.mxu0 %v111
    %v351 = vpop.f32.mrf.mxu0
    %v352 = vadd.f32 %v150, %v351
    %v353 = vpop.f32.mrf.mxu0
    %v354 = vadd.f32 %v154, %v353
    %v355 = vpop.f32.mrf.mxu0
    %v356 = vadd.f32 %v150, %v355
    %v357 = vpop.f32.mrf.mxu0
    %v358 = vadd.f32 %v154, %v357
    %359 = vdwg.mxu0
    %v360 = vmax.f32 %v352, 0.0
    %v361 = vmax.f32 %v354, 0.0
    %v362 = vmax.f32 %v356, 0.0
    %v363 = vmax.f32 %v358, 0.0
    %v364 = vpack.c.bf16 %v362, %v360
    %v365 = vpack.c.bf16 %v363, %v361
    %v368 = vunpack.c.l.b16 %v364
    %v369 = vunpack.c.l.b16 %v365
    %v370 = vunpack.c.h.b16 %v364
    %v371 = vunpack.c.h.b16 %v365
    %v372 = vpack.c.b16 %v369, %v368
    %v373 = vpack.c.b16 %v371, %v370
    %376 = vst [vmem:[%s4] sm:$0xff] %v372
    %377 = vst [vmem:[%s4 + $0x8] sm:$0xff] %v373
  $region25: #{net_need_name_forward.30} parent=0 // pred_fallthru
    _
  // Predicated region
  $region26: #{net_need_name_forward.30} parent=0 // pred_check
    _
  $region27: #{net_need_name_forward.30} parent=0 // pred_check_branch
    %379 = sbr.rel (0) target = $region29
  $region28: #{net_need_name_forward.30} parent=0 // pred_region
    _
  $region29: #{net_need_name_forward.30} parent=0 // pred_fallthru
    _
  // Predicated region
  $region30: #{net_need_name_forward.30} parent=0 // pred_check
    _
  $region31: #{net_need_name_forward.30} parent=0 // pred_check_branch
    %381 = sbr.rel (0) target = $region33
  $region32: #{net_need_name_forward.30} parent=0 // pred_region
    _
  $region33: #{net_need_name_forward.30} parent=0 // pred_fallthru
    _

// kernel: net_need_name_forward.26
$region0: #{net_need_name_forward.26}
  #allocation0 [shape = 'u32[]', space=smem, size = 0x4, offset = 0x4, fixed_abs, tag = 'smem constant byte address 0x4 - core index']
  #allocation1 [shape = 'u32[144,128]{1,0:T(1,128)}', space=vmem, size = 0x12000, scoped, tag = 'internal scratch']
  %s0 = inlined_call_operand.vmem [shape: bf16[16,12], index: 0, kind: input, shape index: {}]
  %s1 = inlined_call_operand.vmem [shape: bf16[12,256], index: 1, kind: input, shape index: {}]
  %s2 = inlined_call_operand.vmem [shape: f32[1,256], index: 2, kind: input, shape index: {}]
  %s3 = inlined_call_operand.vmem [shape: bf16[16,256], index: 3, kind: output, shape index: {}]
  %s4 = sld [smem:[#allocation0]]
  $region22: #{net_need_name_forward.26} parent=0
    _
  %s6 = ssub.s32 1, %s4
  %s7 = scalar_select 0, %s6, %s4
  // Predicated region
  $region2: #{net_need_name_forward.26} parent=0 // pred_check
    _
  $region3: #{net_need_name_forward.26} parent=0 // pred_check_branch
    %9 = sbr.rel (0) target = $region5
  $region4: #{net_need_name_forward.26} parent=0 // pred_region
    _
  $region5: #{net_need_name_forward.26} parent=0 // pred_fallthru
    _
  // Predicated region
  $region6: #{net_need_name_forward.26} parent=0 // pred_check
    _
  $region7: #{net_need_name_forward.26} parent=0 // pred_check_branch
    %11 = sbr.rel (0) target = $region9
  $region8: #{net_need_name_forward.26} parent=0 // pred_region
    _
  $region9: #{net_need_name_forward.26} parent=0 // pred_fallthru
    _
  // Predicated region
  $region10: #{net_need_name_forward.26} parent=0 // pred_check
    _
  $region11: #{net_need_name_forward.26} parent=0 // pred_check_branch
    %13 = sbr.rel (0) target = $region13
  $region12: #{net_need_name_forward.26} parent=0 // pred_region
    _
  $region13: #{net_need_name_forward.26} parent=0 // pred_fallthru
    _
  %v15 = vld [vmem:[%s0] sm:$0xf]
  %v16 = vld [vmem:[%s0 + $0x4] sm:$0xf]
  %v17 = vld [vmem:[%s1] sm:$0xff]
  %v18 = vld [vmem:[%s1 + $0x8] sm:$0x33]
  %v19 = vld [vmem:[%s2] sm:$0x3]
  %v21 = vlaneseq
  %v22 = vshrl.u32 %v21, 7
  %v23 = vsub.s32 0, %v22
  %v24 = vrot.slane %v19, %v23
  %v25 = vlaneseq
  %v26 = vshrl.u32 %v25, 7
  %v27 = vsub.s32 1, %v26
  %v28 = vrot.slane %v19, %v27
  %v33 = vunpack.c.l.b16 %v15
  %v34 = vunpack.c.l.b16 %v16
  %v35 = vpack.c.b16 %v34, %v33
  %v38 = vunpack.c.l.b16 %v17
  %v39 = vunpack.c.h.b16 %v17
  %v40 = vunpack.c.l.b16 %v18
  %v41 = vunpack.c.h.b16 %v18
  %v42 = vpack.c.b16 %v40, %v38
  %v43 = vpack.c.b16 %v41, %v39
  %vm44 = vcmask 97280
  %v46 = vsel %vm44, %v35, 0
  %vm48 = vcmask 1045504
  %v50 = vsel %vm48, %v42, 0
  %v53 = vsel %vm48, %v43, 0
  %55 = vmatprep.subr.bf16.mxu0 0
  %56 = vmatpush1.bf16.msra.mxu0 0
  %57 = vmatprep.subr.bf16.mxu0 0
  %58 = vmatpush1.bf16.msra.mxu0 0
  %59 = vmatprep.subr.bf16.mxu0 0
  %60 = vmatpush1.bf16.msra.mxu0 0
  %61 = vmatprep.subr.bf16.mxu0 0
  %62 = vmatpush1.bf16.msra.mxu0 0
  %63 = vmatprep.subr.bf16.mxu0 0
  %64 = vmatpush1.bf16.msra.mxu0 0
  %65 = vmatprep.subr.bf16.mxu0 0
  %66 = vmatpush1.bf16.msra.mxu0 0
  %67 = vmatprep.subr.bf16.mxu0 0
  %68 = vmatpush1.bf16.msra.mxu0 0
  %69 = vmatprep.subr.bf16.mxu0 %v53
  %70 = vmatpush1.bf16.msra.mxu0 %v50
  %71 = vmatprep.subr.bf16.mxu0 0
  %72 = vmatpush2.bf16.msra.mxu0 0
  %73 = vmatprep.subr.bf16.mxu0 0
  %74 = vmatpush2.bf16.msra.mxu0 0
  %75 = vmatprep.subr.bf16.mxu0 0
  %76 = vmatpush2.bf16.msra.mxu0 0
  %77 = vmatprep.subr.bf16.mxu0 0
  %78 = vmatpush2.bf16.msra.mxu0 0
  %79 = vmatprep.subr.bf16.mxu0 0
  %80 = vmatpush2.bf16.msra.mxu0 0
  %81 = vmatprep.subr.bf16.mxu0 0
  %82 = vmatpush2.bf16.msra.mxu0 0
  %83 = vmatprep.subr.bf16.mxu0 0
  %84 = vmatpush2.bf16.msra.mxu0 0
  %85 = vmatprep.subr.bf16.mxu0 0
  %86 = vmatpush2.bf16.msra.mxu0 0
  %87 = vmatprep.mubr.bf16.mxu0 0
  %88 = vmatmul.mubr.bf16.gmra.mxu0 %v46
  %v89 = vpop.f32.mrf.mxu0
  %v90 = vadd.f32 %v24, %v89
  %v91 = vpop.f32.mrf.mxu0
  %v92 = vadd.f32 %v28, %v91
  %v93 = vpop.f32.mrf.mxu0
  %v94 = vadd.f32 %v24, %v93
  %v95 = vpop.f32.mrf.mxu0
  %v96 = vadd.f32 %v28, %v95
  %97 = vdwg.mxu0
  %v98 = vpack.c.bf16 %v94, %v90
  %v99 = vpack.c.bf16 %v96, %v92
  %v102 = vunpack.c.l.b16 %v98
  %v103 = vunpack.c.l.b16 %v99
  %v104 = vunpack.c.h.b16 %v98
  %v105 = vunpack.c.h.b16 %v99
  %v106 = vpack.c.b16 %v103, %v102
  %v107 = vpack.c.b16 %v105, %v104
  %110 = vst [vmem:[%s3] sm:$0xff] %v106
  %111 = vst [vmem:[%s3 + $0x8] sm:$0xff] %v107
  // Predicated region
  $region14: #{net_need_name_forward.26} parent=0 // pred_check
    _
  $region15: #{net_need_name_forward.26} parent=0 // pred_check_branch
    %113 = sbr.rel (0) target = $region17
  $region16: #{net_need_name_forward.26} parent=0 // pred_region
    _
  $region17: #{net_need_name_forward.26} parent=0 // pred_fallthru
    _
  // Predicated region
  $region18: #{net_need_name_forward.26} parent=0 // pred_check
    _
  $region19: #{net_need_name_forward.26} parent=0 // pred_check_branch
    %115 = sbr.rel (0) target = $region21
  $region20: #{net_need_name_forward.26} parent=0 // pred_region
    _
  $region21: #{net_need_name_forward.26} parent=0 // pred_fallthru
    _

// kernel: net_need_name_forward.29
$region0: #{net_need_name_forward.29}
  #allocation0 [shape = 'u32[]', space=smem, size = 0x4, offset = 0x4, fixed_abs, tag = 'smem constant byte address 0x4 - core index']
  #allocation1 [shape = 'u32[144,128]{1,0:T(1,128)}', space=vmem, size = 0x12000, scoped, tag = 'internal scratch']
  #allocation2 [shape = 'f32[16,256]{1,0:T(8,128)}', space=vmem, size = 0x4000, scoped, tag = 'scratch operand']
  %s0 = inlined_call_operand.vmem [shape: bf16[16,16], index: 0, kind: input, shape index: {}]
  %s1 = inlined_call_operand.vmem [shape: bf16[16,256], index: 1, kind: input, shape index: {}, may-alias: {1,2}]
  %s2 = inlined_call_operand.vmem [shape: bf16[16,256], index: 2, kind: input, shape index: {}, may-alias: {1,2}]
  %s3 = inlined_call_operand.vmem [shape: bf16[256,256], index: 3, kind: input, shape index: {}]
  %s4 = inlined_call_operand.vmem [shape: bf16[256,256], index: 4, kind: input, shape index: {}]
  %s5 = inlined_call_operand.vmem [shape: f32[1,256], index: 5, kind: input, shape index: {}]
  %s6 = inlined_call_operand.vmem [shape: bf16[16,256], index: 6, kind: output, shape index: {}]
  %s7 = sld [smem:[#allocation0]]
  $region42: #{net_need_name_forward.29} parent=0
    _
  %s9 = ssub.s32 1, %s7
  %s10 = scalar_select 0, %s9, %s7
  // Predicated region
  $region2: #{net_need_name_forward.29} parent=0 // pred_check
    _
  $region3: #{net_need_name_forward.29} parent=0 // pred_check_branch
    %12 = sbr.rel (0) target = $region5
  $region4: #{net_need_name_forward.29} parent=0 // pred_region
    _
  $region5: #{net_need_name_forward.29} parent=0 // pred_fallthru
    _
  // Predicated region
  $region6: #{net_need_name_forward.29} parent=0 // pred_check
    _
  $region7: #{net_need_name_forward.29} parent=0 // pred_check_branch
    %14 = sbr.rel (0) target = $region9
  $region8: #{net_need_name_forward.29} parent=0 // pred_region
    _
  $region9: #{net_need_name_forward.29} parent=0 // pred_fallthru
    _
  // Predicated region
  $region10: #{net_need_name_forward.29} parent=0 // pred_check
    _
  $region11: #{net_need_name_forward.29} parent=0 // pred_check_branch
    %16 = sbr.rel (0) target = $region13
  $region12: #{net_need_name_forward.29} parent=0 // pred_region
    _
  $region13: #{net_need_name_forward.29} parent=0 // pred_fallthru
    _
  // Predicated region
  $region14: #{net_need_name_forward.29} parent=0 // pred_check
    _
  $region15: #{net_need_name_forward.29} parent=0 // pred_check_branch
    %18 = sbr.rel (0) target = $region17
  $region16: #{net_need_name_forward.29} parent=0 // pred_region
    _
  $region17: #{net_need_name_forward.29} parent=0 // pred_fallthru
    _
  // Predicated region
  $region18: #{net_need_name_forward.29} parent=0 // pred_check
    _
  $region19: #{net_need_name_forward.29} parent=0 // pred_check_branch
    %20 = sbr.rel (0) target = $region21
  $region20: #{net_need_name_forward.29} parent=0 // pred_region
    _
  $region21: #{net_need_name_forward.29} parent=0 // pred_fallthru
    _
  // Predicated region
  $region22: #{net_need_name_forward.29} parent=0 // pred_check
    _
  $region23: #{net_need_name_forward.29} parent=0 // pred_check_branch
    %22 = sbr.rel (0) target = $region25
  $region24: #{net_need_name_forward.29} parent=0 // pred_region
    _
  $region25: #{net_need_name_forward.29} parent=0 // pred_fallthru
    _
  %p24 = scmp.eq.s32.totalorder 0, 0
  // Predicated region
  $region26: #{net_need_name_forward.29} parent=0 // pred_check
    %p25 = pneg %p24
  $region27: #{net_need_name_forward.29} parent=0 // pred_check_branch
    %27 = sbr.rel (%p25) target = $region29
  $region28: #{net_need_name_forward.29} parent=0 // pred_region
    %28 = vst [vmem:[#allocation2] sm:$0xff] 0.0
    %29 = vst [vmem:[#allocation2 + $0x8] sm:$0xff] 0.0
    %30 = vst [vmem:[#allocation2 + $0x10] sm:$0xff] 0.0
    %31 = vst [vmem:[#allocation2 + $0x18] sm:$0xff] 0.0
  $region29: #{net_need_name_forward.29} parent=0 // pred_fallthru
    _
  %v32 = vld [vmem:[#allocation2] sm:$0xff]
  %v33 = vld [vmem:[#allocation2 + $0x8] sm:$0xff]
  %v34 = vld [vmem:[#allocation2 + $0x10] sm:$0xff]
  %v35 = vld [vmem:[#allocation2 + $0x18] sm:$0xff]
  %v36 = vld [vmem:[%s0] sm:$0xf]
  %v37 = vld [vmem:[%s0 + $0x4] sm:$0xf]
  %v38 = vld [vmem:[%s1] sm:$0xff]
  %v39 = vld [vmem:[%s1 + $0x8] sm:$0xff]
  %v42 = vunpack.c.l.b16 %v36
  %v43 = vunpack.c.l.b16 %v37
  %v44 = vpack.c.b16 %v43, %v42
  %v47 = vunpack.c.l.b16 %v38
  %v48 = vunpack.c.h.b16 %v38
  %v49 = vunpack.c.l.b16 %v39
  %v50 = vunpack.c.h.b16 %v39
  %v51 = vpack.c.b16 %v49, %v47
  %v52 = vpack.c.b16 %v50, %v48
  %vm55 = vcmask 130048
  %v57 = vsel %vm55, %v44, 0
  %59 = vmatprep.subr.bf16.mxu0 0
  %60 = vmatpush1.bf16.msra.mxu0 0
  %61 = vmatprep.subr.bf16.mxu0 0
  %62 = vmatpush1.bf16.msra.mxu0 0
  %63 = vmatprep.subr.bf16.mxu0 0
  %64 = vmatpush1.bf16.msra.mxu0 0
  %65 = vmatprep.subr.bf16.mxu0 0
  %66 = vmatpush1.bf16.msra.mxu0 0
  %67 = vmatprep.subr.bf16.mxu0 0
  %68 = vmatpush1.bf16.msra.mxu0 0
  %69 = vmatprep.subr.bf16.mxu0 0
  %70 = vmatpush1.bf16.msra.mxu0 0
  %71 = vmatprep.subr.bf16.mxu0 0
  %72 = vmatpush1.bf16.msra.mxu0 0
  %73 = vmatprep.subr.bf16.mxu0 %v52
  %74 = vmatpush1.bf16.msra.mxu0 %v51
  %75 = vmatprep.subr.bf16.mxu0 0
  %76 = vmatpush2.bf16.msra.mxu0 0
  %77 = vmatprep.subr.bf16.mxu0 0
  %78 = vmatpush2.bf16.msra.mxu0 0
  %79 = vmatprep.subr.bf16.mxu0 0
  %80 = vmatpush2.bf16.msra.mxu0 0
  %81 = vmatprep.subr.bf16.mxu0 0
  %82 = vmatpush2.bf16.msra.mxu0 0
  %83 = vmatprep.subr.bf16.mxu0 0
  %84 = vmatpush2.bf16.msra.mxu0 0
  %85 = vmatprep.subr.bf16.mxu0 0
  %86 = vmatpush2.bf16.msra.mxu0 0
  %87 = vmatprep.subr.bf16.mxu0 0
  %88 = vmatpush2.bf16.msra.mxu0 0
  %89 = vmatprep.subr.bf16.mxu0 0
  %90 = vmatpush2.bf16.msra.mxu0 0
  %91 = vmatprep.mubr.bf16.mxu0 0
  %92 = vmatmul.mubr.bf16.gmra.mxu0 %v57
  %v93 = vpop.f32.mrf.mxu0
  %v94 = vadd.f32 0.0, %v93
  %v95 = vpop.f32.mrf.mxu0
  %v96 = vadd.f32 0.0, %v95
  %v97 = vpop.f32.mrf.mxu0
  %v98 = vadd.f32 0.0, %v97
  %v99 = vpop.f32.mrf.mxu0
  %v100 = vadd.f32 0.0, %v99
  %101 = vdwg.mxu0
  %v102 = vadd.f32 %v32, %v94
  %v103 = vadd.f32 %v33, %v96
  %v104 = vadd.f32 %v34, %v98
  %v105 = vadd.f32 %v35, %v100
  %106 = vst [vmem:[#allocation2] sm:$0xff] %v102
  %107 = vst [vmem:[#allocation2 + $0x8] sm:$0xff] %v103
  %108 = vst [vmem:[#allocation2 + $0x10] sm:$0xff] %v104
  %109 = vst [vmem:[#allocation2 + $0x18] sm:$0xff] %v105
  // Predicated region
  $region30: #{net_need_name_forward.29} parent=0 // pred_check
    %p110 = pneg %p24
  $region31: #{net_need_name_forward.29} parent=0 // pred_check_branch
    %112 = sbr.rel (%p110) target = $region33
  $region32: #{net_need_name_forward.29} parent=0 // pred_region
    %v113 = vld [vmem:[#allocation2] sm:$0xff]
    %v114 = vld [vmem:[#allocation2 + $0x8] sm:$0xff]
    %v115 = vld [vmem:[#allocation2 + $0x10] sm:$0xff]
    %v116 = vld [vmem:[#allocation2 + $0x18] sm:$0xff]
    %v117 = vpack.c.bf16 %v115, %v113
    %v118 = vpack.c.bf16 %v116, %v114
    %v119 = vld [vmem:[%s3] sm:$0xff]
    %v120 = vld [vmem:[%s3 + $0x8] sm:$0xff]
    %v121 = vld [vmem:[%s3 + $0x10] sm:$0xff]
    %v122 = vld [vmem:[%s3 + $0x18] sm:$0xff]
    %v123 = vld [vmem:[%s3 + $0x20] sm:$0xff]
    %v124 = vld [vmem:[%s3 + $0x28] sm:$0xff]
    %v125 = vld [vmem:[%s3 + $0x30] sm:$0xff]
    %v126 = vld [vmem:[%s3 + $0x38] sm:$0xff]
    %v127 = vld [vmem:[%s3 + $0x40] sm:$0xff]
    %v128 = vld [vmem:[%s3 + $0x48] sm:$0xff]
    %v129 = vld [vmem:[%s3 + $0x50] sm:$0xff]
    %v130 = vld [vmem:[%s3 + $0x58] sm:$0xff]
    %v131 = vld [vmem:[%s3 + $0x60] sm:$0xff]
    %v132 = vld [vmem:[%s3 + $0x68] sm:$0xff]
    %v133 = vld [vmem:[%s3 + $0x70] sm:$0xff]
    %v134 = vld [vmem:[%s3 + $0x78] sm:$0xff]
    %v135 = vld [vmem:[%s3 + $0x80] sm:$0xff]
    %v136 = vld [vmem:[%s3 + $0x88] sm:$0xff]
    %v137 = vld [vmem:[%s3 + $0x90] sm:$0xff]
    %v138 = vld [vmem:[%s3 + $0x98] sm:$0xff]
    %v139 = vld [vmem:[%s3 + $0xa0] sm:$0xff]
    %v140 = vld [vmem:[%s3 + $0xa8] sm:$0xff]
    %v141 = vld [vmem:[%s3 + $0xb0] sm:$0xff]
    %v142 = vld [vmem:[%s3 + $0xb8] sm:$0xff]
    %v143 = vld [vmem:[%s3 + $0xc0] sm:$0xff]
    %v144 = vld [vmem:[%s3 + $0xc8] sm:$0xff]
    %v145 = vld [vmem:[%s3 + $0xd0] sm:$0xff]
    %v146 = vld [vmem:[%s3 + $0xd8] sm:$0xff]
    %v147 = vld [vmem:[%s3 + $0xe0] sm:$0xff]
    %v148 = vld [vmem:[%s3 + $0xe8] sm:$0xff]
    %v149 = vld [vmem:[%s3 + $0xf0] sm:$0xff]
    %v150 = vld [vmem:[%s3 + $0xf8] sm:$0xff]
    %v151 = vld [vmem:[%s2] sm:$0xff]
    %v152 = vld [vmem:[%s2 + $0x8] sm:$0xff]
    %v153 = vld [vmem:[%s4] sm:$0xff]
    %v154 = vld [vmem:[%s4 + $0x8] sm:$0xff]
    %v155 = vld [vmem:[%s4 + $0x10] sm:$0xff]
    %v156 = vld [vmem:[%s4 + $0x18] sm:$0xff]
    %v157 = vld [vmem:[%s4 + $0x20] sm:$0xff]
    %v158 = vld [vmem:[%s4 + $0x28] sm:$0xff]
    %v159 = vld [vmem:[%s4 + $0x30] sm:$0xff]
    %v160 = vld [vmem:[%s4 + $0x38] sm:$0xff]
    %v161 = vld [vmem:[%s4 + $0x40] sm:$0xff]
    %v162 = vld [vmem:[%s4 + $0x48] sm:$0xff]
    %v163 = vld [vmem:[%s4 + $0x50] sm:$0xff]
    %v164 = vld [vmem:[%s4 + $0x58] sm:$0xff]
    %v165 = vld [vmem:[%s4 + $0x60] sm:$0xff]
    %v166 = vld [vmem:[%s4 + $0x68] sm:$0xff]
    %v167 = vld [vmem:[%s4 + $0x70] sm:$0xff]
    %v168 = vld [vmem:[%s4 + $0x78] sm:$0xff]
    %v169 = vld [vmem:[%s4 + $0x80] sm:$0xff]
    %v170 = vld [vmem:[%s4 + $0x88] sm:$0xff]
    %v171 = vld [vmem:[%s4 + $0x90] sm:$0xff]
    %v172 = vld [vmem:[%s4 + $0x98] sm:$0xff]
    %v173 = vld [vmem:[%s4 + $0xa0] sm:$0xff]
    %v174 = vld [vmem:[%s4 + $0xa8] sm:$0xff]
    %v175 = vld [vmem:[%s4 + $0xb0] sm:$0xff]
    %v176 = vld [vmem:[%s4 + $0xb8] sm:$0xff]
    %v177 = vld [vmem:[%s4 + $0xc0] sm:$0xff]
    %v178 = vld [vmem:[%s4 + $0xc8] sm:$0xff]
    %v179 = vld [vmem:[%s4 + $0xd0] sm:$0xff]
    %v180 = vld [vmem:[%s4 + $0xd8] sm:$0xff]
    %v181 = vld [vmem:[%s4 + $0xe0] sm:$0xff]
    %v182 = vld [vmem:[%s4 + $0xe8] sm:$0xff]
    %v183 = vld [vmem:[%s4 + $0xf0] sm:$0xff]
    %v184 = vld [vmem:[%s4 + $0xf8] sm:$0xff]
    %v187 = vunpack.c.l.b16 %v151
    %v188 = vunpack.c.h.b16 %v151
    %v189 = vunpack.c.l.b16 %v152
    %v190 = vunpack.c.h.b16 %v152
    %v191 = vpack.c.b16 %v189, %v187
    %v192 = vpack.c.b16 %v190, %v188
    %v227 = vunpack.c.l.b16 %v153
    %v228 = vunpack.c.h.b16 %v153
    %v229 = vunpack.c.l.b16 %v154
    %v230 = vunpack.c.h.b16 %v154
    %v231 = vunpack.c.l.b16 %v155
    %v232 = vunpack.c.h.b16 %v155
    %v233 = vunpack.c.l.b16 %v156
    %v234 = vunpack.c.h.b16 %v156
    %v235 = vunpack.c.l.b16 %v157
    %v236 = vunpack.c.h.b16 %v157
    %v237 = vunpack.c.l.b16 %v158
    %v238 = vunpack.c.h.b16 %v158
    %v239 = vunpack.c.l.b16 %v159
    %v240 = vunpack.c.h.b16 %v159
    %v241 = vunpack.c.l.b16 %v160
    %v242 = vunpack.c.h.b16 %v160
    %v243 = vunpack.c.l.b16 %v161
    %v244 = vunpack.c.h.b16 %v161
    %v245 = vunpack.c.l.b16 %v162
    %v246 = vunpack.c.h.b16 %v162
    %v247 = vunpack.c.l.b16 %v163
    %v248 = vunpack.c.h.b16 %v163
    %v249 = vunpack.c.l.b16 %v164
    %v250 = vunpack.c.h.b16 %v164
    %v251 = vunpack.c.l.b16 %v165
    %v252 = vunpack.c.h.b16 %v165
    %v253 = vunpack.c.l.b16 %v166
    %v254 = vunpack.c.h.b16 %v166
    %v255 = vunpack.c.l.b16 %v167
    %v256 = vunpack.c.h.b16 %v167
    %v257 = vunpack.c.l.b16 %v168
    %v258 = vunpack.c.h.b16 %v168
    %v259 = vunpack.c.l.b16 %v169
    %v260 = vunpack.c.h.b16 %v169
    %v261 = vunpack.c.l.b16 %v170
    %v262 = vunpack.c.h.b16 %v170
    %v263 = vunpack.c.l.b16 %v171
    %v264 = vunpack.c.h.b16 %v171
    %v265 = vunpack.c.l.b16 %v172
    %v266 = vunpack.c.h.b16 %v172
    %v267 = vunpack.c.l.b16 %v173
    %v268 = vunpack.c.h.b16 %v173
    %v269 = vunpack.c.l.b16 %v174
    %v270 = vunpack.c.h.b16 %v174
    %v271 = vunpack.c.l.b16 %v175
    %v272 = vunpack.c.h.b16 %v175
    %v273 = vunpack.c.l.b16 %v176
    %v274 = vunpack.c.h.b16 %v176
    %v275 = vunpack.c.l.b16 %v177
    %v276 = vunpack.c.h.b16 %v177
    %v277 = vunpack.c.l.b16 %v178
    %v278 = vunpack.c.h.b16 %v178
    %v279 = vunpack.c.l.b16 %v179
    %v280 = vunpack.c.h.b16 %v179
    %v281 = vunpack.c.l.b16 %v180
    %v282 = vunpack.c.h.b16 %v180
    %v283 = vunpack.c.l.b16 %v181
    %v284 = vunpack.c.h.b16 %v181
    %v285 = vunpack.c.l.b16 %v182
    %v286 = vunpack.c.h.b16 %v182
    %v287 = vunpack.c.l.b16 %v183
    %v288 = vunpack.c.h.b16 %v183
    %v289 = vunpack.c.l.b16 %v184
    %v290 = vunpack.c.h.b16 %v184
    %v291 = vpack.c.b16 %v229, %v227
    %v292 = vpack.c.b16 %v230, %v228
    %v293 = vpack.c.b16 %v233, %v231
    %v294 = vpack.c.b16 %v234, %v232
    %v295 = vpack.c.b16 %v237, %v235
    %v296 = vpack.c.b16 %v238, %v236
    %v297 = vpack.c.b16 %v241, %v239
    %v298 = vpack.c.b16 %v242, %v240
    %v299 = vpack.c.b16 %v245, %v243
    %v300 = vpack.c.b16 %v246, %v244
    %v301 = vpack.c.b16 %v249, %v247
    %v302 = vpack.c.b16 %v250, %v248
    %v303 = vpack.c.b16 %v253, %v251
    %v304 = vpack.c.b16 %v254, %v252
    %v305 = vpack.c.b16 %v257, %v255
    %v306 = vpack.c.b16 %v258, %v256
    %v307 = vpack.c.b16 %v261, %v259
    %v308 = vpack.c.b16 %v262, %v260
    %v309 = vpack.c.b16 %v265, %v263
    %v310 = vpack.c.b16 %v266, %v264
    %v311 = vpack.c.b16 %v269, %v267
    %v312 = vpack.c.b16 %v270, %v268
    %v313 = vpack.c.b16 %v273, %v271
    %v314 = vpack.c.b16 %v274, %v272
    %v315 = vpack.c.b16 %v277, %v275
    %v316 = vpack.c.b16 %v278, %v276
    %v317 = vpack.c.b16 %v281, %v279
    %v318 = vpack.c.b16 %v282, %v280
    %v319 = vpack.c.b16 %v285, %v283
    %v320 = vpack.c.b16 %v286, %v284
    %v321 = vpack.c.b16 %v289, %v287
    %v322 = vpack.c.b16 %v290, %v288
    %355 = vmatprep.subr.bf16.mxu0 %v306
    %356 = vmatpush1.bf16.msra.mxu0 %v305
    %357 = vmatprep.subr.bf16.mxu0 %v304
    %358 = vmatpush1.bf16.msra.mxu0 %v303
    %359 = vmatprep.subr.bf16.mxu0 %v302
    %360 = vmatpush1.bf16.msra.mxu0 %v301
    %361 = vmatprep.subr.bf16.mxu0 %v300
    %362 = vmatpush1.bf16.msra.mxu0 %v299
    %363 = vmatprep.subr.bf16.mxu0 %v298
    %364 = vmatpush1.bf16.msra.mxu0 %v297
    %365 = vmatprep.subr.bf16.mxu0 %v296
    %366 = vmatpush1.bf16.msra.mxu0 %v295
    %367 = vmatprep.subr.bf16.mxu0 %v294
    %368 = vmatpush1.bf16.msra.mxu0 %v293
    %369 = vmatprep.subr.bf16.mxu0 %v292
    %370 = vmatpush1.bf16.msra.mxu0 %v291
    %371 = vmatprep.subr.bf16.mxu0 %v322
    %372 = vmatpush2.bf16.msra.mxu0 %v321
    %373 = vmatprep.subr.bf16.mxu0 %v320
    %374 = vmatpush2.bf16.msra.mxu0 %v319
    %375 = vmatprep.subr.bf16.mxu0 %v318
    %376 = vmatpush2.bf16.msra.mxu0 %v317
    %377 = vmatprep.subr.bf16.mxu0 %v316
    %378 = vmatpush2.bf16.msra.mxu0 %v315
    %379 = vmatprep.subr.bf16.mxu0 %v314
    %380 = vmatpush2.bf16.msra.mxu0 %v313
    %381 = vmatprep.subr.bf16.mxu0 %v312
    %382 = vmatpush2.bf16.msra.mxu0 %v311
    %383 = vmatprep.subr.bf16.mxu0 %v310
    %384 = vmatpush2.bf16.msra.mxu0 %v309
    %385 = vmatprep.subr.bf16.mxu0 %v308
    %386 = vmatpush2.bf16.msra.mxu0 %v307
    %387 = vmatprep.mubr.bf16.mxu0 %v192
    %388 = vmatmul.mubr.bf16.gmra.mxu0 %v191
    %v389 = vpop.f32.mrf.mxu0
    %v390 = vadd.f32 0.0, %v389
    %v391 = vpop.f32.mrf.mxu0
    %v392 = vadd.f32 0.0, %v391
    %v393 = vpop.f32.mrf.mxu0
    %v394 = vadd.f32 0.0, %v393
    %v395 = vpop.f32.mrf.mxu0
    %v396 = vadd.f32 0.0, %v395
    %397 = vdwg.mxu0
    %v430 = vunpack.c.l.b16 %v119
    %v431 = vunpack.c.h.b16 %v119
    %v432 = vunpack.c.l.b16 %v120
    %v433 = vunpack.c.h.b16 %v120
    %v434 = vunpack.c.l.b16 %v121
    %v435 = vunpack.c.h.b16 %v121
    %v436 = vunpack.c.l.b16 %v122
    %v437 = vunpack.c.h.b16 %v122
    %v438 = vunpack.c.l.b16 %v123
    %v439 = vunpack.c.h.b16 %v123
    %v440 = vunpack.c.l.b16 %v124
    %v441 = vunpack.c.h.b16 %v124
    %v442 = vunpack.c.l.b16 %v125
    %v443 = vunpack.c.h.b16 %v125
    %v444 = vunpack.c.l.b16 %v126
    %v445 = vunpack.c.h.b16 %v126
    %v446 = vunpack.c.l.b16 %v127
    %v447 = vunpack.c.h.b16 %v127
    %v448 = vunpack.c.l.b16 %v128
    %v449 = vunpack.c.h.b16 %v128
    %v450 = vunpack.c.l.b16 %v129
    %v451 = vunpack.c.h.b16 %v129
    %v452 = vunpack.c.l.b16 %v130
    %v453 = vunpack.c.h.b16 %v130
    %v454 = vunpack.c.l.b16 %v131
    %v455 = vunpack.c.h.b16 %v131
    %v456 = vunpack.c.l.b16 %v132
    %v457 = vunpack.c.h.b16 %v132
    %v458 = vunpack.c.l.b16 %v133
    %v459 = vunpack.c.h.b16 %v133
    %v460 = vunpack.c.l.b16 %v134
    %v461 = vunpack.c.h.b16 %v134
    %v462 = vunpack.c.l.b16 %v135
    %v463 = vunpack.c.h.b16 %v135
    %v464 = vunpack.c.l.b16 %v136
    %v465 = vunpack.c.h.b16 %v136
    %v466 = vunpack.c.l.b16 %v137
    %v467 = vunpack.c.h.b16 %v137
    %v468 = vunpack.c.l.b16 %v138
    %v469 = vunpack.c.h.b16 %v138
    %v470 = vunpack.c.l.b16 %v139
    %v471 = vunpack.c.h.b16 %v139
    %v472 = vunpack.c.l.b16 %v140
    %v473 = vunpack.c.h.b16 %v140
    %v474 = vunpack.c.l.b16 %v141
    %v475 = vunpack.c.h.b16 %v141
    %v476 = vunpack.c.l.b16 %v142
    %v477 = vunpack.c.h.b16 %v142
    %v478 = vunpack.c.l.b16 %v143
    %v479 = vunpack.c.h.b16 %v143
    %v480 = vunpack.c.l.b16 %v144
    %v481 = vunpack.c.h.b16 %v144
    %v482 = vunpack.c.l.b16 %v145
    %v483 = vunpack.c.h.b16 %v145
    %v484 = vunpack.c.l.b16 %v146
    %v485 = vunpack.c.h.b16 %v146
    %v486 = vunpack.c.l.b16 %v147
    %v487 = vunpack.c.h.b16 %v147
    %v488 = vunpack.c.l.b16 %v148
    %v489 = vunpack.c.h.b16 %v148
    %v490 = vunpack.c.l.b16 %v149
    %v491 = vunpack.c.h.b16 %v149
    %v492 = vunpack.c.l.b16 %v150
    %v493 = vunpack.c.h.b16 %v150
    %v494 = vpack.c.b16 %v432, %v430
    %v495 = vpack.c.b16 %v433, %v431
    %v496 = vpack.c.b16 %v436, %v434
    %v497 = vpack.c.b16 %v437, %v435
    %v498 = vpack.c.b16 %v440, %v438
    %v499 = vpack.c.b16 %v441, %v439
    %v500 = vpack.c.b16 %v444, %v442
    %v501 = vpack.c.b16 %v445, %v443
    %v502 = vpack.c.b16 %v448, %v446
    %v503 = vpack.c.b16 %v449, %v447
    %v504 = vpack.c.b16 %v452, %v450
    %v505 = vpack.c.b16 %v453, %v451
    %v506 = vpack.c.b16 %v456, %v454
    %v507 = vpack.c.b16 %v457, %v455
    %v508 = vpack.c.b16 %v460, %v458
    %v509 = vpack.c.b16 %v461, %v459
    %v510 = vpack.c.b16 %v464, %v462
    %v511 = vpack.c.b16 %v465, %v463
    %v512 = vpack.c.b16 %v468, %v466
    %v513 = vpack.c.b16 %v469, %v467
    %v514 = vpack.c.b16 %v472, %v470
    %v515 = vpack.c.b16 %v473, %v471
    %v516 = vpack.c.b16 %v476, %v474
    %v517 = vpack.c.b16 %v477, %v475
    %v518 = vpack.c.b16 %v480, %v478
    %v519 = vpack.c.b16 %v481, %v479
    %v520 = vpack.c.b16 %v484, %v482
    %v521 = vpack.c.b16 %v485, %v483
    %v522 = vpack.c.b16 %v488, %v486
    %v523 = vpack.c.b16 %v489, %v487
    %v524 = vpack.c.b16 %v492, %v490
    %v525 = vpack.c.b16 %v493, %v491
    %558 = vmatprep.subr.bf16.mxu0 %v509
    %559 = vmatpush1.bf16.msra.mxu0 %v508
    %560 = vmatprep.subr.bf16.mxu0 %v507
    %561 = vmatpush1.bf16.msra.mxu0 %v506
    %562 = vmatprep.subr.bf16.mxu0 %v505
    %563 = vmatpush1.bf16.msra.mxu0 %v504
    %564 = vmatprep.subr.bf16.mxu0 %v503
    %565 = vmatpush1.bf16.msra.mxu0 %v502
    %566 = vmatprep.subr.bf16.mxu0 %v501
    %567 = vmatpush1.bf16.msra.mxu0 %v500
    %568 = vmatprep.subr.bf16.mxu0 %v499
    %569 = vmatpush1.bf16.msra.mxu0 %v498
    %570 = vmatprep.subr.bf16.mxu0 %v497
    %571 = vmatpush1.bf16.msra.mxu0 %v496
    %572 = vmatprep.subr.bf16.mxu0 %v495
    %573 = vmatpush1.bf16.msra.mxu0 %v494
    %574 = vmatprep.subr.bf16.mxu0 %v525
    %575 = vmatpush2.bf16.msra.mxu0 %v524
    %576 = vmatprep.subr.bf16.mxu0 %v523
    %577 = vmatpush2.bf16.msra.mxu0 %v522
    %578 = vmatprep.subr.bf16.mxu0 %v521
    %579 = vmatpush2.bf16.msra.mxu0 %v520
    %580 = vmatprep.subr.bf16.mxu0 %v519
    %581 = vmatpush2.bf16.msra.mxu0 %v518
    %582 = vmatprep.subr.bf16.mxu0 %v517
    %583 = vmatpush2.bf16.msra.mxu0 %v516
    %584 = vmatprep.subr.bf16.mxu0 %v515
    %585 = vmatpush2.bf16.msra.mxu0 %v514
    %586 = vmatprep.subr.bf16.mxu0 %v513
    %587 = vmatpush2.bf16.msra.mxu0 %v512
    %588 = vmatprep.subr.bf16.mxu0 %v511
    %589 = vmatpush2.bf16.msra.mxu0 %v510
    %590 = vmatprep.mubr.bf16.mxu0 %v118
    %591 = vmatmul.mubr.bf16.gmra.mxu0 %v117
    %v592 = vpop.f32.mrf.mxu0
    %v593 = vadd.f32 %v390, %v592
    %v594 = vpop.f32.mrf.mxu0
    %v595 = vadd.f32 %v392, %v594
    %v596 = vpop.f32.mrf.mxu0
    %v597 = vadd.f32 %v394, %v596
    %v598 = vpop.f32.mrf.mxu0
    %v599 = vadd.f32 %v396, %v598
    %600 = vdwg.mxu0
    %v601 = vld [vmem:[%s5] sm:$0x3]
    %v603 = vlaneseq
    %v604 = vshrl.u32 %v603, 7
    %v605 = vsub.s32 0, %v604
    %v606 = vrot.slane %v601, %v605
    %v607 = vlaneseq
    %v608 = vshrl.u32 %v607, 7
    %v609 = vsub.s32 1, %v608
    %v610 = vrot.slane %v601, %v609
    %v613 = vadd.f32 %v593, %v606
    %v614 = vadd.f32 %v595, %v610
    %v615 = vadd.f32 %v597, %v606
    %v616 = vadd.f32 %v599, %v610
    %v617 = vmax.f32 %v613, 0.0
    %v618 = vmax.f32 %v614, 0.0
    %v619 = vmax.f32 %v615, 0.0
    %v620 = vmax.f32 %v616, 0.0
    %v621 = vpack.c.bf16 %v619, %v617
    %v622 = vpack.c.bf16 %v620, %v618
    %v625 = vunpack.c.l.b16 %v621
    %v626 = vunpack.c.l.b16 %v622
    %v627 = vunpack.c.h.b16 %v621
    %v628 = vunpack.c.h.b16 %v622
    %v629 = vpack.c.b16 %v626, %v625
    %v630 = vpack.c.b16 %v628, %v627
    %633 = vst [vmem:[%s6] sm:$0xff] %v629
    %634 = vst [vmem:[%s6 + $0x8] sm:$0xff] %v630
  $region33: #{net_need_name_forward.29} parent=0 // pred_fallthru
    _
  // Predicated region
  $region34: #{net_need_name_forward.29} parent=0 // pred_check
    _
  $region35: #{net_need_name_forward.29} parent=0 // pred_check_branch
    %636 = sbr.rel (0) target = $region37
  $region36: #{net_need_name_forward.29} parent=0 // pred_region
    _
  $region37: #{net_need_name_forward.29} parent=0 // pred_fallthru
    _
  // Predicated region
  $region38: #{net_need_name_forward.29} parent=0 // pred_check
    _
  $region39: #{net_need_name_forward.29} parent=0 // pred_check_branch
    %638 = sbr.rel (0) target = $region41
  $region40: #{net_need_name_forward.29} parent=0 // pred_region
    _
  $region41: #{net_need_name_forward.29} parent=0 // pred_fallthru
    _

// kernel: net_need_name_forward.34
$region0: #{net_need_name_forward.34}
  #allocation0 [shape = 'u32[]', space=smem, size = 0x4, offset = 0x4, fixed_abs, tag = 'smem constant byte address 0x4 - core index']
  #allocation1 [shape = 'u32[144,128]{1,0:T(1,128)}', space=vmem, size = 0x12000, scoped, tag = 'internal scratch']
  #allocation2 [shape = 'f32[8,256]{1,0:T(8,128)}', space=vmem, size = 0x2000, scoped, tag = 'scratch operand']
  %s0 = inlined_call_operand.vmem [shape: bf16[8,8], index: 0, kind: input, shape index: {}]
  %s1 = inlined_call_operand.vmem [shape: bf16[8,256], index: 1, kind: input, shape index: {}]
  %s2 = inlined_call_operand.vmem [shape: bf16[256,128], index: 2, kind: input, shape index: {}]
  %s3 = inlined_call_operand.vmem [shape: f32[1,128], index: 3, kind: input, shape index: {}]
  %s4 = inlined_call_operand.vmem [shape: bf16[8,128], index: 4, kind: output, shape index: {}]
  %s5 = sld [smem:[#allocation0]]
  $region34: #{net_need_name_forward.34} parent=0
    _
  %s7 = ssub.s32 1, %s5
  %s8 = scalar_select 0, %s7, %s5
  // Predicated region
  $region2: #{net_need_name_forward.34} parent=0 // pred_check
    _
  $region3: #{net_need_name_forward.34} parent=0 // pred_check_branch
    %10 = sbr.rel (0) target = $region5
  $region4: #{net_need_name_forward.34} parent=0 // pred_region
    _
  $region5: #{net_need_name_forward.34} parent=0 // pred_fallthru
    _
  // Predicated region
  $region6: #{net_need_name_forward.34} parent=0 // pred_check
    _
  $region7: #{net_need_name_forward.34} parent=0 // pred_check_branch
    %12 = sbr.rel (0) target = $region9
  $region8: #{net_need_name_forward.34} parent=0 // pred_region
    _
  $region9: #{net_need_name_forward.34} parent=0 // pred_fallthru
    _
  // Predicated region
  $region10: #{net_need_name_forward.34} parent=0 // pred_check
    _
  $region11: #{net_need_name_forward.34} parent=0 // pred_check_branch
    %14 = sbr.rel (0) target = $region13
  $region12: #{net_need_name_forward.34} parent=0 // pred_region
    _
  $region13: #{net_need_name_forward.34} parent=0 // pred_fallthru
    _
  // Predicated region
  $region14: #{net_need_name_forward.34} parent=0 // pred_check
    _
  $region15: #{net_need_name_forward.34} parent=0 // pred_check_branch
    %16 = sbr.rel (0) target = $region17
  $region16: #{net_need_name_forward.34} parent=0 // pred_region
    _
  $region17: #{net_need_name_forward.34} parent=0 // pred_fallthru
    _
  %p18 = scmp.eq.s32.totalorder 0, 0
  // Predicated region
  $region18: #{net_need_name_forward.34} parent=0 // pred_check
    %p19 = pneg %p18
  $region19: #{net_need_name_forward.34} parent=0 // pred_check_branch
    %21 = sbr.rel (%p19) target = $region21
  $region20: #{net_need_name_forward.34} parent=0 // pred_region
    %22 = vst [vmem:[#allocation2] sm:$0xff] 0.0
    %23 = vst [vmem:[#allocation2 + $0x8] sm:$0xff] 0.0
  $region21: #{net_need_name_forward.34} parent=0 // pred_fallthru
    _
  %v24 = vld [vmem:[#allocation2] sm:$0xff]
  %v25 = vld [vmem:[#allocation2 + $0x8] sm:$0xff]
  %v26 = vld [vmem:[%s0] sm:$0xf]
  %v27 = vld [vmem:[%s1] sm:$0xff]
  %v29 = vunpack.c.l.b16 %v27
  %v30 = vunpack.c.h.b16 %v27
  %v31 = vpack.c.b16 %v29, %v29
  %v32 = vpack.c.b16 %v30, %v30
  %vm33 = vcmask 64512
  %v35 = vsel %vm33, %v26, 0
  %vm37 = vcmask 1043456
  %v39 = vsel %vm37, %v31, 0
  %v42 = vsel %vm37, %v32, 0
  %44 = vmatprep.subr.bf16.mxu0 0
  %45 = vmatpush1.bf16.msra.mxu0 0
  %46 = vmatprep.subr.bf16.mxu0 0
  %47 = vmatpush1.bf16.msra.mxu0 0
  %48 = vmatprep.subr.bf16.mxu0 0
  %49 = vmatpush1.bf16.msra.mxu0 0
  %50 = vmatprep.subr.bf16.mxu0 0
  %51 = vmatpush1.bf16.msra.mxu0 0
  %52 = vmatprep.subr.bf16.mxu0 0
  %53 = vmatpush1.bf16.msra.mxu0 0
  %54 = vmatprep.subr.bf16.mxu0 0
  %55 = vmatpush1.bf16.msra.mxu0 0
  %56 = vmatprep.subr.bf16.mxu0 0
  %57 = vmatpush1.bf16.msra.mxu0 0
  %58 = vmatprep.subr.bf16.mxu0 %v42
  %59 = vmatpush1.bf16.msra.mxu0 %v39
  %60 = vmatprep.subr.bf16.mxu0 0
  %61 = vmatpush2.bf16.msra.mxu0 0
  %62 = vmatprep.subr.bf16.mxu0 0
  %63 = vmatpush2.bf16.msra.mxu0 0
  %64 = vmatprep.subr.bf16.mxu0 0
  %65 = vmatpush2.bf16.msra.mxu0 0
  %66 = vmatprep.subr.bf16.mxu0 0
  %67 = vmatpush2.bf16.msra.mxu0 0
  %68 = vmatprep.subr.bf16.mxu0 0
  %69 = vmatpush2.bf16.msra.mxu0 0
  %70 = vmatprep.subr.bf16.mxu0 0
  %71 = vmatpush2.bf16.msra.mxu0 0
  %72 = vmatprep.subr.bf16.mxu0 0
  %73 = vmatpush2.bf16.msra.mxu0 0
  %74 = vmatprep.subr.bf16.mxu0 0
  %75 = vmatpush2.bf16.msra.mxu0 0
  %76 = vmatprep.mubr.bf16.mxu0 0
  %77 = vmatmul.mubr.bf16.gmra.mxu0 %v35
  %v78 = vpop.f32.mrf.mxu0
  %v79 = vadd.f32 0.0, %v78
  %v80 = vpop.f32.mrf.mxu0
  %v81 = vadd.f32 0.0, %v80
  %v82 = vpop.f32.mrf.mxu0
  %v83 = vpop.f32.mrf.mxu0
  %84 = vdwg.mxu0
  %v85 = vadd.f32 %v24, %v79
  %v86 = vadd.f32 %v25, %v81
  %87 = vst [vmem:[#allocation2] sm:$0xff] %v85
  %88 = vst [vmem:[#allocation2 + $0x8] sm:$0xff] %v86
  // Predicated region
  $region22: #{net_need_name_forward.34} parent=0 // pred_check
    %p89 = pneg %p18
  $region23: #{net_need_name_forward.34} parent=0 // pred_check_branch
    %91 = sbr.rel (%p89) target = $region25
  $region24: #{net_need_name_forward.34} parent=0 // pred_region
    %v92 = vld [vmem:[#allocation2] sm:$0xff]
    %v93 = vld [vmem:[#allocation2 + $0x8] sm:$0xff]
    %v94 = vpack.c.bf16 %v92, %v92
    %v95 = vpack.c.bf16 %v93, %v93
    %v96 = vld [vmem:[%s2] sm:$0xf]
    %v97 = vld [vmem:[%s2 + $0x4] sm:$0xf]
    %v98 = vld [vmem:[%s2 + $0x8] sm:$0xf]
    %v99 = vld [vmem:[%s2 + $0xc] sm:$0xf]
    %v100 = vld [vmem:[%s2 + $0x10] sm:$0xf]
    %v101 = vld [vmem:[%s2 + $0x14] sm:$0xf]
    %v102 = vld [vmem:[%s2 + $0x18] sm:$0xf]
    %v103 = vld [vmem:[%s2 + $0x1c] sm:$0xf]
    %v104 = vld [vmem:[%s2 + $0x20] sm:$0xf]
    %v105 = vld [vmem:[%s2 + $0x24] sm:$0xf]
    %v106 = vld [vmem:[%s2 + $0x28] sm:$0xf]
    %v107 = vld [vmem:[%s2 + $0x2c] sm:$0xf]
    %v108 = vld [vmem:[%s2 + $0x30] sm:$0xf]
    %v109 = vld [vmem:[%s2 + $0x34] sm:$0xf]
    %v110 = vld [vmem:[%s2 + $0x38] sm:$0xf]
    %v111 = vld [vmem:[%s2 + $0x3c] sm:$0xf]
    %v112 = vld [vmem:[%s2 + $0x40] sm:$0xf]
    %v113 = vld [vmem:[%s2 + $0x44] sm:$0xf]
    %v114 = vld [vmem:[%s2 + $0x48] sm:$0xf]
    %v115 = vld [vmem:[%s2 + $0x4c] sm:$0xf]
    %v116 = vld [vmem:[%s2 + $0x50] sm:$0xf]
    %v117 = vld [vmem:[%s2 + $0x54] sm:$0xf]
    %v118 = vld [vmem:[%s2 + $0x58] sm:$0xf]
    %v119 = vld [vmem:[%s2 + $0x5c] sm:$0xf]
    %v120 = vld [vmem:[%s2 + $0x60] sm:$0xf]
    %v121 = vld [vmem:[%s2 + $0x64] sm:$0xf]
    %v122 = vld [vmem:[%s2 + $0x68] sm:$0xf]
    %v123 = vld [vmem:[%s2 + $0x6c] sm:$0xf]
    %v124 = vld [vmem:[%s2 + $0x70] sm:$0xf]
    %v125 = vld [vmem:[%s2 + $0x74] sm:$0xf]
    %v126 = vld [vmem:[%s2 + $0x78] sm:$0xf]
    %v127 = vld [vmem:[%s2 + $0x7c] sm:$0xf]
    %v128 = vld [vmem:[%s3] sm:$0x1]
    %v130 = vlaneseq
    %v131 = vshrl.u32 %v130, 7
    %v132 = vsub.s32 0, %v131
    %v133 = vrot.slane %v128, %v132
    %v167 = vunpack.c.l.b16 %v96
    %v168 = vunpack.c.l.b16 %v97
    %v169 = vunpack.c.l.b16 %v98
    %v170 = vunpack.c.l.b16 %v99
    %v171 = vunpack.c.l.b16 %v100
    %v172 = vunpack.c.l.b16 %v101
    %v173 = vunpack.c.l.b16 %v102
    %v174 = vunpack.c.l.b16 %v103
    %v175 = vunpack.c.l.b16 %v104
    %v176 = vunpack.c.l.b16 %v105
    %v177 = vunpack.c.l.b16 %v106
    %v178 = vunpack.c.l.b16 %v107
    %v179 = vunpack.c.l.b16 %v108
    %v180 = vunpack.c.l.b16 %v109
    %v181 = vunpack.c.l.b16 %v110
    %v182 = vunpack.c.l.b16 %v111
    %v183 = vunpack.c.l.b16 %v112
    %v184 = vunpack.c.l.b16 %v113
    %v185 = vunpack.c.l.b16 %v114
    %v186 = vunpack.c.l.b16 %v115
    %v187 = vunpack.c.l.b16 %v116
    %v188 = vunpack.c.l.b16 %v117
    %v189 = vunpack.c.l.b16 %v118
    %v190 = vunpack.c.l.b16 %v119
    %v191 = vunpack.c.l.b16 %v120
    %v192 = vunpack.c.l.b16 %v121
    %v193 = vunpack.c.l.b16 %v122
    %v194 = vunpack.c.l.b16 %v123
    %v195 = vunpack.c.l.b16 %v124
    %v196 = vunpack.c.l.b16 %v125
    %v197 = vunpack.c.l.b16 %v126
    %v198 = vunpack.c.l.b16 %v127
    %v199 = vpack.c.b16 %v168, %v167
    %v200 = vpack.c.b16 %v170, %v169
    %v201 = vpack.c.b16 %v172, %v171
    %v202 = vpack.c.b16 %v174, %v173
    %v203 = vpack.c.b16 %v176, %v175
    %v204 = vpack.c.b16 %v178, %v177
    %v205 = vpack.c.b16 %v180, %v179
    %v206 = vpack.c.b16 %v182, %v181
    %v207 = vpack.c.b16 %v184, %v183
    %v208 = vpack.c.b16 %v186, %v185
    %v209 = vpack.c.b16 %v188, %v187
    %v210 = vpack.c.b16 %v190, %v189
    %v211 = vpack.c.b16 %v192, %v191
    %v212 = vpack.c.b16 %v194, %v193
    %v213 = vpack.c.b16 %v196, %v195
    %v214 = vpack.c.b16 %v198, %v197
    %231 = vmatprep.subr.bf16.mxu0 0
    %232 = vmatpush1.bf16.msra.mxu0 %v206
    %233 = vmatprep.subr.bf16.mxu0 0
    %234 = vmatpush1.bf16.msra.mxu0 %v205
    %235 = vmatprep.subr.bf16.mxu0 0
    %236 = vmatpush1.bf16.msra.mxu0 %v204
    %237 = vmatprep.subr.bf16.mxu0 0
    %238 = vmatpush1.bf16.msra.mxu0 %v203
    %239 = vmatprep.subr.bf16.mxu0 0
    %240 = vmatpush1.bf16.msra.mxu0 %v202
    %241 = vmatprep.subr.bf16.mxu0 0
    %242 = vmatpush1.bf16.msra.mxu0 %v201
    %243 = vmatprep.subr.bf16.mxu0 0
    %244 = vmatpush1.bf16.msra.mxu0 %v200
    %245 = vmatprep.subr.bf16.mxu0 0
    %246 = vmatpush1.bf16.msra.mxu0 %v199
    %247 = vmatprep.subr.bf16.mxu0 0
    %248 = vmatpush2.bf16.msra.mxu0 %v214
    %249 = vmatprep.subr.bf16.mxu0 0
    %250 = vmatpush2.bf16.msra.mxu0 %v213
    %251 = vmatprep.subr.bf16.mxu0 0
    %252 = vmatpush2.bf16.msra.mxu0 %v212
    %253 = vmatprep.subr.bf16.mxu0 0
    %254 = vmatpush2.bf16.msra.mxu0 %v211
    %255 = vmatprep.subr.bf16.mxu0 0
    %256 = vmatpush2.bf16.msra.mxu0 %v210
    %257 = vmatprep.subr.bf16.mxu0 0
    %258 = vmatpush2.bf16.msra.mxu0 %v209
    %259 = vmatprep.subr.bf16.mxu0 0
    %260 = vmatpush2.bf16.msra.mxu0 %v208
    %261 = vmatprep.subr.bf16.mxu0 0
    %262 = vmatpush2.bf16.msra.mxu0 %v207
    %263 = vmatprep.mubr.bf16.mxu0 %v95
    %264 = vmatmul.mubr.bf16.gmra.mxu0 %v94
    %v265 = vpop.f32.mrf.mxu0
    %v266 = vadd.f32 %v133, %v265
    %v267 = vpop.f32.mrf.mxu0
    %v268 = vpop.f32.mrf.mxu0
    %v269 = vpop.f32.mrf.mxu0
    %270 = vdwg.mxu0
    %v271 = vpack.c.bf16 %v266, %v266
    %272 = vst [vmem:[%s4] sm:$0xf] %v271
  $region25: #{net_need_name_forward.34} parent=0 // pred_fallthru
    _
  // Predicated region
  $region26: #{net_need_name_forward.34} parent=0 // pred_check
    _
  $region27: #{net_need_name_forward.34} parent=0 // pred_check_branch
    %274 = sbr.rel (0) target = $region29
  $region28: #{net_need_name_forward.34} parent=0 // pred_region
    _
  $region29: #{net_need_name_forward.34} parent=0 // pred_fallthru
    _
  // Predicated region
  $region30: #{net_need_name_forward.34} parent=0 // pred_check
    _
  $region31: #{net_need_name_forward.34} parent=0 // pred_check_branch
    %276 = sbr.rel (0) target = $region33
  $region32: #{net_need_name_forward.34} parent=0 // pred_region
    _
  $region33: #{net_need_name_forward.34} parent=0 // pred_fallthru
    _

// kernel: net_need_name_forward.35
$region0: #{net_need_name_forward.35}
  #allocation0 [shape = 'u32[]', space=smem, size = 0x4, offset = 0x4, fixed_abs, tag = 'smem constant byte address 0x4 - core index']
  #allocation1 [shape = 'u32[144,128]{1,0:T(1,128)}', space=vmem, size = 0x12000, scoped, tag = 'internal scratch']
  #allocation2 [shape = 'f32[8,128]{1,0:T(8,128)}', space=vmem, size = 0x1000, scoped, tag = 'scratch operand']
  %s0 = inlined_call_operand.vmem [shape: bf16[8,8], index: 0, kind: input, shape index: {}]
  %s1 = inlined_call_operand.vmem [shape: bf16[8,128], index: 1, kind: input, shape index: {}, may-alias: {1,2}]
  %s2 = inlined_call_operand.vmem [shape: bf16[8,128], index: 2, kind: input, shape index: {}, may-alias: {1,2}]
  %s3 = inlined_call_operand.vmem [shape: bf16[128,128], index: 3, kind: input, shape index: {}]
  %s4 = inlined_call_operand.vmem [shape: bf16[128,128], index: 4, kind: input, shape index: {}]
  %s5 = inlined_call_operand.vmem [shape: f32[1,128], index: 5, kind: input, shape index: {}]
  %s6 = inlined_call_operand.vmem [shape: f32[8,128], index: 6, kind: output, shape index: {}]
  %s7 = sld [smem:[#allocation0]]
  $region42: #{net_need_name_forward.35} parent=0
    _
  %s9 = ssub.s32 1, %s7
  %s10 = scalar_select 0, %s9, %s7
  // Predicated region
  $region2: #{net_need_name_forward.35} parent=0 // pred_check
    _
  $region3: #{net_need_name_forward.35} parent=0 // pred_check_branch
    %12 = sbr.rel (0) target = $region5
  $region4: #{net_need_name_forward.35} parent=0 // pred_region
    _
  $region5: #{net_need_name_forward.35} parent=0 // pred_fallthru
    _
  // Predicated region
  $region6: #{net_need_name_forward.35} parent=0 // pred_check
    _
  $region7: #{net_need_name_forward.35} parent=0 // pred_check_branch
    %14 = sbr.rel (0) target = $region9
  $region8: #{net_need_name_forward.35} parent=0 // pred_region
    _
  $region9: #{net_need_name_forward.35} parent=0 // pred_fallthru
    _
  // Predicated region
  $region10: #{net_need_name_forward.35} parent=0 // pred_check
    _
  $region11: #{net_need_name_forward.35} parent=0 // pred_check_branch
    %16 = sbr.rel (0) target = $region13
  $region12: #{net_need_name_forward.35} parent=0 // pred_region
    _
  $region13: #{net_need_name_forward.35} parent=0 // pred_fallthru
    _
  // Predicated region
  $region14: #{net_need_name_forward.35} parent=0 // pred_check
    _
  $region15: #{net_need_name_forward.35} parent=0 // pred_check_branch
    %18 = sbr.rel (0) target = $region17
  $region16: #{net_need_name_forward.35} parent=0 // pred_region
    _
  $region17: #{net_need_name_forward.35} parent=0 // pred_fallthru
    _
  // Predicated region
  $region18: #{net_need_name_forward.35} parent=0 // pred_check
    _
  $region19: #{net_need_name_forward.35} parent=0 // pred_check_branch
    %20 = sbr.rel (0) target = $region21
  $region20: #{net_need_name_forward.35} parent=0 // pred_region
    _
  $region21: #{net_need_name_forward.35} parent=0 // pred_fallthru
    _
  // Predicated region
  $region22: #{net_need_name_forward.35} parent=0 // pred_check
    _
  $region23: #{net_need_name_forward.35} parent=0 // pred_check_branch
    %22 = sbr.rel (0) target = $region25
  $region24: #{net_need_name_forward.35} parent=0 // pred_region
    _
  $region25: #{net_need_name_forward.35} parent=0 // pred_fallthru
    _
  %p24 = scmp.eq.s32.totalorder 0, 0
  // Predicated region
  $region26: #{net_need_name_forward.35} parent=0 // pred_check
    %p25 = pneg %p24
  $region27: #{net_need_name_forward.35} parent=0 // pred_check_branch
    %27 = sbr.rel (%p25) target = $region29
  $region28: #{net_need_name_forward.35} parent=0 // pred_region
    %28 = vst [vmem:[#allocation2] sm:$0xff] 0.0
  $region29: #{net_need_name_forward.35} parent=0 // pred_fallthru
    _
  %v29 = vld [vmem:[#allocation2] sm:$0xff]
  %v30 = vld [vmem:[%s0] sm:$0xf]
  %v31 = vld [vmem:[%s1] sm:$0xf]
  %vm32 = vcmask 64512
  %v34 = vsel %vm32, %v30, 0
  %vm36 = vcmask 1043456
  %v38 = vsel %vm36, %v31, 0
  %40 = vmatprep.subr.bf16.mxu0 0
  %41 = vmatpush1.bf16.msra.mxu0 0
  %42 = vmatprep.subr.bf16.mxu0 0
  %43 = vmatpush1.bf16.msra.mxu0 0
  %44 = vmatprep.subr.bf16.mxu0 0
  %45 = vmatpush1.bf16.msra.mxu0 0
  %46 = vmatprep.subr.bf16.mxu0 0
  %47 = vmatpush1.bf16.msra.mxu0 0
  %48 = vmatprep.subr.bf16.mxu0 0
  %49 = vmatpush1.bf16.msra.mxu0 0
  %50 = vmatprep.subr.bf16.mxu0 0
  %51 = vmatpush1.bf16.msra.mxu0 0
  %52 = vmatprep.subr.bf16.mxu0 0
  %53 = vmatpush1.bf16.msra.mxu0 0
  %54 = vmatprep.subr.bf16.mxu0 0
  %55 = vmatpush1.bf16.msra.mxu0 %v38
  %56 = vmatprep.subr.bf16.mxu0 0
  %57 = vmatpush2.bf16.msra.mxu0 0
  %58 = vmatprep.subr.bf16.mxu0 0
  %59 = vmatpush2.bf16.msra.mxu0 0
  %60 = vmatprep.subr.bf16.mxu0 0
  %61 = vmatpush2.bf16.msra.mxu0 0
  %62 = vmatprep.subr.bf16.mxu0 0
  %63 = vmatpush2.bf16.msra.mxu0 0
  %64 = vmatprep.subr.bf16.mxu0 0
  %65 = vmatpush2.bf16.msra.mxu0 0
  %66 = vmatprep.subr.bf16.mxu0 0
  %67 = vmatpush2.bf16.msra.mxu0 0
  %68 = vmatprep.subr.bf16.mxu0 0
  %69 = vmatpush2.bf16.msra.mxu0 0
  %70 = vmatprep.subr.bf16.mxu0 0
  %71 = vmatpush2.bf16.msra.mxu0 0
  %72 = vmatprep.mubr.bf16.mxu0 0
  %73 = vmatmul.mubr.bf16.gmra.mxu0 %v34
  %v74 = vpop.f32.mrf.mxu0
  %v75 = vadd.f32 0.0, %v74
  %v76 = vpop.f32.mrf.mxu0
  %v77 = vpop.f32.mrf.mxu0
  %v78 = vpop.f32.mrf.mxu0
  %79 = vdwg.mxu0
  %v80 = vadd.f32 %v29, %v75
  %81 = vst [vmem:[#allocation2] sm:$0xff] %v80
  // Predicated region
  $region30: #{net_need_name_forward.35} parent=0 // pred_check
    %p82 = pneg %p24
  $region31: #{net_need_name_forward.35} parent=0 // pred_check_branch
    %84 = sbr.rel (%p82) target = $region33
  $region32: #{net_need_name_forward.35} parent=0 // pred_region
    %v85 = vld [vmem:[#allocation2] sm:$0xff]
    %v86 = vpack.c.bf16 %v85, %v85
    %v87 = vld [vmem:[%s3] sm:$0xf]
    %v88 = vld [vmem:[%s3 + $0x4] sm:$0xf]
    %v89 = vld [vmem:[%s3 + $0x8] sm:$0xf]
    %v90 = vld [vmem:[%s3 + $0xc] sm:$0xf]
    %v91 = vld [vmem:[%s3 + $0x10] sm:$0xf]
    %v92 = vld [vmem:[%s3 + $0x14] sm:$0xf]
    %v93 = vld [vmem:[%s3 + $0x18] sm:$0xf]
    %v94 = vld [vmem:[%s3 + $0x1c] sm:$0xf]
    %v95 = vld [vmem:[%s3 + $0x20] sm:$0xf]
    %v96 = vld [vmem:[%s3 + $0x24] sm:$0xf]
    %v97 = vld [vmem:[%s3 + $0x28] sm:$0xf]
    %v98 = vld [vmem:[%s3 + $0x2c] sm:$0xf]
    %v99 = vld [vmem:[%s3 + $0x30] sm:$0xf]
    %v100 = vld [vmem:[%s3 + $0x34] sm:$0xf]
    %v101 = vld [vmem:[%s3 + $0x38] sm:$0xf]
    %v102 = vld [vmem:[%s3 + $0x3c] sm:$0xf]
    %v103 = vld [vmem:[%s2] sm:$0xf]
    %v104 = vld [vmem:[%s4] sm:$0xf]
    %v105 = vld [vmem:[%s4 + $0x4] sm:$0xf]
    %v106 = vld [vmem:[%s4 + $0x8] sm:$0xf]
    %v107 = vld [vmem:[%s4 + $0xc] sm:$0xf]
    %v108 = vld [vmem:[%s4 + $0x10] sm:$0xf]
    %v109 = vld [vmem:[%s4 + $0x14] sm:$0xf]
    %v110 = vld [vmem:[%s4 + $0x18] sm:$0xf]
    %v111 = vld [vmem:[%s4 + $0x1c] sm:$0xf]
    %v112 = vld [vmem:[%s4 + $0x20] sm:$0xf]
    %v113 = vld [vmem:[%s4 + $0x24] sm:$0xf]
    %v114 = vld [vmem:[%s4 + $0x28] sm:$0xf]
    %v115 = vld [vmem:[%s4 + $0x2c] sm:$0xf]
    %v116 = vld [vmem:[%s4 + $0x30] sm:$0xf]
    %v117 = vld [vmem:[%s4 + $0x34] sm:$0xf]
    %v118 = vld [vmem:[%s4 + $0x38] sm:$0xf]
    %v119 = vld [vmem:[%s4 + $0x3c] sm:$0xf]
    %v136 = vunpack.c.l.b16 %v104
    %v137 = vunpack.c.l.b16 %v105
    %v138 = vunpack.c.l.b16 %v106
    %v139 = vunpack.c.l.b16 %v107
    %v140 = vunpack.c.l.b16 %v108
    %v141 = vunpack.c.l.b16 %v109
    %v142 = vunpack.c.l.b16 %v110
    %v143 = vunpack.c.l.b16 %v111
    %v144 = vunpack.c.l.b16 %v112
    %v145 = vunpack.c.l.b16 %v113
    %v146 = vunpack.c.l.b16 %v114
    %v147 = vunpack.c.l.b16 %v115
    %v148 = vunpack.c.l.b16 %v116
    %v149 = vunpack.c.l.b16 %v117
    %v150 = vunpack.c.l.b16 %v118
    %v151 = vunpack.c.l.b16 %v119
    %v152 = vpack.c.b16 %v137, %v136
    %v153 = vpack.c.b16 %v139, %v138
    %v154 = vpack.c.b16 %v141, %v140
    %v155 = vpack.c.b16 %v143, %v142
    %v156 = vpack.c.b16 %v145, %v144
    %v157 = vpack.c.b16 %v147, %v146
    %v158 = vpack.c.b16 %v149, %v148
    %v159 = vpack.c.b16 %v151, %v150
    %168 = vmatprep.subr.bf16.mxu0 0
    %169 = vmatpush1.bf16.msra.mxu0 %v159
    %170 = vmatprep.subr.bf16.mxu0 0
    %171 = vmatpush1.bf16.msra.mxu0 %v158
    %172 = vmatprep.subr.bf16.mxu0 0
    %173 = vmatpush1.bf16.msra.mxu0 %v157
    %174 = vmatprep.subr.bf16.mxu0 0
    %175 = vmatpush1.bf16.msra.mxu0 %v156
    %176 = vmatprep.subr.bf16.mxu0 0
    %177 = vmatpush1.bf16.msra.mxu0 %v155
    %178 = vmatprep.subr.bf16.mxu0 0
    %179 = vmatpush1.bf16.msra.mxu0 %v154
    %180 = vmatprep.subr.bf16.mxu0 0
    %181 = vmatpush1.bf16.msra.mxu0 %v153
    %182 = vmatprep.subr.bf16.mxu0 0
    %183 = vmatpush1.bf16.msra.mxu0 %v152
    %184 = vmatprep.subr.bf16.mxu0 0
    %185 = vmatpush2.bf16.msra.mxu0 0
    %186 = vmatprep.subr.bf16.mxu0 0
    %187 = vmatpush2.bf16.msra.mxu0 0
    %188 = vmatprep.subr.bf16.mxu0 0
    %189 = vmatpush2.bf16.msra.mxu0 0
    %190 = vmatprep.subr.bf16.mxu0 0
    %191 = vmatpush2.bf16.msra.mxu0 0
    %192 = vmatprep.subr.bf16.mxu0 0
    %193 = vmatpush2.bf16.msra.mxu0 0
    %194 = vmatprep.subr.bf16.mxu0 0
    %195 = vmatpush2.bf16.msra.mxu0 0
    %196 = vmatprep.subr.bf16.mxu0 0
    %197 = vmatpush2.bf16.msra.mxu0 0
    %198 = vmatprep.subr.bf16.mxu0 0
    %199 = vmatpush2.bf16.msra.mxu0 0
    %200 = vmatprep.mubr.bf16.mxu0 0
    %201 = vmatmul.mubr.bf16.gmra.mxu0 %v103
    %v202 = vpop.f32.mrf.mxu0
    %v203 = vadd.f32 0.0, %v202
    %v204 = vpop.f32.mrf.mxu0
    %v205 = vpop.f32.mrf.mxu0
    %v206 = vpop.f32.mrf.mxu0
    %207 = vdwg.mxu0
    %v224 = vunpack.c.l.b16 %v87
    %v225 = vunpack.c.l.b16 %v88
    %v226 = vunpack.c.l.b16 %v89
    %v227 = vunpack.c.l.b16 %v90
    %v228 = vunpack.c.l.b16 %v91
    %v229 = vunpack.c.l.b16 %v92
    %v230 = vunpack.c.l.b16 %v93
    %v231 = vunpack.c.l.b16 %v94
    %v232 = vunpack.c.l.b16 %v95
    %v233 = vunpack.c.l.b16 %v96
    %v234 = vunpack.c.l.b16 %v97
    %v235 = vunpack.c.l.b16 %v98
    %v236 = vunpack.c.l.b16 %v99
    %v237 = vunpack.c.l.b16 %v100
    %v238 = vunpack.c.l.b16 %v101
    %v239 = vunpack.c.l.b16 %v102
    %v240 = vpack.c.b16 %v225, %v224
    %v241 = vpack.c.b16 %v227, %v226
    %v242 = vpack.c.b16 %v229, %v228
    %v243 = vpack.c.b16 %v231, %v230
    %v244 = vpack.c.b16 %v233, %v232
    %v245 = vpack.c.b16 %v235, %v234
    %v246 = vpack.c.b16 %v237, %v236
    %v247 = vpack.c.b16 %v239, %v238
    %256 = vmatprep.subr.bf16.mxu0 0
    %257 = vmatpush1.bf16.msra.mxu0 %v247
    %258 = vmatprep.subr.bf16.mxu0 0
    %259 = vmatpush1.bf16.msra.mxu0 %v246
    %260 = vmatprep.subr.bf16.mxu0 0
    %261 = vmatpush1.bf16.msra.mxu0 %v245
    %262 = vmatprep.subr.bf16.mxu0 0
    %263 = vmatpush1.bf16.msra.mxu0 %v244
    %264 = vmatprep.subr.bf16.mxu0 0
    %265 = vmatpush1.bf16.msra.mxu0 %v243
    %266 = vmatprep.subr.bf16.mxu0 0
    %267 = vmatpush1.bf16.msra.mxu0 %v242
    %268 = vmatprep.subr.bf16.mxu0 0
    %269 = vmatpush1.bf16.msra.mxu0 %v241
    %270 = vmatprep.subr.bf16.mxu0 0
    %271 = vmatpush1.bf16.msra.mxu0 %v240
    %272 = vmatprep.subr.bf16.mxu0 0
    %273 = vmatpush2.bf16.msra.mxu0 0
    %274 = vmatprep.subr.bf16.mxu0 0
    %275 = vmatpush2.bf16.msra.mxu0 0
    %276 = vmatprep.subr.bf16.mxu0 0
    %277 = vmatpush2.bf16.msra.mxu0 0
    %278 = vmatprep.subr.bf16.mxu0 0
    %279 = vmatpush2.bf16.msra.mxu0 0
    %280 = vmatprep.subr.bf16.mxu0 0
    %281 = vmatpush2.bf16.msra.mxu0 0
    %282 = vmatprep.subr.bf16.mxu0 0
    %283 = vmatpush2.bf16.msra.mxu0 0
    %284 = vmatprep.subr.bf16.mxu0 0
    %285 = vmatpush2.bf16.msra.mxu0 0
    %286 = vmatprep.subr.bf16.mxu0 0
    %287 = vmatpush2.bf16.msra.mxu0 0
    %288 = vmatprep.mubr.bf16.mxu0 0
    %289 = vmatmul.mubr.bf16.gmra.mxu0 %v86
    %v290 = vpop.f32.mrf.mxu0
    %v291 = vadd.f32 %v203, %v290
    %v292 = vpop.f32.mrf.mxu0
    %v293 = vpop.f32.mrf.mxu0
    %v294 = vpop.f32.mrf.mxu0
    %295 = vdwg.mxu0
    %v296 = vld [vmem:[%s5] sm:$0x1]
    %v298 = vlaneseq
    %v299 = vshrl.u32 %v298, 7
    %v300 = vsub.s32 0, %v299
    %v301 = vrot.slane %v296, %v300
    %v303 = vadd.f32 %v291, %v301
    %304 = vst [vmem:[%s6] sm:$0xff] %v303
  $region33: #{net_need_name_forward.35} parent=0 // pred_fallthru
    _
  // Predicated region
  $region34: #{net_need_name_forward.35} parent=0 // pred_check
    _
  $region35: #{net_need_name_forward.35} parent=0 // pred_check_branch
    %306 = sbr.rel (0) target = $region37
  $region36: #{net_need_name_forward.35} parent=0 // pred_region
    _
  $region37: #{net_need_name_forward.35} parent=0 // pred_fallthru
    _
  // Predicated region
  $region38: #{net_need_name_forward.35} parent=0 // pred_check
    _
  $region39: #{net_need_name_forward.35} parent=0 // pred_check_branch
    %308 = sbr.rel (0) target = $region41
  $region40: #{net_need_name_forward.35} parent=0 // pred_region
    _
  $region41: #{net_need_name_forward.35} parent=0 // pred_fallthru
    _

// kernel: net_need_name_forward.32
$region0: #{net_need_name_forward.32}
  #allocation0 [shape = 'u32[]', space=smem, size = 0x4, offset = 0x4, fixed_abs, tag = 'smem constant byte address 0x4 - core index']
  #allocation1 [shape = 'u32[144,128]{1,0:T(1,128)}', space=vmem, size = 0x12000, scoped, tag = 'internal scratch']
  #allocation2 [shape = 'f32[16,256]{1,0:T(8,128)}', space=vmem, size = 0x4000, scoped, tag = 'scratch operand']
  %s0 = inlined_call_operand.vmem [shape: bf16[16,16], index: 0, kind: input, shape index: {}]
  %s1 = inlined_call_operand.vmem [shape: bf16[16,256], index: 1, kind: input, shape index: {}]
  %s2 = inlined_call_operand.vmem [shape: bf16[256,128], index: 2, kind: input, shape index: {}]
  %s3 = inlined_call_operand.vmem [shape: f32[1,128], index: 3, kind: input, shape index: {}]
  %s4 = inlined_call_operand.vmem [shape: bf16[16,128], index: 4, kind: output, shape index: {}]
  %s5 = sld [smem:[#allocation0]]
  $region34: #{net_need_name_forward.32} parent=0
    _
  %s7 = ssub.s32 1, %s5
  %s8 = scalar_select 0, %s7, %s5
  // Predicated region
  $region2: #{net_need_name_forward.32} parent=0 // pred_check
    _
  $region3: #{net_need_name_forward.32} parent=0 // pred_check_branch
    %10 = sbr.rel (0) target = $region5
  $region4: #{net_need_name_forward.32} parent=0 // pred_region
    _
  $region5: #{net_need_name_forward.32} parent=0 // pred_fallthru
    _
  // Predicated region
  $region6: #{net_need_name_forward.32} parent=0 // pred_check
    _
  $region7: #{net_need_name_forward.32} parent=0 // pred_check_branch
    %12 = sbr.rel (0) target = $region9
  $region8: #{net_need_name_forward.32} parent=0 // pred_region
    _
  $region9: #{net_need_name_forward.32} parent=0 // pred_fallthru
    _
  // Predicated region
  $region10: #{net_need_name_forward.32} parent=0 // pred_check
    _
  $region11: #{net_need_name_forward.32} parent=0 // pred_check_branch
    %14 = sbr.rel (0) target = $region13
  $region12: #{net_need_name_forward.32} parent=0 // pred_region
    _
  $region13: #{net_need_name_forward.32} parent=0 // pred_fallthru
    _
  // Predicated region
  $region14: #{net_need_name_forward.32} parent=0 // pred_check
    _
  $region15: #{net_need_name_forward.32} parent=0 // pred_check_branch
    %16 = sbr.rel (0) target = $region17
  $region16: #{net_need_name_forward.32} parent=0 // pred_region
    _
  $region17: #{net_need_name_forward.32} parent=0 // pred_fallthru
    _
  %p18 = scmp.eq.s32.totalorder 0, 0
  // Predicated region
  $region18: #{net_need_name_forward.32} parent=0 // pred_check
    %p19 = pneg %p18
  $region19: #{net_need_name_forward.32} parent=0 // pred_check_branch
    %21 = sbr.rel (%p19) target = $region21
  $region20: #{net_need_name_forward.32} parent=0 // pred_region
    %22 = vst [vmem:[#allocation2] sm:$0xff] 0.0
    %23 = vst [vmem:[#allocation2 + $0x8] sm:$0xff] 0.0
    %24 = vst [vmem:[#allocation2 + $0x10] sm:$0xff] 0.0
    %25 = vst [vmem:[#allocation2 + $0x18] sm:$0xff] 0.0
  $region21: #{net_need_name_forward.32} parent=0 // pred_fallthru
    _
  %v26 = vld [vmem:[#allocation2] sm:$0xff]
  %v27 = vld [vmem:[#allocation2 + $0x8] sm:$0xff]
  %v28 = vld [vmem:[#allocation2 + $0x10] sm:$0xff]
  %v29 = vld [vmem:[#allocation2 + $0x18] sm:$0xff]
  %v30 = vld [vmem:[%s0] sm:$0xf]
  %v31 = vld [vmem:[%s0 + $0x4] sm:$0xf]
  %v32 = vld [vmem:[%s1] sm:$0xff]
  %v33 = vld [vmem:[%s1 + $0x8] sm:$0xff]
  %v36 = vunpack.c.l.b16 %v30
  %v37 = vunpack.c.l.b16 %v31
  %v38 = vpack.c.b16 %v37, %v36
  %v41 = vunpack.c.l.b16 %v32
  %v42 = vunpack.c.h.b16 %v32
  %v43 = vunpack.c.l.b16 %v33
  %v44 = vunpack.c.h.b16 %v33
  %v45 = vpack.c.b16 %v43, %v41
  %v46 = vpack.c.b16 %v44, %v42
  %vm49 = vcmask 130048
  %v51 = vsel %vm49, %v38, 0
  %53 = vmatprep.subr.bf16.mxu0 0
  %54 = vmatpush1.bf16.msra.mxu0 0
  %55 = vmatprep.subr.bf16.mxu0 0
  %56 = vmatpush1.bf16.msra.mxu0 0
  %57 = vmatprep.subr.bf16.mxu0 0
  %58 = vmatpush1.bf16.msra.mxu0 0
  %59 = vmatprep.subr.bf16.mxu0 0
  %60 = vmatpush1.bf16.msra.mxu0 0
  %61 = vmatprep.subr.bf16.mxu0 0
  %62 = vmatpush1.bf16.msra.mxu0 0
  %63 = vmatprep.subr.bf16.mxu0 0
  %64 = vmatpush1.bf16.msra.mxu0 0
  %65 = vmatprep.subr.bf16.mxu0 0
  %66 = vmatpush1.bf16.msra.mxu0 0
  %67 = vmatprep.subr.bf16.mxu0 %v46
  %68 = vmatpush1.bf16.msra.mxu0 %v45
  %69 = vmatprep.subr.bf16.mxu0 0
  %70 = vmatpush2.bf16.msra.mxu0 0
  %71 = vmatprep.subr.bf16.mxu0 0
  %72 = vmatpush2.bf16.msra.mxu0 0
  %73 = vmatprep.subr.bf16.mxu0 0
  %74 = vmatpush2.bf16.msra.mxu0 0
  %75 = vmatprep.subr.bf16.mxu0 0
  %76 = vmatpush2.bf16.msra.mxu0 0
  %77 = vmatprep.subr.bf16.mxu0 0
  %78 = vmatpush2.bf16.msra.mxu0 0
  %79 = vmatprep.subr.bf16.mxu0 0
  %80 = vmatpush2.bf16.msra.mxu0 0
  %81 = vmatprep.subr.bf16.mxu0 0
  %82 = vmatpush2.bf16.msra.mxu0 0
  %83 = vmatprep.subr.bf16.mxu0 0
  %84 = vmatpush2.bf16.msra.mxu0 0
  %85 = vmatprep.mubr.bf16.mxu0 0
  %86 = vmatmul.mubr.bf16.gmra.mxu0 %v51
  %v87 = vpop.f32.mrf.mxu0
  %v88 = vadd.f32 0.0, %v87
  %v89 = vpop.f32.mrf.mxu0
  %v90 = vadd.f32 0.0, %v89
  %v91 = vpop.f32.mrf.mxu0
  %v92 = vadd.f32 0.0, %v91
  %v93 = vpop.f32.mrf.mxu0
  %v94 = vadd.f32 0.0, %v93
  %95 = vdwg.mxu0
  %v96 = vadd.f32 %v26, %v88
  %v97 = vadd.f32 %v27, %v90
  %v98 = vadd.f32 %v28, %v92
  %v99 = vadd.f32 %v29, %v94
  %100 = vst [vmem:[#allocation2] sm:$0xff] %v96
  %101 = vst [vmem:[#allocation2 + $0x8] sm:$0xff] %v97
  %102 = vst [vmem:[#allocation2 + $0x10] sm:$0xff] %v98
  %103 = vst [vmem:[#allocation2 + $0x18] sm:$0xff] %v99
  // Predicated region
  $region22: #{net_need_name_forward.32} parent=0 // pred_check
    %p104 = pneg %p18
  $region23: #{net_need_name_forward.32} parent=0 // pred_check_branch
    %106 = sbr.rel (%p104) target = $region25
  $region24: #{net_need_name_forward.32} parent=0 // pred_region
    %v107 = vld [vmem:[#allocation2] sm:$0xff]
    %v108 = vld [vmem:[#allocation2 + $0x8] sm:$0xff]
    %v109 = vld [vmem:[#allocation2 + $0x10] sm:$0xff]
    %v110 = vld [vmem:[#allocation2 + $0x18] sm:$0xff]
    %v111 = vpack.c.bf16 %v109, %v107
    %v112 = vpack.c.bf16 %v110, %v108
    %v113 = vld [vmem:[%s2] sm:$0xf]
    %v114 = vld [vmem:[%s2 + $0x4] sm:$0xf]
    %v115 = vld [vmem:[%s2 + $0x8] sm:$0xf]
    %v116 = vld [vmem:[%s2 + $0xc] sm:$0xf]
    %v117 = vld [vmem:[%s2 + $0x10] sm:$0xf]
    %v118 = vld [vmem:[%s2 + $0x14] sm:$0xf]
    %v119 = vld [vmem:[%s2 + $0x18] sm:$0xf]
    %v120 = vld [vmem:[%s2 + $0x1c] sm:$0xf]
    %v121 = vld [vmem:[%s2 + $0x20] sm:$0xf]
    %v122 = vld [vmem:[%s2 + $0x24] sm:$0xf]
    %v123 = vld [vmem:[%s2 + $0x28] sm:$0xf]
    %v124 = vld [vmem:[%s2 + $0x2c] sm:$0xf]
    %v125 = vld [vmem:[%s2 + $0x30] sm:$0xf]
    %v126 = vld [vmem:[%s2 + $0x34] sm:$0xf]
    %v127 = vld [vmem:[%s2 + $0x38] sm:$0xf]
    %v128 = vld [vmem:[%s2 + $0x3c] sm:$0xf]
    %v129 = vld [vmem:[%s2 + $0x40] sm:$0xf]
    %v130 = vld [vmem:[%s2 + $0x44] sm:$0xf]
    %v131 = vld [vmem:[%s2 + $0x48] sm:$0xf]
    %v132 = vld [vmem:[%s2 + $0x4c] sm:$0xf]
    %v133 = vld [vmem:[%s2 + $0x50] sm:$0xf]
    %v134 = vld [vmem:[%s2 + $0x54] sm:$0xf]
    %v135 = vld [vmem:[%s2 + $0x58] sm:$0xf]
    %v136 = vld [vmem:[%s2 + $0x5c] sm:$0xf]
    %v137 = vld [vmem:[%s2 + $0x60] sm:$0xf]
    %v138 = vld [vmem:[%s2 + $0x64] sm:$0xf]
    %v139 = vld [vmem:[%s2 + $0x68] sm:$0xf]
    %v140 = vld [vmem:[%s2 + $0x6c] sm:$0xf]
    %v141 = vld [vmem:[%s2 + $0x70] sm:$0xf]
    %v142 = vld [vmem:[%s2 + $0x74] sm:$0xf]
    %v143 = vld [vmem:[%s2 + $0x78] sm:$0xf]
    %v144 = vld [vmem:[%s2 + $0x7c] sm:$0xf]
    %v145 = vld [vmem:[%s3] sm:$0x1]
    %v147 = vlaneseq
    %v148 = vshrl.u32 %v147, 7
    %v149 = vsub.s32 0, %v148
    %v150 = vrot.slane %v145, %v149
    %v184 = vunpack.c.l.b16 %v113
    %v185 = vunpack.c.l.b16 %v114
    %v186 = vunpack.c.l.b16 %v115
    %v187 = vunpack.c.l.b16 %v116
    %v188 = vunpack.c.l.b16 %v117
    %v189 = vunpack.c.l.b16 %v118
    %v190 = vunpack.c.l.b16 %v119
    %v191 = vunpack.c.l.b16 %v120
    %v192 = vunpack.c.l.b16 %v121
    %v193 = vunpack.c.l.b16 %v122
    %v194 = vunpack.c.l.b16 %v123
    %v195 = vunpack.c.l.b16 %v124
    %v196 = vunpack.c.l.b16 %v125
    %v197 = vunpack.c.l.b16 %v126
    %v198 = vunpack.c.l.b16 %v127
    %v199 = vunpack.c.l.b16 %v128
    %v200 = vunpack.c.l.b16 %v129
    %v201 = vunpack.c.l.b16 %v130
    %v202 = vunpack.c.l.b16 %v131
    %v203 = vunpack.c.l.b16 %v132
    %v204 = vunpack.c.l.b16 %v133
    %v205 = vunpack.c.l.b16 %v134
    %v206 = vunpack.c.l.b16 %v135
    %v207 = vunpack.c.l.b16 %v136
    %v208 = vunpack.c.l.b16 %v137
    %v209 = vunpack.c.l.b16 %v138
    %v210 = vunpack.c.l.b16 %v139
    %v211 = vunpack.c.l.b16 %v140
    %v212 = vunpack.c.l.b16 %v141
    %v213 = vunpack.c.l.b16 %v142
    %v214 = vunpack.c.l.b16 %v143
    %v215 = vunpack.c.l.b16 %v144
    %v216 = vpack.c.b16 %v185, %v184
    %v217 = vpack.c.b16 %v187, %v186
    %v218 = vpack.c.b16 %v189, %v188
    %v219 = vpack.c.b16 %v191, %v190
    %v220 = vpack.c.b16 %v193, %v192
    %v221 = vpack.c.b16 %v195, %v194
    %v222 = vpack.c.b16 %v197, %v196
    %v223 = vpack.c.b16 %v199, %v198
    %v224 = vpack.c.b16 %v201, %v200
    %v225 = vpack.c.b16 %v203, %v202
    %v226 = vpack.c.b16 %v205, %v204
    %v227 = vpack.c.b16 %v207, %v206
    %v228 = vpack.c.b16 %v209, %v208
    %v229 = vpack.c.b16 %v211, %v210
    %v230 = vpack.c.b16 %v213, %v212
    %v231 = vpack.c.b16 %v215, %v214
    %248 = vmatprep.subr.bf16.mxu0 0
    %249 = vmatpush1.bf16.msra.mxu0 %v223
    %250 = vmatprep.subr.bf16.mxu0 0
    %251 = vmatpush1.bf16.msra.mxu0 %v222
    %252 = vmatprep.subr.bf16.mxu0 0
    %253 = vmatpush1.bf16.msra.mxu0 %v221
    %254 = vmatprep.subr.bf16.mxu0 0
    %255 = vmatpush1.bf16.msra.mxu0 %v220
    %256 = vmatprep.subr.bf16.mxu0 0
    %257 = vmatpush1.bf16.msra.mxu0 %v219
    %258 = vmatprep.subr.bf16.mxu0 0
    %259 = vmatpush1.bf16.msra.mxu0 %v218
    %260 = vmatprep.subr.bf16.mxu0 0
    %261 = vmatpush1.bf16.msra.mxu0 %v217
    %262 = vmatprep.subr.bf16.mxu0 0
    %263 = vmatpush1.bf16.msra.mxu0 %v216
    %264 = vmatprep.subr.bf16.mxu0 0
    %265 = vmatpush2.bf16.msra.mxu0 %v231
    %266 = vmatprep.subr.bf16.mxu0 0
    %267 = vmatpush2.bf16.msra.mxu0 %v230
    %268 = vmatprep.subr.bf16.mxu0 0
    %269 = vmatpush2.bf16.msra.mxu0 %v229
    %270 = vmatprep.subr.bf16.mxu0 0
    %271 = vmatpush2.bf16.msra.mxu0 %v228
    %272 = vmatprep.subr.bf16.mxu0 0
    %273 = vmatpush2.bf16.msra.mxu0 %v227
    %274 = vmatprep.subr.bf16.mxu0 0
    %275 = vmatpush2.bf16.msra.mxu0 %v226
    %276 = vmatprep.subr.bf16.mxu0 0
    %277 = vmatpush2.bf16.msra.mxu0 %v225
    %278 = vmatprep.subr.bf16.mxu0 0
    %279 = vmatpush2.bf16.msra.mxu0 %v224
    %280 = vmatprep.mubr.bf16.mxu0 %v112
    %281 = vmatmul.mubr.bf16.gmra.mxu0 %v111
    %v282 = vpop.f32.mrf.mxu0
    %v283 = vadd.f32 %v150, %v282
    %v284 = vpop.f32.mrf.mxu0
    %v285 = vpop.f32.mrf.mxu0
    %v286 = vadd.f32 %v150, %v285
    %v287 = vpop.f32.mrf.mxu0
    %288 = vdwg.mxu0
    %v289 = vpack.c.bf16 %v286, %v283
    %v291 = vunpack.c.l.b16 %v289
    %v292 = vunpack.c.h.b16 %v289
    %v293 = vpack.c.b16 %v291, %v291
    %v294 = vpack.c.b16 %v292, %v292
    %297 = vst [vmem:[%s4] sm:$0xf] %v293
    %298 = vst [vmem:[%s4 + $0x4] sm:$0xf] %v294
  $region25: #{net_need_name_forward.32} parent=0 // pred_fallthru
    _
  // Predicated region
  $region26: #{net_need_name_forward.32} parent=0 // pred_check
    _
  $region27: #{net_need_name_forward.32} parent=0 // pred_check_branch
    %300 = sbr.rel (0) target = $region29
  $region28: #{net_need_name_forward.32} parent=0 // pred_region
    _
  $region29: #{net_need_name_forward.32} parent=0 // pred_fallthru
    _
  // Predicated region
  $region30: #{net_need_name_forward.32} parent=0 // pred_check
    _
  $region31: #{net_need_name_forward.32} parent=0 // pred_check_branch
    %302 = sbr.rel (0) target = $region33
  $region32: #{net_need_name_forward.32} parent=0 // pred_region
    _
  $region33: #{net_need_name_forward.32} parent=0 // pred_fallthru
    _

// kernel: net_need_name_forward.33
$region0: #{net_need_name_forward.33}
  #allocation0 [shape = 'u32[]', space=smem, size = 0x4, offset = 0x4, fixed_abs, tag = 'smem constant byte address 0x4 - core index']
  #allocation1 [shape = 'u32[144,128]{1,0:T(1,128)}', space=vmem, size = 0x12000, scoped, tag = 'internal scratch']
  #allocation2 [shape = 'f32[16,128]{1,0:T(8,128)}', space=vmem, size = 0x2000, scoped, tag = 'scratch operand']
  %s0 = inlined_call_operand.vmem [shape: bf16[16,16], index: 0, kind: input, shape index: {}]
  %s1 = inlined_call_operand.vmem [shape: bf16[16,128], index: 1, kind: input, shape index: {}, may-alias: {1,2}]
  %s2 = inlined_call_operand.vmem [shape: bf16[16,128], index: 2, kind: input, shape index: {}, may-alias: {1,2}]
  %s3 = inlined_call_operand.vmem [shape: bf16[128,128], index: 3, kind: input, shape index: {}]
  %s4 = inlined_call_operand.vmem [shape: bf16[128,128], index: 4, kind: input, shape index: {}]
  %s5 = inlined_call_operand.vmem [shape: f32[1,128], index: 5, kind: input, shape index: {}]
  %s6 = inlined_call_operand.vmem [shape: f32[16,128], index: 6, kind: output, shape index: {}]
  %s7 = sld [smem:[#allocation0]]
  $region42: #{net_need_name_forward.33} parent=0
    _
  %s9 = ssub.s32 1, %s7
  %s10 = scalar_select 0, %s9, %s7
  // Predicated region
  $region2: #{net_need_name_forward.33} parent=0 // pred_check
    _
  $region3: #{net_need_name_forward.33} parent=0 // pred_check_branch
    %12 = sbr.rel (0) target = $region5
  $region4: #{net_need_name_forward.33} parent=0 // pred_region
    _
  $region5: #{net_need_name_forward.33} parent=0 // pred_fallthru
    _
  // Predicated region
  $region6: #{net_need_name_forward.33} parent=0 // pred_check
    _
  $region7: #{net_need_name_forward.33} parent=0 // pred_check_branch
    %14 = sbr.rel (0) target = $region9
  $region8: #{net_need_name_forward.33} parent=0 // pred_region
    _
  $region9: #{net_need_name_forward.33} parent=0 // pred_fallthru
    _
  // Predicated region
  $region10: #{net_need_name_forward.33} parent=0 // pred_check
    _
  $region11: #{net_need_name_forward.33} parent=0 // pred_check_branch
    %16 = sbr.rel (0) target = $region13
  $region12: #{net_need_name_forward.33} parent=0 // pred_region
    _
  $region13: #{net_need_name_forward.33} parent=0 // pred_fallthru
    _
  // Predicated region
  $region14: #{net_need_name_forward.33} parent=0 // pred_check
    _
  $region15: #{net_need_name_forward.33} parent=0 // pred_check_branch
    %18 = sbr.rel (0) target = $region17
  $region16: #{net_need_name_forward.33} parent=0 // pred_region
    _
  $region17: #{net_need_name_forward.33} parent=0 // pred_fallthru
    _
  // Predicated region
  $region18: #{net_need_name_forward.33} parent=0 // pred_check
    _
  $region19: #{net_need_name_forward.33} parent=0 // pred_check_branch
    %20 = sbr.rel (0) target = $region21
  $region20: #{net_need_name_forward.33} parent=0 // pred_region
    _
  $region21: #{net_need_name_forward.33} parent=0 // pred_fallthru
    _
  // Predicated region
  $region22: #{net_need_name_forward.33} parent=0 // pred_check
    _
  $region23: #{net_need_name_forward.33} parent=0 // pred_check_branch
    %22 = sbr.rel (0) target = $region25
  $region24: #{net_need_name_forward.33} parent=0 // pred_region
    _
  $region25: #{net_need_name_forward.33} parent=0 // pred_fallthru
    _
  %p24 = scmp.eq.s32.totalorder 0, 0
  // Predicated region
  $region26: #{net_need_name_forward.33} parent=0 // pred_check
    %p25 = pneg %p24
  $region27: #{net_need_name_forward.33} parent=0 // pred_check_branch
    %27 = sbr.rel (%p25) target = $region29
  $region28: #{net_need_name_forward.33} parent=0 // pred_region
    %28 = vst [vmem:[#allocation2] sm:$0xff] 0.0
    %29 = vst [vmem:[#allocation2 + $0x8] sm:$0xff] 0.0
  $region29: #{net_need_name_forward.33} parent=0 // pred_fallthru
    _
  %v30 = vld [vmem:[#allocation2] sm:$0xff]
  %v31 = vld [vmem:[#allocation2 + $0x8] sm:$0xff]
  %v32 = vld [vmem:[%s0] sm:$0xf]
  %v33 = vld [vmem:[%s0 + $0x4] sm:$0xf]
  %v34 = vld [vmem:[%s1] sm:$0xf]
  %v35 = vld [vmem:[%s1 + $0x4] sm:$0xf]
  %v38 = vunpack.c.l.b16 %v32
  %v39 = vunpack.c.l.b16 %v33
  %v40 = vpack.c.b16 %v39, %v38
  %v43 = vunpack.c.l.b16 %v34
  %v44 = vunpack.c.l.b16 %v35
  %v45 = vpack.c.b16 %v44, %v43
  %vm47 = vcmask 130048
  %v49 = vsel %vm47, %v40, 0
  %51 = vmatprep.subr.bf16.mxu0 0
  %52 = vmatpush1.bf16.msra.mxu0 0
  %53 = vmatprep.subr.bf16.mxu0 0
  %54 = vmatpush1.bf16.msra.mxu0 0
  %55 = vmatprep.subr.bf16.mxu0 0
  %56 = vmatpush1.bf16.msra.mxu0 0
  %57 = vmatprep.subr.bf16.mxu0 0
  %58 = vmatpush1.bf16.msra.mxu0 0
  %59 = vmatprep.subr.bf16.mxu0 0
  %60 = vmatpush1.bf16.msra.mxu0 0
  %61 = vmatprep.subr.bf16.mxu0 0
  %62 = vmatpush1.bf16.msra.mxu0 0
  %63 = vmatprep.subr.bf16.mxu0 0
  %64 = vmatpush1.bf16.msra.mxu0 0
  %65 = vmatprep.subr.bf16.mxu0 0
  %66 = vmatpush1.bf16.msra.mxu0 %v45
  %67 = vmatprep.subr.bf16.mxu0 0
  %68 = vmatpush2.bf16.msra.mxu0 0
  %69 = vmatprep.subr.bf16.mxu0 0
  %70 = vmatpush2.bf16.msra.mxu0 0
  %71 = vmatprep.subr.bf16.mxu0 0
  %72 = vmatpush2.bf16.msra.mxu0 0
  %73 = vmatprep.subr.bf16.mxu0 0
  %74 = vmatpush2.bf16.msra.mxu0 0
  %75 = vmatprep.subr.bf16.mxu0 0
  %76 = vmatpush2.bf16.msra.mxu0 0
  %77 = vmatprep.subr.bf16.mxu0 0
  %78 = vmatpush2.bf16.msra.mxu0 0
  %79 = vmatprep.subr.bf16.mxu0 0
  %80 = vmatpush2.bf16.msra.mxu0 0
  %81 = vmatprep.subr.bf16.mxu0 0
  %82 = vmatpush2.bf16.msra.mxu0 0
  %83 = vmatprep.mubr.bf16.mxu0 0
  %84 = vmatmul.mubr.bf16.gmra.mxu0 %v49
  %v85 = vpop.f32.mrf.mxu0
  %v86 = vadd.f32 0.0, %v85
  %v87 = vpop.f32.mrf.mxu0
  %v88 = vpop.f32.mrf.mxu0
  %v89 = vadd.f32 0.0, %v88
  %v90 = vpop.f32.mrf.mxu0
  %91 = vdwg.mxu0
  %v92 = vadd.f32 %v30, %v86
  %v93 = vadd.f32 %v31, %v89
  %94 = vst [vmem:[#allocation2] sm:$0xff] %v92
  %95 = vst [vmem:[#allocation2 + $0x8] sm:$0xff] %v93
  // Predicated region
  $region30: #{net_need_name_forward.33} parent=0 // pred_check
    %p96 = pneg %p24
  $region31: #{net_need_name_forward.33} parent=0 // pred_check_branch
    %98 = sbr.rel (%p96) target = $region33
  $region32: #{net_need_name_forward.33} parent=0 // pred_region
    %v99 = vld [vmem:[#allocation2] sm:$0xff]
    %v100 = vld [vmem:[#allocation2 + $0x8] sm:$0xff]
    %v101 = vpack.c.bf16 %v100, %v99
    %v102 = vld [vmem:[%s3] sm:$0xf]
    %v103 = vld [vmem:[%s3 + $0x4] sm:$0xf]
    %v104 = vld [vmem:[%s3 + $0x8] sm:$0xf]
    %v105 = vld [vmem:[%s3 + $0xc] sm:$0xf]
    %v106 = vld [vmem:[%s3 + $0x10] sm:$0xf]
    %v107 = vld [vmem:[%s3 + $0x14] sm:$0xf]
    %v108 = vld [vmem:[%s3 + $0x18] sm:$0xf]
    %v109 = vld [vmem:[%s3 + $0x1c] sm:$0xf]
    %v110 = vld [vmem:[%s3 + $0x20] sm:$0xf]
    %v111 = vld [vmem:[%s3 + $0x24] sm:$0xf]
    %v112 = vld [vmem:[%s3 + $0x28] sm:$0xf]
    %v113 = vld [vmem:[%s3 + $0x2c] sm:$0xf]
    %v114 = vld [vmem:[%s3 + $0x30] sm:$0xf]
    %v115 = vld [vmem:[%s3 + $0x34] sm:$0xf]
    %v116 = vld [vmem:[%s3 + $0x38] sm:$0xf]
    %v117 = vld [vmem:[%s3 + $0x3c] sm:$0xf]
    %v118 = vld [vmem:[%s2] sm:$0xf]
    %v119 = vld [vmem:[%s2 + $0x4] sm:$0xf]
    %v120 = vld [vmem:[%s4] sm:$0xf]
    %v121 = vld [vmem:[%s4 + $0x4] sm:$0xf]
    %v122 = vld [vmem:[%s4 + $0x8] sm:$0xf]
    %v123 = vld [vmem:[%s4 + $0xc] sm:$0xf]
    %v124 = vld [vmem:[%s4 + $0x10] sm:$0xf]
    %v125 = vld [vmem:[%s4 + $0x14] sm:$0xf]
    %v126 = vld [vmem:[%s4 + $0x18] sm:$0xf]
    %v127 = vld [vmem:[%s4 + $0x1c] sm:$0xf]
    %v128 = vld [vmem:[%s4 + $0x20] sm:$0xf]
    %v129 = vld [vmem:[%s4 + $0x24] sm:$0xf]
    %v130 = vld [vmem:[%s4 + $0x28] sm:$0xf]
    %v131 = vld [vmem:[%s4 + $0x2c] sm:$0xf]
    %v132 = vld [vmem:[%s4 + $0x30] sm:$0xf]
    %v133 = vld [vmem:[%s4 + $0x34] sm:$0xf]
    %v134 = vld [vmem:[%s4 + $0x38] sm:$0xf]
    %v135 = vld [vmem:[%s4 + $0x3c] sm:$0xf]
    %v138 = vunpack.c.l.b16 %v118
    %v139 = vunpack.c.l.b16 %v119
    %v140 = vpack.c.b16 %v139, %v138
    %v158 = vunpack.c.l.b16 %v120
    %v159 = vunpack.c.l.b16 %v121
    %v160 = vunpack.c.l.b16 %v122
    %v161 = vunpack.c.l.b16 %v123
    %v162 = vunpack.c.l.b16 %v124
    %v163 = vunpack.c.l.b16 %v125
    %v164 = vunpack.c.l.b16 %v126
    %v165 = vunpack.c.l.b16 %v127
    %v166 = vunpack.c.l.b16 %v128
    %v167 = vunpack.c.l.b16 %v129
    %v168 = vunpack.c.l.b16 %v130
    %v169 = vunpack.c.l.b16 %v131
    %v170 = vunpack.c.l.b16 %v132
    %v171 = vunpack.c.l.b16 %v133
    %v172 = vunpack.c.l.b16 %v134
    %v173 = vunpack.c.l.b16 %v135
    %v174 = vpack.c.b16 %v159, %v158
    %v175 = vpack.c.b16 %v161, %v160
    %v176 = vpack.c.b16 %v163, %v162
    %v177 = vpack.c.b16 %v165, %v164
    %v178 = vpack.c.b16 %v167, %v166
    %v179 = vpack.c.b16 %v169, %v168
    %v180 = vpack.c.b16 %v171, %v170
    %v181 = vpack.c.b16 %v173, %v172
    %190 = vmatprep.subr.bf16.mxu0 0
    %191 = vmatpush1.bf16.msra.mxu0 %v181
    %192 = vmatprep.subr.bf16.mxu0 0
    %193 = vmatpush1.bf16.msra.mxu0 %v180
    %194 = vmatprep.subr.bf16.mxu0 0
    %195 = vmatpush1.bf16.msra.mxu0 %v179
    %196 = vmatprep.subr.bf16.mxu0 0
    %197 = vmatpush1.bf16.msra.mxu0 %v178
    %198 = vmatprep.subr.bf16.mxu0 0
    %199 = vmatpush1.bf16.msra.mxu0 %v177
    %200 = vmatprep.subr.bf16.mxu0 0
    %201 = vmatpush1.bf16.msra.mxu0 %v176
    %202 = vmatprep.subr.bf16.mxu0 0
    %203 = vmatpush1.bf16.msra.mxu0 %v175
    %204 = vmatprep.subr.bf16.mxu0 0
    %205 = vmatpush1.bf16.msra.mxu0 %v174
    %206 = vmatprep.subr.bf16.mxu0 0
    %207 = vmatpush2.bf16.msra.mxu0 0
    %208 = vmatprep.subr.bf16.mxu0 0
    %209 = vmatpush2.bf16.msra.mxu0 0
    %210 = vmatprep.subr.bf16.mxu0 0
    %211 = vmatpush2.bf16.msra.mxu0 0
    %212 = vmatprep.subr.bf16.mxu0 0
    %213 = vmatpush2.bf16.msra.mxu0 0
    %214 = vmatprep.subr.bf16.mxu0 0
    %215 = vmatpush2.bf16.msra.mxu0 0
    %216 = vmatprep.subr.bf16.mxu0 0
    %217 = vmatpush2.bf16.msra.mxu0 0
    %218 = vmatprep.subr.bf16.mxu0 0
    %219 = vmatpush2.bf16.msra.mxu0 0
    %220 = vmatprep.subr.bf16.mxu0 0
    %221 = vmatpush2.bf16.msra.mxu0 0
    %222 = vmatprep.mubr.bf16.mxu0 0
    %223 = vmatmul.mubr.bf16.gmra.mxu0 %v140
    %v224 = vpop.f32.mrf.mxu0
    %v225 = vadd.f32 0.0, %v224
    %v226 = vpop.f32.mrf.mxu0
    %v227 = vpop.f32.mrf.mxu0
    %v228 = vadd.f32 0.0, %v227
    %v229 = vpop.f32.mrf.mxu0
    %230 = vdwg.mxu0
    %v247 = vunpack.c.l.b16 %v102
    %v248 = vunpack.c.l.b16 %v103
    %v249 = vunpack.c.l.b16 %v104
    %v250 = vunpack.c.l.b16 %v105
    %v251 = vunpack.c.l.b16 %v106
    %v252 = vunpack.c.l.b16 %v107
    %v253 = vunpack.c.l.b16 %v108
    %v254 = vunpack.c.l.b16 %v109
    %v255 = vunpack.c.l.b16 %v110
    %v256 = vunpack.c.l.b16 %v111
    %v257 = vunpack.c.l.b16 %v112
    %v258 = vunpack.c.l.b16 %v113
    %v259 = vunpack.c.l.b16 %v114
    %v260 = vunpack.c.l.b16 %v115
    %v261 = vunpack.c.l.b16 %v116
    %v262 = vunpack.c.l.b16 %v117
    %v263 = vpack.c.b16 %v248, %v247
    %v264 = vpack.c.b16 %v250, %v249
    %v265 = vpack.c.b16 %v252, %v251
    %v266 = vpack.c.b16 %v254, %v253
    %v267 = vpack.c.b16 %v256, %v255
    %v268 = vpack.c.b16 %v258, %v257
    %v269 = vpack.c.b16 %v260, %v259
    %v270 = vpack.c.b16 %v262, %v261
    %279 = vmatprep.subr.bf16.mxu0 0
    %280 = vmatpush1.bf16.msra.mxu0 %v270
    %281 = vmatprep.subr.bf16.mxu0 0
    %282 = vmatpush1.bf16.msra.mxu0 %v269
    %283 = vmatprep.subr.bf16.mxu0 0
    %284 = vmatpush1.bf16.msra.mxu0 %v268
    %285 = vmatprep.subr.bf16.mxu0 0
    %286 = vmatpush1.bf16.msra.mxu0 %v267
    %287 = vmatprep.subr.bf16.mxu0 0
    %288 = vmatpush1.bf16.msra.mxu0 %v266
    %289 = vmatprep.subr.bf16.mxu0 0
    %290 = vmatpush1.bf16.msra.mxu0 %v265
    %291 = vmatprep.subr.bf16.mxu0 0
    %292 = vmatpush1.bf16.msra.mxu0 %v264
    %293 = vmatprep.subr.bf16.mxu0 0
    %294 = vmatpush1.bf16.msra.mxu0 %v263
    %295 = vmatprep.subr.bf16.mxu0 0
    %296 = vmatpush2.bf16.msra.mxu0 0
    %297 = vmatprep.subr.bf16.mxu0 0
    %298 = vmatpush2.bf16.msra.mxu0 0
    %299 = vmatprep.subr.bf16.mxu0 0
    %300 = vmatpush2.bf16.msra.mxu0 0
    %301 = vmatprep.subr.bf16.mxu0 0
    %302 = vmatpush2.bf16.msra.mxu0 0
    %303 = vmatprep.subr.bf16.mxu0 0
    %304 = vmatpush2.bf16.msra.mxu0 0
    %305 = vmatprep.subr.bf16.mxu0 0
    %306 = vmatpush2.bf16.msra.mxu0 0
    %307 = vmatprep.subr.bf16.mxu0 0
    %308 = vmatpush2.bf16.msra.mxu0 0
    %309 = vmatprep.subr.bf16.mxu0 0
    %310 = vmatpush2.bf16.msra.mxu0 0
    %311 = vmatprep.mubr.bf16.mxu0 0
    %312 = vmatmul.mubr.bf16.gmra.mxu0 %v101
    %v313 = vpop.f32.mrf.mxu0
    %v314 = vadd.f32 %v225, %v313
    %v315 = vpop.f32.mrf.mxu0
    %v316 = vpop.f32.mrf.mxu0
    %v317 = vadd.f32 %v228, %v316
    %v318 = vpop.f32.mrf.mxu0
    %319 = vdwg.mxu0
    %v320 = vld [vmem:[%s5] sm:$0x1]
    %v322 = vlaneseq
    %v323 = vshrl.u32 %v322, 7
    %v324 = vsub.s32 0, %v323
    %v325 = vrot.slane %v320, %v324
    %v327 = vadd.f32 %v314, %v325
    %v328 = vadd.f32 %v317, %v325
    %329 = vst [vmem:[%s6] sm:$0xff] %v327
    %330 = vst [vmem:[%s6 + $0x8] sm:$0xff] %v328
  $region33: #{net_need_name_forward.33} parent=0 // pred_fallthru
    _
  // Predicated region
  $region34: #{net_need_name_forward.33} parent=0 // pred_check
    _
  $region35: #{net_need_name_forward.33} parent=0 // pred_check_branch
    %332 = sbr.rel (0) target = $region37
  $region36: #{net_need_name_forward.33} parent=0 // pred_region
    _
  $region37: #{net_need_name_forward.33} parent=0 // pred_fallthru
    _
  // Predicated region
  $region38: #{net_need_name_forward.33} parent=0 // pred_check
    _
  $region39: #{net_need_name_forward.33} parent=0 // pred_check_branch
    %334 = sbr.rel (0) target = $region41
  $region40: #{net_need_name_forward.33} parent=0 // pred_region
    _
  $region41: #{net_need_name_forward.33} parent=0 // pred_fallthru
    _

// kernel: net_need_name_forward.38
$region0: #{net_need_name_forward.38}
  #allocation0 [shape = 'u32[]', space=smem, size = 0x4, offset = 0x4, fixed_abs, tag = 'smem constant byte address 0x4 - core index']
  #allocation1 [shape = 'u32[144,128]{1,0:T(1,128)}', space=vmem, size = 0x12000, scoped, tag = 'internal scratch']
  #allocation2 [shape = 'f32[16,256]{1,0:T(8,128)}', space=vmem, size = 0x4000, scoped, tag = 'scratch operand']
  %s0 = inlined_call_operand.vmem [shape: bf16[16,16], index: 0, kind: input, shape index: {}]
  %s1 = inlined_call_operand.vmem [shape: bf16[16,256], index: 1, kind: input, shape index: {}]
  %s2 = inlined_call_operand.vmem [shape: bf16[256,128], index: 2, kind: input, shape index: {}]
  %s3 = inlined_call_operand.vmem [shape: f32[1,128], index: 3, kind: input, shape index: {}]
  %s4 = inlined_call_operand.vmem [shape: bf16[16,128], index: 4, kind: output, shape index: {}]
  %s5 = sld [smem:[#allocation0]]
  $region34: #{net_need_name_forward.38} parent=0
    _
  %s7 = ssub.s32 1, %s5
  %s8 = scalar_select 0, %s7, %s5
  // Predicated region
  $region2: #{net_need_name_forward.38} parent=0 // pred_check
    _
  $region3: #{net_need_name_forward.38} parent=0 // pred_check_branch
    %10 = sbr.rel (0) target = $region5
  $region4: #{net_need_name_forward.38} parent=0 // pred_region
    _
  $region5: #{net_need_name_forward.38} parent=0 // pred_fallthru
    _
  // Predicated region
  $region6: #{net_need_name_forward.38} parent=0 // pred_check
    _
  $region7: #{net_need_name_forward.38} parent=0 // pred_check_branch
    %12 = sbr.rel (0) target = $region9
  $region8: #{net_need_name_forward.38} parent=0 // pred_region
    _
  $region9: #{net_need_name_forward.38} parent=0 // pred_fallthru
    _
  // Predicated region
  $region10: #{net_need_name_forward.38} parent=0 // pred_check
    _
  $region11: #{net_need_name_forward.38} parent=0 // pred_check_branch
    %14 = sbr.rel (0) target = $region13
  $region12: #{net_need_name_forward.38} parent=0 // pred_region
    _
  $region13: #{net_need_name_forward.38} parent=0 // pred_fallthru
    _
  // Predicated region
  $region14: #{net_need_name_forward.38} parent=0 // pred_check
    _
  $region15: #{net_need_name_forward.38} parent=0 // pred_check_branch
    %16 = sbr.rel (0) target = $region17
  $region16: #{net_need_name_forward.38} parent=0 // pred_region
    _
  $region17: #{net_need_name_forward.38} parent=0 // pred_fallthru
    _
  %p18 = scmp.eq.s32.totalorder 0, 0
  // Predicated region
  $region18: #{net_need_name_forward.38} parent=0 // pred_check
    %p19 = pneg %p18
  $region19: #{net_need_name_forward.38} parent=0 // pred_check_branch
    %21 = sbr.rel (%p19) target = $region21
  $region20: #{net_need_name_forward.38} parent=0 // pred_region
    %22 = vst [vmem:[#allocation2] sm:$0xff] 0.0
    %23 = vst [vmem:[#allocation2 + $0x8] sm:$0xff] 0.0
    %24 = vst [vmem:[#allocation2 + $0x10] sm:$0xff] 0.0
    %25 = vst [vmem:[#allocation2 + $0x18] sm:$0xff] 0.0
  $region21: #{net_need_name_forward.38} parent=0 // pred_fallthru
    _
  %v26 = vld [vmem:[#allocation2] sm:$0xff]
  %v27 = vld [vmem:[#allocation2 + $0x8] sm:$0xff]
  %v28 = vld [vmem:[#allocation2 + $0x10] sm:$0xff]
  %v29 = vld [vmem:[#allocation2 + $0x18] sm:$0xff]
  %v30 = vld [vmem:[%s0] sm:$0xf]
  %v31 = vld [vmem:[%s0 + $0x4] sm:$0xf]
  %v32 = vld [vmem:[%s1] sm:$0xff]
  %v33 = vld [vmem:[%s1 + $0x8] sm:$0xff]
  %v36 = vunpack.c.l.b16 %v30
  %v37 = vunpack.c.l.b16 %v31
  %v38 = vpack.c.b16 %v37, %v36
  %v41 = vunpack.c.l.b16 %v32
  %v42 = vunpack.c.h.b16 %v32
  %v43 = vunpack.c.l.b16 %v33
  %v44 = vunpack.c.h.b16 %v33
  %v45 = vpack.c.b16 %v43, %v41
  %v46 = vpack.c.b16 %v44, %v42
  %vm49 = vcmask 130048
  %v51 = vsel %vm49, %v38, 0
  %53 = vmatprep.subr.bf16.mxu0 0
  %54 = vmatpush1.bf16.msra.mxu0 0
  %55 = vmatprep.subr.bf16.mxu0 0
  %56 = vmatpush1.bf16.msra.mxu0 0
  %57 = vmatprep.subr.bf16.mxu0 0
  %58 = vmatpush1.bf16.msra.mxu0 0
  %59 = vmatprep.subr.bf16.mxu0 0
  %60 = vmatpush1.bf16.msra.mxu0 0
  %61 = vmatprep.subr.bf16.mxu0 0
  %62 = vmatpush1.bf16.msra.mxu0 0
  %63 = vmatprep.subr.bf16.mxu0 0
  %64 = vmatpush1.bf16.msra.mxu0 0
  %65 = vmatprep.subr.bf16.mxu0 0
  %66 = vmatpush1.bf16.msra.mxu0 0
  %67 = vmatprep.subr.bf16.mxu0 %v46
  %68 = vmatpush1.bf16.msra.mxu0 %v45
  %69 = vmatprep.subr.bf16.mxu0 0
  %70 = vmatpush2.bf16.msra.mxu0 0
  %71 = vmatprep.subr.bf16.mxu0 0
  %72 = vmatpush2.bf16.msra.mxu0 0
  %73 = vmatprep.subr.bf16.mxu0 0
  %74 = vmatpush2.bf16.msra.mxu0 0
  %75 = vmatprep.subr.bf16.mxu0 0
  %76 = vmatpush2.bf16.msra.mxu0 0
  %77 = vmatprep.subr.bf16.mxu0 0
  %78 = vmatpush2.bf16.msra.mxu0 0
  %79 = vmatprep.subr.bf16.mxu0 0
  %80 = vmatpush2.bf16.msra.mxu0 0
  %81 = vmatprep.subr.bf16.mxu0 0
  %82 = vmatpush2.bf16.msra.mxu0 0
  %83 = vmatprep.subr.bf16.mxu0 0
  %84 = vmatpush2.bf16.msra.mxu0 0
  %85 = vmatprep.mubr.bf16.mxu0 0
  %86 = vmatmul.mubr.bf16.gmra.mxu0 %v51
  %v87 = vpop.f32.mrf.mxu0
  %v88 = vadd.f32 0.0, %v87
  %v89 = vpop.f32.mrf.mxu0
  %v90 = vadd.f32 0.0, %v89
  %v91 = vpop.f32.mrf.mxu0
  %v92 = vadd.f32 0.0, %v91
  %v93 = vpop.f32.mrf.mxu0
  %v94 = vadd.f32 0.0, %v93
  %95 = vdwg.mxu0
  %v96 = vadd.f32 %v26, %v88
  %v97 = vadd.f32 %v27, %v90
  %v98 = vadd.f32 %v28, %v92
  %v99 = vadd.f32 %v29, %v94
  %100 = vst [vmem:[#allocation2] sm:$0xff] %v96
  %101 = vst [vmem:[#allocation2 + $0x8] sm:$0xff] %v97
  %102 = vst [vmem:[#allocation2 + $0x10] sm:$0xff] %v98
  %103 = vst [vmem:[#allocation2 + $0x18] sm:$0xff] %v99
  // Predicated region
  $region22: #{net_need_name_forward.38} parent=0 // pred_check
    %p104 = pneg %p18
  $region23: #{net_need_name_forward.38} parent=0 // pred_check_branch
    %106 = sbr.rel (%p104) target = $region25
  $region24: #{net_need_name_forward.38} parent=0 // pred_region
    %v107 = vld [vmem:[#allocation2] sm:$0xff]
    %v108 = vld [vmem:[#allocation2 + $0x8] sm:$0xff]
    %v109 = vld [vmem:[#allocation2 + $0x10] sm:$0xff]
    %v110 = vld [vmem:[#allocation2 + $0x18] sm:$0xff]
    %v111 = vpack.c.bf16 %v109, %v107
    %v112 = vpack.c.bf16 %v110, %v108
    %v113 = vld [vmem:[%s2] sm:$0xf]
    %v114 = vld [vmem:[%s2 + $0x4] sm:$0xf]
    %v115 = vld [vmem:[%s2 + $0x8] sm:$0xf]
    %v116 = vld [vmem:[%s2 + $0xc] sm:$0xf]
    %v117 = vld [vmem:[%s2 + $0x10] sm:$0xf]
    %v118 = vld [vmem:[%s2 + $0x14] sm:$0xf]
    %v119 = vld [vmem:[%s2 + $0x18] sm:$0xf]
    %v120 = vld [vmem:[%s2 + $0x1c] sm:$0xf]
    %v121 = vld [vmem:[%s2 + $0x20] sm:$0xf]
    %v122 = vld [vmem:[%s2 + $0x24] sm:$0xf]
    %v123 = vld [vmem:[%s2 + $0x28] sm:$0xf]
    %v124 = vld [vmem:[%s2 + $0x2c] sm:$0xf]
    %v125 = vld [vmem:[%s2 + $0x30] sm:$0xf]
    %v126 = vld [vmem:[%s2 + $0x34] sm:$0xf]
    %v127 = vld [vmem:[%s2 + $0x38] sm:$0xf]
    %v128 = vld [vmem:[%s2 + $0x3c] sm:$0xf]
    %v129 = vld [vmem:[%s2 + $0x40] sm:$0xf]
    %v130 = vld [vmem:[%s2 + $0x44] sm:$0xf]
    %v131 = vld [vmem:[%s2 + $0x48] sm:$0xf]
    %v132 = vld [vmem:[%s2 + $0x4c] sm:$0xf]
    %v133 = vld [vmem:[%s2 + $0x50] sm:$0xf]
    %v134 = vld [vmem:[%s2 + $0x54] sm:$0xf]
    %v135 = vld [vmem:[%s2 + $0x58] sm:$0xf]
    %v136 = vld [vmem:[%s2 + $0x5c] sm:$0xf]
    %v137 = vld [vmem:[%s2 + $0x60] sm:$0xf]
    %v138 = vld [vmem:[%s2 + $0x64] sm:$0xf]
    %v139 = vld [vmem:[%s2 + $0x68] sm:$0xf]
    %v140 = vld [vmem:[%s2 + $0x6c] sm:$0xf]
    %v141 = vld [vmem:[%s2 + $0x70] sm:$0xf]
    %v142 = vld [vmem:[%s2 + $0x74] sm:$0xf]
    %v143 = vld [vmem:[%s2 + $0x78] sm:$0xf]
    %v144 = vld [vmem:[%s2 + $0x7c] sm:$0xf]
    %v145 = vld [vmem:[%s3] sm:$0x1]
    %v147 = vlaneseq
    %v148 = vshrl.u32 %v147, 7
    %v149 = vsub.s32 0, %v148
    %v150 = vrot.slane %v145, %v149
    %v184 = vunpack.c.l.b16 %v113
    %v185 = vunpack.c.l.b16 %v114
    %v186 = vunpack.c.l.b16 %v115
    %v187 = vunpack.c.l.b16 %v116
    %v188 = vunpack.c.l.b16 %v117
    %v189 = vunpack.c.l.b16 %v118
    %v190 = vunpack.c.l.b16 %v119
    %v191 = vunpack.c.l.b16 %v120
    %v192 = vunpack.c.l.b16 %v121
    %v193 = vunpack.c.l.b16 %v122
    %v194 = vunpack.c.l.b16 %v123
    %v195 = vunpack.c.l.b16 %v124
    %v196 = vunpack.c.l.b16 %v125
    %v197 = vunpack.c.l.b16 %v126
    %v198 = vunpack.c.l.b16 %v127
    %v199 = vunpack.c.l.b16 %v128
    %v200 = vunpack.c.l.b16 %v129
    %v201 = vunpack.c.l.b16 %v130
    %v202 = vunpack.c.l.b16 %v131
    %v203 = vunpack.c.l.b16 %v132
    %v204 = vunpack.c.l.b16 %v133
    %v205 = vunpack.c.l.b16 %v134
    %v206 = vunpack.c.l.b16 %v135
    %v207 = vunpack.c.l.b16 %v136
    %v208 = vunpack.c.l.b16 %v137
    %v209 = vunpack.c.l.b16 %v138
    %v210 = vunpack.c.l.b16 %v139
    %v211 = vunpack.c.l.b16 %v140
    %v212 = vunpack.c.l.b16 %v141
    %v213 = vunpack.c.l.b16 %v142
    %v214 = vunpack.c.l.b16 %v143
    %v215 = vunpack.c.l.b16 %v144
    %v216 = vpack.c.b16 %v185, %v184
    %v217 = vpack.c.b16 %v187, %v186
    %v218 = vpack.c.b16 %v189, %v188
    %v219 = vpack.c.b16 %v191, %v190
    %v220 = vpack.c.b16 %v193, %v192
    %v221 = vpack.c.b16 %v195, %v194
    %v222 = vpack.c.b16 %v197, %v196
    %v223 = vpack.c.b16 %v199, %v198
    %v224 = vpack.c.b16 %v201, %v200
    %v225 = vpack.c.b16 %v203, %v202
    %v226 = vpack.c.b16 %v205, %v204
    %v227 = vpack.c.b16 %v207, %v206
    %v228 = vpack.c.b16 %v209, %v208
    %v229 = vpack.c.b16 %v211, %v210
    %v230 = vpack.c.b16 %v213, %v212
    %v231 = vpack.c.b16 %v215, %v214
    %248 = vmatprep.subr.bf16.mxu0 0
    %249 = vmatpush1.bf16.msra.mxu0 %v223
    %250 = vmatprep.subr.bf16.mxu0 0
    %251 = vmatpush1.bf16.msra.mxu0 %v222
    %252 = vmatprep.subr.bf16.mxu0 0
    %253 = vmatpush1.bf16.msra.mxu0 %v221
    %254 = vmatprep.subr.bf16.mxu0 0
    %255 = vmatpush1.bf16.msra.mxu0 %v220
    %256 = vmatprep.subr.bf16.mxu0 0
    %257 = vmatpush1.bf16.msra.mxu0 %v219
    %258 = vmatprep.subr.bf16.mxu0 0
    %259 = vmatpush1.bf16.msra.mxu0 %v218
    %260 = vmatprep.subr.bf16.mxu0 0
    %261 = vmatpush1.bf16.msra.mxu0 %v217
    %262 = vmatprep.subr.bf16.mxu0 0
    %263 = vmatpush1.bf16.msra.mxu0 %v216
    %264 = vmatprep.subr.bf16.mxu0 0
    %265 = vmatpush2.bf16.msra.mxu0 %v231
    %266 = vmatprep.subr.bf16.mxu0 0
    %267 = vmatpush2.bf16.msra.mxu0 %v230
    %268 = vmatprep.subr.bf16.mxu0 0
    %269 = vmatpush2.bf16.msra.mxu0 %v229
    %270 = vmatprep.subr.bf16.mxu0 0
    %271 = vmatpush2.bf16.msra.mxu0 %v228
    %272 = vmatprep.subr.bf16.mxu0 0
    %273 = vmatpush2.bf16.msra.mxu0 %v227
    %274 = vmatprep.subr.bf16.mxu0 0
    %275 = vmatpush2.bf16.msra.mxu0 %v226
    %276 = vmatprep.subr.bf16.mxu0 0
    %277 = vmatpush2.bf16.msra.mxu0 %v225
    %278 = vmatprep.subr.bf16.mxu0 0
    %279 = vmatpush2.bf16.msra.mxu0 %v224
    %280 = vmatprep.mubr.bf16.mxu0 %v112
    %281 = vmatmul.mubr.bf16.gmra.mxu0 %v111
    %v282 = vpop.f32.mrf.mxu0
    %v283 = vadd.f32 %v150, %v282
    %v284 = vpop.f32.mrf.mxu0
    %v285 = vpop.f32.mrf.mxu0
    %v286 = vadd.f32 %v150, %v285
    %v287 = vpop.f32.mrf.mxu0
    %288 = vdwg.mxu0
    %v289 = vmax.f32 %v283, 0.0
    %v290 = vmax.f32 %v286, 0.0
    %v291 = vpack.c.bf16 %v290, %v289
    %v293 = vunpack.c.l.b16 %v291
    %v294 = vunpack.c.h.b16 %v291
    %v295 = vpack.c.b16 %v293, %v293
    %v296 = vpack.c.b16 %v294, %v294
    %299 = vst [vmem:[%s4] sm:$0xf] %v295
    %300 = vst [vmem:[%s4 + $0x4] sm:$0xf] %v296
  $region25: #{net_need_name_forward.38} parent=0 // pred_fallthru
    _
  // Predicated region
  $region26: #{net_need_name_forward.38} parent=0 // pred_check
    _
  $region27: #{net_need_name_forward.38} parent=0 // pred_check_branch
    %302 = sbr.rel (0) target = $region29
  $region28: #{net_need_name_forward.38} parent=0 // pred_region
    _
  $region29: #{net_need_name_forward.38} parent=0 // pred_fallthru
    _
  // Predicated region
  $region30: #{net_need_name_forward.38} parent=0 // pred_check
    _
  $region31: #{net_need_name_forward.38} parent=0 // pred_check_branch
    %304 = sbr.rel (0) target = $region33
  $region32: #{net_need_name_forward.38} parent=0 // pred_region
    _
  $region33: #{net_need_name_forward.38} parent=0 // pred_fallthru
    _

// kernel: net_need_name_forward.45
$region0: #{net_need_name_forward.45}
  #allocation0 [shape = 'u32[]', space=smem, size = 0x4, offset = 0x4, fixed_abs, tag = 'smem constant byte address 0x4 - core index']
  #allocation1 [shape = 'u32[144,128]{1,0:T(1,128)}', space=vmem, size = 0x12000, scoped, tag = 'internal scratch']
  %s0 = inlined_call_operand.vmem [shape: bf16[16,128], index: 0, kind: input, shape index: {}]
  %s1 = inlined_call_operand.vmem [shape: bf16[128,256], index: 1, kind: input, shape index: {}]
  %s2 = inlined_call_operand.vmem [shape: f32[1,256], index: 2, kind: input, shape index: {}]
  %s3 = inlined_call_operand.vmem [shape: bf16[16,256], index: 3, kind: output, shape index: {}]
  %s4 = sld [smem:[#allocation0]]
  $region22: #{net_need_name_forward.45} parent=0
    _
  %s6 = ssub.s32 1, %s4
  %s7 = scalar_select 0, %s6, %s4
  // Predicated region
  $region2: #{net_need_name_forward.45} parent=0 // pred_check
    _
  $region3: #{net_need_name_forward.45} parent=0 // pred_check_branch
    %9 = sbr.rel (0) target = $region5
  $region4: #{net_need_name_forward.45} parent=0 // pred_region
    _
  $region5: #{net_need_name_forward.45} parent=0 // pred_fallthru
    _
  // Predicated region
  $region6: #{net_need_name_forward.45} parent=0 // pred_check
    _
  $region7: #{net_need_name_forward.45} parent=0 // pred_check_branch
    %11 = sbr.rel (0) target = $region9
  $region8: #{net_need_name_forward.45} parent=0 // pred_region
    _
  $region9: #{net_need_name_forward.45} parent=0 // pred_fallthru
    _
  // Predicated region
  $region10: #{net_need_name_forward.45} parent=0 // pred_check
    _
  $region11: #{net_need_name_forward.45} parent=0 // pred_check_branch
    %13 = sbr.rel (0) target = $region13
  $region12: #{net_need_name_forward.45} parent=0 // pred_region
    _
  $region13: #{net_need_name_forward.45} parent=0 // pred_fallthru
    _
  %v15 = vld [vmem:[%s0] sm:$0xf]
  %v16 = vld [vmem:[%s0 + $0x4] sm:$0xf]
  %v17 = vld [vmem:[%s1] sm:$0xff]
  %v18 = vld [vmem:[%s1 + $0x8] sm:$0xff]
  %v19 = vld [vmem:[%s1 + $0x10] sm:$0xff]
  %v20 = vld [vmem:[%s1 + $0x18] sm:$0xff]
  %v21 = vld [vmem:[%s1 + $0x20] sm:$0xff]
  %v22 = vld [vmem:[%s1 + $0x28] sm:$0xff]
  %v23 = vld [vmem:[%s1 + $0x30] sm:$0xff]
  %v24 = vld [vmem:[%s1 + $0x38] sm:$0xff]
  %v25 = vld [vmem:[%s1 + $0x40] sm:$0xff]
  %v26 = vld [vmem:[%s1 + $0x48] sm:$0xff]
  %v27 = vld [vmem:[%s1 + $0x50] sm:$0xff]
  %v28 = vld [vmem:[%s1 + $0x58] sm:$0xff]
  %v29 = vld [vmem:[%s1 + $0x60] sm:$0xff]
  %v30 = vld [vmem:[%s1 + $0x68] sm:$0xff]
  %v31 = vld [vmem:[%s1 + $0x70] sm:$0xff]
  %v32 = vld [vmem:[%s1 + $0x78] sm:$0xff]
  %v33 = vld [vmem:[%s2] sm:$0x3]
  %v35 = vlaneseq
  %v36 = vshrl.u32 %v35, 7
  %v37 = vsub.s32 0, %v36
  %v38 = vrot.slane %v33, %v37
  %v39 = vlaneseq
  %v40 = vshrl.u32 %v39, 7
  %v41 = vsub.s32 1, %v40
  %v42 = vrot.slane %v33, %v41
  %v47 = vunpack.c.l.b16 %v15
  %v48 = vunpack.c.l.b16 %v16
  %v49 = vpack.c.b16 %v48, %v47
  %v67 = vunpack.c.l.b16 %v17
  %v68 = vunpack.c.h.b16 %v17
  %v69 = vunpack.c.l.b16 %v18
  %v70 = vunpack.c.h.b16 %v18
  %v71 = vunpack.c.l.b16 %v19
  %v72 = vunpack.c.h.b16 %v19
  %v73 = vunpack.c.l.b16 %v20
  %v74 = vunpack.c.h.b16 %v20
  %v75 = vunpack.c.l.b16 %v21
  %v76 = vunpack.c.h.b16 %v21
  %v77 = vunpack.c.l.b16 %v22
  %v78 = vunpack.c.h.b16 %v22
  %v79 = vunpack.c.l.b16 %v23
  %v80 = vunpack.c.h.b16 %v23
  %v81 = vunpack.c.l.b16 %v24
  %v82 = vunpack.c.h.b16 %v24
  %v83 = vunpack.c.l.b16 %v25
  %v84 = vunpack.c.h.b16 %v25
  %v85 = vunpack.c.l.b16 %v26
  %v86 = vunpack.c.h.b16 %v26
  %v87 = vunpack.c.l.b16 %v27
  %v88 = vunpack.c.h.b16 %v27
  %v89 = vunpack.c.l.b16 %v28
  %v90 = vunpack.c.h.b16 %v28
  %v91 = vunpack.c.l.b16 %v29
  %v92 = vunpack.c.h.b16 %v29
  %v93 = vunpack.c.l.b16 %v30
  %v94 = vunpack.c.h.b16 %v30
  %v95 = vunpack.c.l.b16 %v31
  %v96 = vunpack.c.h.b16 %v31
  %v97 = vunpack.c.l.b16 %v32
  %v98 = vunpack.c.h.b16 %v32
  %v99 = vpack.c.b16 %v69, %v67
  %v100 = vpack.c.b16 %v70, %v68
  %v101 = vpack.c.b16 %v73, %v71
  %v102 = vpack.c.b16 %v74, %v72
  %v103 = vpack.c.b16 %v77, %v75
  %v104 = vpack.c.b16 %v78, %v76
  %v105 = vpack.c.b16 %v81, %v79
  %v106 = vpack.c.b16 %v82, %v80
  %v107 = vpack.c.b16 %v85, %v83
  %v108 = vpack.c.b16 %v86, %v84
  %v109 = vpack.c.b16 %v89, %v87
  %v110 = vpack.c.b16 %v90, %v88
  %v111 = vpack.c.b16 %v93, %v91
  %v112 = vpack.c.b16 %v94, %v92
  %v113 = vpack.c.b16 %v97, %v95
  %v114 = vpack.c.b16 %v98, %v96
  %131 = vmatprep.subr.bf16.mxu0 %v114
  %132 = vmatpush1.bf16.msra.mxu0 %v113
  %133 = vmatprep.subr.bf16.mxu0 %v112
  %134 = vmatpush1.bf16.msra.mxu0 %v111
  %135 = vmatprep.subr.bf16.mxu0 %v110
  %136 = vmatpush1.bf16.msra.mxu0 %v109
  %137 = vmatprep.subr.bf16.mxu0 %v108
  %138 = vmatpush1.bf16.msra.mxu0 %v107
  %139 = vmatprep.subr.bf16.mxu0 %v106
  %140 = vmatpush1.bf16.msra.mxu0 %v105
  %141 = vmatprep.subr.bf16.mxu0 %v104
  %142 = vmatpush1.bf16.msra.mxu0 %v103
  %143 = vmatprep.subr.bf16.mxu0 %v102
  %144 = vmatpush1.bf16.msra.mxu0 %v101
  %145 = vmatprep.subr.bf16.mxu0 %v100
  %146 = vmatpush1.bf16.msra.mxu0 %v99
  %147 = vmatprep.subr.bf16.mxu0 0
  %148 = vmatpush2.bf16.msra.mxu0 0
  %149 = vmatprep.subr.bf16.mxu0 0
  %150 = vmatpush2.bf16.msra.mxu0 0
  %151 = vmatprep.subr.bf16.mxu0 0
  %152 = vmatpush2.bf16.msra.mxu0 0
  %153 = vmatprep.subr.bf16.mxu0 0
  %154 = vmatpush2.bf16.msra.mxu0 0
  %155 = vmatprep.subr.bf16.mxu0 0
  %156 = vmatpush2.bf16.msra.mxu0 0
  %157 = vmatprep.subr.bf16.mxu0 0
  %158 = vmatpush2.bf16.msra.mxu0 0
  %159 = vmatprep.subr.bf16.mxu0 0
  %160 = vmatpush2.bf16.msra.mxu0 0
  %161 = vmatprep.subr.bf16.mxu0 0
  %162 = vmatpush2.bf16.msra.mxu0 0
  %163 = vmatprep.mubr.bf16.mxu0 0
  %164 = vmatmul.mubr.bf16.gmra.mxu0 %v49
  %v165 = vpop.f32.mrf.mxu0
  %v166 = vadd.f32 %v38, %v165
  %v167 = vpop.f32.mrf.mxu0
  %v168 = vadd.f32 %v42, %v167
  %v169 = vpop.f32.mrf.mxu0
  %v170 = vadd.f32 %v38, %v169
  %v171 = vpop.f32.mrf.mxu0
  %v172 = vadd.f32 %v42, %v171
  %173 = vdwg.mxu0
  %v174 = vmax.f32 %v166, 0.0
  %v175 = vmax.f32 %v168, 0.0
  %v176 = vmax.f32 %v170, 0.0
  %v177 = vmax.f32 %v172, 0.0
  %v178 = vpack.c.bf16 %v176, %v174
  %v179 = vpack.c.bf16 %v177, %v175
  %v182 = vunpack.c.l.b16 %v178
  %v183 = vunpack.c.l.b16 %v179
  %v184 = vunpack.c.h.b16 %v178
  %v185 = vunpack.c.h.b16 %v179
  %v186 = vpack.c.b16 %v183, %v182
  %v187 = vpack.c.b16 %v185, %v184
  %190 = vst [vmem:[%s3] sm:$0xff] %v186
  %191 = vst [vmem:[%s3 + $0x8] sm:$0xff] %v187
  // Predicated region
  $region14: #{net_need_name_forward.45} parent=0 // pred_check
    _
  $region15: #{net_need_name_forward.45} parent=0 // pred_check_branch
    %193 = sbr.rel (0) target = $region17
  $region16: #{net_need_name_forward.45} parent=0 // pred_region
    _
  $region17: #{net_need_name_forward.45} parent=0 // pred_fallthru
    _
  // Predicated region
  $region18: #{net_need_name_forward.45} parent=0 // pred_check
    _
  $region19: #{net_need_name_forward.45} parent=0 // pred_check_branch
    %195 = sbr.rel (0) target = $region21
  $region20: #{net_need_name_forward.45} parent=0 // pred_region
    _
  $region21: #{net_need_name_forward.45} parent=0 // pred_fallthru
    _

// kernel: net_need_name_forward.39
$region0: #{net_need_name_forward.39}
  #allocation0 [shape = 'u32[]', space=smem, size = 0x4, offset = 0x4, fixed_abs, tag = 'smem constant byte address 0x4 - core index']
  #allocation1 [shape = 'u32[144,128]{1,0:T(1,128)}', space=vmem, size = 0x12000, scoped, tag = 'internal scratch']
  #allocation2 [shape = 'f32[16,128]{1,0:T(8,128)}', space=vmem, size = 0x2000, scoped, tag = 'scratch operand']
  %s0 = inlined_call_operand.vmem [shape: bf16[16,16], index: 0, kind: input, shape index: {}]
  %s1 = inlined_call_operand.vmem [shape: bf16[16,128], index: 1, kind: input, shape index: {}, may-alias: {1,2}]
  %s2 = inlined_call_operand.vmem [shape: bf16[16,128], index: 2, kind: input, shape index: {}, may-alias: {1,2}]
  %s3 = inlined_call_operand.vmem [shape: bf16[128,128], index: 3, kind: input, shape index: {}]
  %s4 = inlined_call_operand.vmem [shape: bf16[128,128], index: 4, kind: input, shape index: {}]
  %s5 = inlined_call_operand.vmem [shape: f32[1,128], index: 5, kind: input, shape index: {}]
  %s6 = inlined_call_operand.vmem [shape: f32[16,128], index: 6, kind: output, shape index: {}]
  %s7 = sld [smem:[#allocation0]]
  $region42: #{net_need_name_forward.39} parent=0
    _
  %s9 = ssub.s32 1, %s7
  %s10 = scalar_select 0, %s9, %s7
  // Predicated region
  $region2: #{net_need_name_forward.39} parent=0 // pred_check
    _
  $region3: #{net_need_name_forward.39} parent=0 // pred_check_branch
    %12 = sbr.rel (0) target = $region5
  $region4: #{net_need_name_forward.39} parent=0 // pred_region
    _
  $region5: #{net_need_name_forward.39} parent=0 // pred_fallthru
    _
  // Predicated region
  $region6: #{net_need_name_forward.39} parent=0 // pred_check
    _
  $region7: #{net_need_name_forward.39} parent=0 // pred_check_branch
    %14 = sbr.rel (0) target = $region9
  $region8: #{net_need_name_forward.39} parent=0 // pred_region
    _
  $region9: #{net_need_name_forward.39} parent=0 // pred_fallthru
    _
  // Predicated region
  $region10: #{net_need_name_forward.39} parent=0 // pred_check
    _
  $region11: #{net_need_name_forward.39} parent=0 // pred_check_branch
    %16 = sbr.rel (0) target = $region13
  $region12: #{net_need_name_forward.39} parent=0 // pred_region
    _
  $region13: #{net_need_name_forward.39} parent=0 // pred_fallthru
    _
  // Predicated region
  $region14: #{net_need_name_forward.39} parent=0 // pred_check
    _
  $region15: #{net_need_name_forward.39} parent=0 // pred_check_branch
    %18 = sbr.rel (0) target = $region17
  $region16: #{net_need_name_forward.39} parent=0 // pred_region
    _
  $region17: #{net_need_name_forward.39} parent=0 // pred_fallthru
    _
  // Predicated region
  $region18: #{net_need_name_forward.39} parent=0 // pred_check
    _
  $region19: #{net_need_name_forward.39} parent=0 // pred_check_branch
    %20 = sbr.rel (0) target = $region21
  $region20: #{net_need_name_forward.39} parent=0 // pred_region
    _
  $region21: #{net_need_name_forward.39} parent=0 // pred_fallthru
    _
  // Predicated region
  $region22: #{net_need_name_forward.39} parent=0 // pred_check
    _
  $region23: #{net_need_name_forward.39} parent=0 // pred_check_branch
    %22 = sbr.rel (0) target = $region25
  $region24: #{net_need_name_forward.39} parent=0 // pred_region
    _
  $region25: #{net_need_name_forward.39} parent=0 // pred_fallthru
    _
  %p24 = scmp.eq.s32.totalorder 0, 0
  // Predicated region
  $region26: #{net_need_name_forward.39} parent=0 // pred_check
    %p25 = pneg %p24
  $region27: #{net_need_name_forward.39} parent=0 // pred_check_branch
    %27 = sbr.rel (%p25) target = $region29
  $region28: #{net_need_name_forward.39} parent=0 // pred_region
    %28 = vst [vmem:[#allocation2] sm:$0xff] 0.0
    %29 = vst [vmem:[#allocation2 + $0x8] sm:$0xff] 0.0
  $region29: #{net_need_name_forward.39} parent=0 // pred_fallthru
    _
  %v30 = vld [vmem:[#allocation2] sm:$0xff]
  %v31 = vld [vmem:[#allocation2 + $0x8] sm:$0xff]
  %v32 = vld [vmem:[%s0] sm:$0xf]
  %v33 = vld [vmem:[%s0 + $0x4] sm:$0xf]
  %v34 = vld [vmem:[%s1] sm:$0xf]
  %v35 = vld [vmem:[%s1 + $0x4] sm:$0xf]
  %v38 = vunpack.c.l.b16 %v32
  %v39 = vunpack.c.l.b16 %v33
  %v40 = vpack.c.b16 %v39, %v38
  %v43 = vunpack.c.l.b16 %v34
  %v44 = vunpack.c.l.b16 %v35
  %v45 = vpack.c.b16 %v44, %v43
  %vm47 = vcmask 130048
  %v49 = vsel %vm47, %v40, 0
  %51 = vmatprep.subr.bf16.mxu0 0
  %52 = vmatpush1.bf16.msra.mxu0 0
  %53 = vmatprep.subr.bf16.mxu0 0
  %54 = vmatpush1.bf16.msra.mxu0 0
  %55 = vmatprep.subr.bf16.mxu0 0
  %56 = vmatpush1.bf16.msra.mxu0 0
  %57 = vmatprep.subr.bf16.mxu0 0
  %58 = vmatpush1.bf16.msra.mxu0 0
  %59 = vmatprep.subr.bf16.mxu0 0
  %60 = vmatpush1.bf16.msra.mxu0 0
  %61 = vmatprep.subr.bf16.mxu0 0
  %62 = vmatpush1.bf16.msra.mxu0 0
  %63 = vmatprep.subr.bf16.mxu0 0
  %64 = vmatpush1.bf16.msra.mxu0 0
  %65 = vmatprep.subr.bf16.mxu0 0
  %66 = vmatpush1.bf16.msra.mxu0 %v45
  %67 = vmatprep.subr.bf16.mxu0 0
  %68 = vmatpush2.bf16.msra.mxu0 0
  %69 = vmatprep.subr.bf16.mxu0 0
  %70 = vmatpush2.bf16.msra.mxu0 0
  %71 = vmatprep.subr.bf16.mxu0 0
  %72 = vmatpush2.bf16.msra.mxu0 0
  %73 = vmatprep.subr.bf16.mxu0 0
  %74 = vmatpush2.bf16.msra.mxu0 0
  %75 = vmatprep.subr.bf16.mxu0 0
  %76 = vmatpush2.bf16.msra.mxu0 0
  %77 = vmatprep.subr.bf16.mxu0 0
  %78 = vmatpush2.bf16.msra.mxu0 0
  %79 = vmatprep.subr.bf16.mxu0 0
  %80 = vmatpush2.bf16.msra.mxu0 0
  %81 = vmatprep.subr.bf16.mxu0 0
  %82 = vmatpush2.bf16.msra.mxu0 0
  %83 = vmatprep.mubr.bf16.mxu0 0
  %84 = vmatmul.mubr.bf16.gmra.mxu0 %v49
  %v85 = vpop.f32.mrf.mxu0
  %v86 = vadd.f32 0.0, %v85
  %v87 = vpop.f32.mrf.mxu0
  %v88 = vpop.f32.mrf.mxu0
  %v89 = vadd.f32 0.0, %v88
  %v90 = vpop.f32.mrf.mxu0
  %91 = vdwg.mxu0
  %v92 = vadd.f32 %v30, %v86
  %v93 = vadd.f32 %v31, %v89
  %94 = vst [vmem:[#allocation2] sm:$0xff] %v92
  %95 = vst [vmem:[#allocation2 + $0x8] sm:$0xff] %v93
  // Predicated region
  $region30: #{net_need_name_forward.39} parent=0 // pred_check
    %p96 = pneg %p24
  $region31: #{net_need_name_forward.39} parent=0 // pred_check_branch
    %98 = sbr.rel (%p96) target = $region33
  $region32: #{net_need_name_forward.39} parent=0 // pred_region
    %v99 = vld [vmem:[#allocation2] sm:$0xff]
    %v100 = vld [vmem:[#allocation2 + $0x8] sm:$0xff]
    %v101 = vpack.c.bf16 %v100, %v99
    %v102 = vld [vmem:[%s3] sm:$0xf]
    %v103 = vld [vmem:[%s3 + $0x4] sm:$0xf]
    %v104 = vld [vmem:[%s3 + $0x8] sm:$0xf]
    %v105 = vld [vmem:[%s3 + $0xc] sm:$0xf]
    %v106 = vld [vmem:[%s3 + $0x10] sm:$0xf]
    %v107 = vld [vmem:[%s3 + $0x14] sm:$0xf]
    %v108 = vld [vmem:[%s3 + $0x18] sm:$0xf]
    %v109 = vld [vmem:[%s3 + $0x1c] sm:$0xf]
    %v110 = vld [vmem:[%s3 + $0x20] sm:$0xf]
    %v111 = vld [vmem:[%s3 + $0x24] sm:$0xf]
    %v112 = vld [vmem:[%s3 + $0x28] sm:$0xf]
    %v113 = vld [vmem:[%s3 + $0x2c] sm:$0xf]
    %v114 = vld [vmem:[%s3 + $0x30] sm:$0xf]
    %v115 = vld [vmem:[%s3 + $0x34] sm:$0xf]
    %v116 = vld [vmem:[%s3 + $0x38] sm:$0xf]
    %v117 = vld [vmem:[%s3 + $0x3c] sm:$0xf]
    %v118 = vld [vmem:[%s2] sm:$0xf]
    %v119 = vld [vmem:[%s2 + $0x4] sm:$0xf]
    %v120 = vld [vmem:[%s4] sm:$0xf]
    %v121 = vld [vmem:[%s4 + $0x4] sm:$0xf]
    %v122 = vld [vmem:[%s4 + $0x8] sm:$0xf]
    %v123 = vld [vmem:[%s4 + $0xc] sm:$0xf]
    %v124 = vld [vmem:[%s4 + $0x10] sm:$0xf]
    %v125 = vld [vmem:[%s4 + $0x14] sm:$0xf]
    %v126 = vld [vmem:[%s4 + $0x18] sm:$0xf]
    %v127 = vld [vmem:[%s4 + $0x1c] sm:$0xf]
    %v128 = vld [vmem:[%s4 + $0x20] sm:$0xf]
    %v129 = vld [vmem:[%s4 + $0x24] sm:$0xf]
    %v130 = vld [vmem:[%s4 + $0x28] sm:$0xf]
    %v131 = vld [vmem:[%s4 + $0x2c] sm:$0xf]
    %v132 = vld [vmem:[%s4 + $0x30] sm:$0xf]
    %v133 = vld [vmem:[%s4 + $0x34] sm:$0xf]
    %v134 = vld [vmem:[%s4 + $0x38] sm:$0xf]
    %v135 = vld [vmem:[%s4 + $0x3c] sm:$0xf]
    %v138 = vunpack.c.l.b16 %v118
    %v139 = vunpack.c.l.b16 %v119
    %v140 = vpack.c.b16 %v139, %v138
    %v158 = vunpack.c.l.b16 %v120
    %v159 = vunpack.c.l.b16 %v121
    %v160 = vunpack.c.l.b16 %v122
    %v161 = vunpack.c.l.b16 %v123
    %v162 = vunpack.c.l.b16 %v124
    %v163 = vunpack.c.l.b16 %v125
    %v164 = vunpack.c.l.b16 %v126
    %v165 = vunpack.c.l.b16 %v127
    %v166 = vunpack.c.l.b16 %v128
    %v167 = vunpack.c.l.b16 %v129
    %v168 = vunpack.c.l.b16 %v130
    %v169 = vunpack.c.l.b16 %v131
    %v170 = vunpack.c.l.b16 %v132
    %v171 = vunpack.c.l.b16 %v133
    %v172 = vunpack.c.l.b16 %v134
    %v173 = vunpack.c.l.b16 %v135
    %v174 = vpack.c.b16 %v159, %v158
    %v175 = vpack.c.b16 %v161, %v160
    %v176 = vpack.c.b16 %v163, %v162
    %v177 = vpack.c.b16 %v165, %v164
    %v178 = vpack.c.b16 %v167, %v166
    %v179 = vpack.c.b16 %v169, %v168
    %v180 = vpack.c.b16 %v171, %v170
    %v181 = vpack.c.b16 %v173, %v172
    %190 = vmatprep.subr.bf16.mxu0 0
    %191 = vmatpush1.bf16.msra.mxu0 %v181
    %192 = vmatprep.subr.bf16.mxu0 0
    %193 = vmatpush1.bf16.msra.mxu0 %v180
    %194 = vmatprep.subr.bf16.mxu0 0
    %195 = vmatpush1.bf16.msra.mxu0 %v179
    %196 = vmatprep.subr.bf16.mxu0 0
    %197 = vmatpush1.bf16.msra.mxu0 %v178
    %198 = vmatprep.subr.bf16.mxu0 0
    %199 = vmatpush1.bf16.msra.mxu0 %v177
    %200 = vmatprep.subr.bf16.mxu0 0
    %201 = vmatpush1.bf16.msra.mxu0 %v176
    %202 = vmatprep.subr.bf16.mxu0 0
    %203 = vmatpush1.bf16.msra.mxu0 %v175
    %204 = vmatprep.subr.bf16.mxu0 0
    %205 = vmatpush1.bf16.msra.mxu0 %v174
    %206 = vmatprep.subr.bf16.mxu0 0
    %207 = vmatpush2.bf16.msra.mxu0 0
    %208 = vmatprep.subr.bf16.mxu0 0
    %209 = vmatpush2.bf16.msra.mxu0 0
    %210 = vmatprep.subr.bf16.mxu0 0
    %211 = vmatpush2.bf16.msra.mxu0 0
    %212 = vmatprep.subr.bf16.mxu0 0
    %213 = vmatpush2.bf16.msra.mxu0 0
    %214 = vmatprep.subr.bf16.mxu0 0
    %215 = vmatpush2.bf16.msra.mxu0 0
    %216 = vmatprep.subr.bf16.mxu0 0
    %217 = vmatpush2.bf16.msra.mxu0 0
    %218 = vmatprep.subr.bf16.mxu0 0
    %219 = vmatpush2.bf16.msra.mxu0 0
    %220 = vmatprep.subr.bf16.mxu0 0
    %221 = vmatpush2.bf16.msra.mxu0 0
    %222 = vmatprep.mubr.bf16.mxu0 0
    %223 = vmatmul.mubr.bf16.gmra.mxu0 %v140
    %v224 = vpop.f32.mrf.mxu0
    %v225 = vadd.f32 0.0, %v224
    %v226 = vpop.f32.mrf.mxu0
    %v227 = vpop.f32.mrf.mxu0
    %v228 = vadd.f32 0.0, %v227
    %v229 = vpop.f32.mrf.mxu0
    %230 = vdwg.mxu0
    %v247 = vunpack.c.l.b16 %v102
    %v248 = vunpack.c.l.b16 %v103
    %v249 = vunpack.c.l.b16 %v104
    %v250 = vunpack.c.l.b16 %v105
    %v251 = vunpack.c.l.b16 %v106
    %v252 = vunpack.c.l.b16 %v107
    %v253 = vunpack.c.l.b16 %v108
    %v254 = vunpack.c.l.b16 %v109
    %v255 = vunpack.c.l.b16 %v110
    %v256 = vunpack.c.l.b16 %v111
    %v257 = vunpack.c.l.b16 %v112
    %v258 = vunpack.c.l.b16 %v113
    %v259 = vunpack.c.l.b16 %v114
    %v260 = vunpack.c.l.b16 %v115
    %v261 = vunpack.c.l.b16 %v116
    %v262 = vunpack.c.l.b16 %v117
    %v263 = vpack.c.b16 %v248, %v247
    %v264 = vpack.c.b16 %v250, %v249
    %v265 = vpack.c.b16 %v252, %v251
    %v266 = vpack.c.b16 %v254, %v253
    %v267 = vpack.c.b16 %v256, %v255
    %v268 = vpack.c.b16 %v258, %v257
    %v269 = vpack.c.b16 %v260, %v259
    %v270 = vpack.c.b16 %v262, %v261
    %279 = vmatprep.subr.bf16.mxu0 0
    %280 = vmatpush1.bf16.msra.mxu0 %v270
    %281 = vmatprep.subr.bf16.mxu0 0
    %282 = vmatpush1.bf16.msra.mxu0 %v269
    %283 = vmatprep.subr.bf16.mxu0 0
    %284 = vmatpush1.bf16.msra.mxu0 %v268
    %285 = vmatprep.subr.bf16.mxu0 0
    %286 = vmatpush1.bf16.msra.mxu0 %v267
    %287 = vmatprep.subr.bf16.mxu0 0
    %288 = vmatpush1.bf16.msra.mxu0 %v266
    %289 = vmatprep.subr.bf16.mxu0 0
    %290 = vmatpush1.bf16.msra.mxu0 %v265
    %291 = vmatprep.subr.bf16.mxu0 0
    %292 = vmatpush1.bf16.msra.mxu0 %v264
    %293 = vmatprep.subr.bf16.mxu0 0
    %294 = vmatpush1.bf16.msra.mxu0 %v263
    %295 = vmatprep.subr.bf16.mxu0 0
    %296 = vmatpush2.bf16.msra.mxu0 0
    %297 = vmatprep.subr.bf16.mxu0 0
    %298 = vmatpush2.bf16.msra.mxu0 0
    %299 = vmatprep.subr.bf16.mxu0 0
    %300 = vmatpush2.bf16.msra.mxu0 0
    %301 = vmatprep.subr.bf16.mxu0 0
    %302 = vmatpush2.bf16.msra.mxu0 0
    %303 = vmatprep.subr.bf16.mxu0 0
    %304 = vmatpush2.bf16.msra.mxu0 0
    %305 = vmatprep.subr.bf16.mxu0 0
    %306 = vmatpush2.bf16.msra.mxu0 0
    %307 = vmatprep.subr.bf16.mxu0 0
    %308 = vmatpush2.bf16.msra.mxu0 0
    %309 = vmatprep.subr.bf16.mxu0 0
    %310 = vmatpush2.bf16.msra.mxu0 0
    %311 = vmatprep.mubr.bf16.mxu0 0
    %312 = vmatmul.mubr.bf16.gmra.mxu0 %v101
    %v313 = vpop.f32.mrf.mxu0
    %v314 = vadd.f32 %v225, %v313
    %v315 = vpop.f32.mrf.mxu0
    %v316 = vpop.f32.mrf.mxu0
    %v317 = vadd.f32 %v228, %v316
    %v318 = vpop.f32.mrf.mxu0
    %319 = vdwg.mxu0
    %v320 = vld [vmem:[%s5] sm:$0x1]
    %v322 = vlaneseq
    %v323 = vshrl.u32 %v322, 7
    %v324 = vsub.s32 0, %v323
    %v325 = vrot.slane %v320, %v324
    %v327 = vadd.f32 %v314, %v325
    %v328 = vadd.f32 %v317, %v325
    %v329 = vmax.f32 %v327, 0.0
    %v330 = vmax.f32 %v328, 0.0
    %331 = vst [vmem:[%s6] sm:$0xff] %v329
    %332 = vst [vmem:[%s6 + $0x8] sm:$0xff] %v330
  $region33: #{net_need_name_forward.39} parent=0 // pred_fallthru
    _
  // Predicated region
  $region34: #{net_need_name_forward.39} parent=0 // pred_check
    _
  $region35: #{net_need_name_forward.39} parent=0 // pred_check_branch
    %334 = sbr.rel (0) target = $region37
  $region36: #{net_need_name_forward.39} parent=0 // pred_region
    _
  $region37: #{net_need_name_forward.39} parent=0 // pred_fallthru
    _
  // Predicated region
  $region38: #{net_need_name_forward.39} parent=0 // pred_check
    _
  $region39: #{net_need_name_forward.39} parent=0 // pred_check_branch
    %336 = sbr.rel (0) target = $region41
  $region40: #{net_need_name_forward.39} parent=0 // pred_region
    _
  $region41: #{net_need_name_forward.39} parent=0 // pred_fallthru
    _

// kernel: net_need_name_forward.47
$region0: #{net_need_name_forward.47}
  #allocation0 [shape = 'u32[]', space=smem, size = 0x4, offset = 0x4, fixed_abs, tag = 'smem constant byte address 0x4 - core index']
  #allocation1 [shape = 'u32[144,128]{1,0:T(1,128)}', space=vmem, size = 0x12000, scoped, tag = 'internal scratch']
  %s0 = inlined_call_operand.vmem [shape: bf16[16,128], index: 0, kind: input, shape index: {}]
  %s1 = inlined_call_operand.vmem [shape: bf16[128,128], index: 1, kind: input, shape index: {}]
  %s2 = inlined_call_operand.vmem [shape: f32[1,128], index: 2, kind: input, shape index: {}]
  %s3 = inlined_call_operand.vmem [shape: bf16[16,128], index: 3, kind: output, shape index: {}]
  %s4 = sld [smem:[#allocation0]]
  $region22: #{net_need_name_forward.47} parent=0
    _
  %s6 = ssub.s32 1, %s4
  %s7 = scalar_select 0, %s6, %s4
  // Predicated region
  $region2: #{net_need_name_forward.47} parent=0 // pred_check
    _
  $region3: #{net_need_name_forward.47} parent=0 // pred_check_branch
    %9 = sbr.rel (0) target = $region5
  $region4: #{net_need_name_forward.47} parent=0 // pred_region
    _
  $region5: #{net_need_name_forward.47} parent=0 // pred_fallthru
    _
  // Predicated region
  $region6: #{net_need_name_forward.47} parent=0 // pred_check
    _
  $region7: #{net_need_name_forward.47} parent=0 // pred_check_branch
    %11 = sbr.rel (0) target = $region9
  $region8: #{net_need_name_forward.47} parent=0 // pred_region
    _
  $region9: #{net_need_name_forward.47} parent=0 // pred_fallthru
    _
  // Predicated region
  $region10: #{net_need_name_forward.47} parent=0 // pred_check
    _
  $region11: #{net_need_name_forward.47} parent=0 // pred_check_branch
    %13 = sbr.rel (0) target = $region13
  $region12: #{net_need_name_forward.47} parent=0 // pred_region
    _
  $region13: #{net_need_name_forward.47} parent=0 // pred_fallthru
    _
  %v15 = vld [vmem:[%s0] sm:$0xf]
  %v16 = vld [vmem:[%s0 + $0x4] sm:$0xf]
  %v17 = vld [vmem:[%s1] sm:$0xf]
  %v18 = vld [vmem:[%s1 + $0x4] sm:$0xf]
  %v19 = vld [vmem:[%s1 + $0x8] sm:$0xf]
  %v20 = vld [vmem:[%s1 + $0xc] sm:$0xf]
  %v21 = vld [vmem:[%s1 + $0x10] sm:$0xf]
  %v22 = vld [vmem:[%s1 + $0x14] sm:$0xf]
  %v23 = vld [vmem:[%s1 + $0x18] sm:$0xf]
  %v24 = vld [vmem:[%s1 + $0x1c] sm:$0xf]
  %v25 = vld [vmem:[%s1 + $0x20] sm:$0xf]
  %v26 = vld [vmem:[%s1 + $0x24] sm:$0xf]
  %v27 = vld [vmem:[%s1 + $0x28] sm:$0xf]
  %v28 = vld [vmem:[%s1 + $0x2c] sm:$0xf]
  %v29 = vld [vmem:[%s1 + $0x30] sm:$0xf]
  %v30 = vld [vmem:[%s1 + $0x34] sm:$0xf]
  %v31 = vld [vmem:[%s1 + $0x38] sm:$0xf]
  %v32 = vld [vmem:[%s1 + $0x3c] sm:$0xf]
  %v33 = vld [vmem:[%s2] sm:$0x1]
  %v35 = vlaneseq
  %v36 = vshrl.u32 %v35, 7
  %v37 = vsub.s32 0, %v36
  %v38 = vrot.slane %v33, %v37
  %v42 = vunpack.c.l.b16 %v15
  %v43 = vunpack.c.l.b16 %v16
  %v44 = vpack.c.b16 %v43, %v42
  %v62 = vunpack.c.l.b16 %v17
  %v63 = vunpack.c.l.b16 %v18
  %v64 = vunpack.c.l.b16 %v19
  %v65 = vunpack.c.l.b16 %v20
  %v66 = vunpack.c.l.b16 %v21
  %v67 = vunpack.c.l.b16 %v22
  %v68 = vunpack.c.l.b16 %v23
  %v69 = vunpack.c.l.b16 %v24
  %v70 = vunpack.c.l.b16 %v25
  %v71 = vunpack.c.l.b16 %v26
  %v72 = vunpack.c.l.b16 %v27
  %v73 = vunpack.c.l.b16 %v28
  %v74 = vunpack.c.l.b16 %v29
  %v75 = vunpack.c.l.b16 %v30
  %v76 = vunpack.c.l.b16 %v31
  %v77 = vunpack.c.l.b16 %v32
  %v78 = vpack.c.b16 %v63, %v62
  %v79 = vpack.c.b16 %v65, %v64
  %v80 = vpack.c.b16 %v67, %v66
  %v81 = vpack.c.b16 %v69, %v68
  %v82 = vpack.c.b16 %v71, %v70
  %v83 = vpack.c.b16 %v73, %v72
  %v84 = vpack.c.b16 %v75, %v74
  %v85 = vpack.c.b16 %v77, %v76
  %94 = vmatprep.subr.bf16.mxu0 0
  %95 = vmatpush1.bf16.msra.mxu0 %v85
  %96 = vmatprep.subr.bf16.mxu0 0
  %97 = vmatpush1.bf16.msra.mxu0 %v84
  %98 = vmatprep.subr.bf16.mxu0 0
  %99 = vmatpush1.bf16.msra.mxu0 %v83
  %100 = vmatprep.subr.bf16.mxu0 0
  %101 = vmatpush1.bf16.msra.mxu0 %v82
  %102 = vmatprep.subr.bf16.mxu0 0
  %103 = vmatpush1.bf16.msra.mxu0 %v81
  %104 = vmatprep.subr.bf16.mxu0 0
  %105 = vmatpush1.bf16.msra.mxu0 %v80
  %106 = vmatprep.subr.bf16.mxu0 0
  %107 = vmatpush1.bf16.msra.mxu0 %v79
  %108 = vmatprep.subr.bf16.mxu0 0
  %109 = vmatpush1.bf16.msra.mxu0 %v78
  %110 = vmatprep.subr.bf16.mxu0 0
  %111 = vmatpush2.bf16.msra.mxu0 0
  %112 = vmatprep.subr.bf16.mxu0 0
  %113 = vmatpush2.bf16.msra.mxu0 0
  %114 = vmatprep.subr.bf16.mxu0 0
  %115 = vmatpush2.bf16.msra.mxu0 0
  %116 = vmatprep.subr.bf16.mxu0 0
  %117 = vmatpush2.bf16.msra.mxu0 0
  %118 = vmatprep.subr.bf16.mxu0 0
  %119 = vmatpush2.bf16.msra.mxu0 0
  %120 = vmatprep.subr.bf16.mxu0 0
  %121 = vmatpush2.bf16.msra.mxu0 0
  %122 = vmatprep.subr.bf16.mxu0 0
  %123 = vmatpush2.bf16.msra.mxu0 0
  %124 = vmatprep.subr.bf16.mxu0 0
  %125 = vmatpush2.bf16.msra.mxu0 0
  %126 = vmatprep.mubr.bf16.mxu0 0
  %127 = vmatmul.mubr.bf16.gmra.mxu0 %v44
  %v128 = vpop.f32.mrf.mxu0
  %v129 = vadd.f32 %v38, %v128
  %v130 = vpop.f32.mrf.mxu0
  %v131 = vpop.f32.mrf.mxu0
  %v132 = vadd.f32 %v38, %v131
  %v133 = vpop.f32.mrf.mxu0
  %134 = vdwg.mxu0
  %v135 = vmax.f32 %v129, 0.0
  %v136 = vmax.f32 %v132, 0.0
  %v137 = vpack.c.bf16 %v136, %v135
  %v139 = vunpack.c.l.b16 %v137
  %v140 = vunpack.c.h.b16 %v137
  %v141 = vpack.c.b16 %v139, %v139
  %v142 = vpack.c.b16 %v140, %v140
  %145 = vst [vmem:[%s3] sm:$0xf] %v141
  %146 = vst [vmem:[%s3 + $0x4] sm:$0xf] %v142
  // Predicated region
  $region14: #{net_need_name_forward.47} parent=0 // pred_check
    _
  $region15: #{net_need_name_forward.47} parent=0 // pred_check_branch
    %148 = sbr.rel (0) target = $region17
  $region16: #{net_need_name_forward.47} parent=0 // pred_region
    _
  $region17: #{net_need_name_forward.47} parent=0 // pred_fallthru
    _
  // Predicated region
  $region18: #{net_need_name_forward.47} parent=0 // pred_check
    _
  $region19: #{net_need_name_forward.47} parent=0 // pred_check_branch
    %150 = sbr.rel (0) target = $region21
  $region20: #{net_need_name_forward.47} parent=0 // pred_region
    _
  $region21: #{net_need_name_forward.47} parent=0 // pred_fallthru
    _

// kernel: net_need_name_forward.46
$region0: #{net_need_name_forward.46}
  #allocation0 [shape = 'u32[]', space=smem, size = 0x4, offset = 0x4, fixed_abs, tag = 'smem constant byte address 0x4 - core index']
  #allocation1 [shape = 'u32[144,128]{1,0:T(1,128)}', space=vmem, size = 0x12000, scoped, tag = 'internal scratch']
  %s0 = inlined_call_operand.vmem [shape: bf16[16,256], index: 0, kind: input, shape index: {}]
  %s1 = inlined_call_operand.vmem [shape: bf16[256,128], index: 1, kind: input, shape index: {}]
  %s2 = inlined_call_operand.vmem [shape: f32[1,128], index: 2, kind: input, shape index: {}]
  %s3 = inlined_call_operand.vmem [shape: bf16[16,128], index: 3, kind: output, shape index: {}]
  %s4 = sld [smem:[#allocation0]]
  $region22: #{net_need_name_forward.46} parent=0
    _
  %s6 = ssub.s32 1, %s4
  %s7 = scalar_select 0, %s6, %s4
  // Predicated region
  $region2: #{net_need_name_forward.46} parent=0 // pred_check
    _
  $region3: #{net_need_name_forward.46} parent=0 // pred_check_branch
    %9 = sbr.rel (0) target = $region5
  $region4: #{net_need_name_forward.46} parent=0 // pred_region
    _
  $region5: #{net_need_name_forward.46} parent=0 // pred_fallthru
    _
  // Predicated region
  $region6: #{net_need_name_forward.46} parent=0 // pred_check
    _
  $region7: #{net_need_name_forward.46} parent=0 // pred_check_branch
    %11 = sbr.rel (0) target = $region9
  $region8: #{net_need_name_forward.46} parent=0 // pred_region
    _
  $region9: #{net_need_name_forward.46} parent=0 // pred_fallthru
    _
  // Predicated region
  $region10: #{net_need_name_forward.46} parent=0 // pred_check
    _
  $region11: #{net_need_name_forward.46} parent=0 // pred_check_branch
    %13 = sbr.rel (0) target = $region13
  $region12: #{net_need_name_forward.46} parent=0 // pred_region
    _
  $region13: #{net_need_name_forward.46} parent=0 // pred_fallthru
    _
  %v15 = vld [vmem:[%s0] sm:$0xff]
  %v16 = vld [vmem:[%s0 + $0x8] sm:$0xff]
  %v17 = vld [vmem:[%s1] sm:$0xf]
  %v18 = vld [vmem:[%s1 + $0x4] sm:$0xf]
  %v19 = vld [vmem:[%s1 + $0x8] sm:$0xf]
  %v20 = vld [vmem:[%s1 + $0xc] sm:$0xf]
  %v21 = vld [vmem:[%s1 + $0x10] sm:$0xf]
  %v22 = vld [vmem:[%s1 + $0x14] sm:$0xf]
  %v23 = vld [vmem:[%s1 + $0x18] sm:$0xf]
  %v24 = vld [vmem:[%s1 + $0x1c] sm:$0xf]
  %v25 = vld [vmem:[%s1 + $0x20] sm:$0xf]
  %v26 = vld [vmem:[%s1 + $0x24] sm:$0xf]
  %v27 = vld [vmem:[%s1 + $0x28] sm:$0xf]
  %v28 = vld [vmem:[%s1 + $0x2c] sm:$0xf]
  %v29 = vld [vmem:[%s1 + $0x30] sm:$0xf]
  %v30 = vld [vmem:[%s1 + $0x34] sm:$0xf]
  %v31 = vld [vmem:[%s1 + $0x38] sm:$0xf]
  %v32 = vld [vmem:[%s1 + $0x3c] sm:$0xf]
  %v33 = vld [vmem:[%s1 + $0x40] sm:$0xf]
  %v34 = vld [vmem:[%s1 + $0x44] sm:$0xf]
  %v35 = vld [vmem:[%s1 + $0x48] sm:$0xf]
  %v36 = vld [vmem:[%s1 + $0x4c] sm:$0xf]
  %v37 = vld [vmem:[%s1 + $0x50] sm:$0xf]
  %v38 = vld [vmem:[%s1 + $0x54] sm:$0xf]
  %v39 = vld [vmem:[%s1 + $0x58] sm:$0xf]
  %v40 = vld [vmem:[%s1 + $0x5c] sm:$0xf]
  %v41 = vld [vmem:[%s1 + $0x60] sm:$0xf]
  %v42 = vld [vmem:[%s1 + $0x64] sm:$0xf]
  %v43 = vld [vmem:[%s1 + $0x68] sm:$0xf]
  %v44 = vld [vmem:[%s1 + $0x6c] sm:$0xf]
  %v45 = vld [vmem:[%s1 + $0x70] sm:$0xf]
  %v46 = vld [vmem:[%s1 + $0x74] sm:$0xf]
  %v47 = vld [vmem:[%s1 + $0x78] sm:$0xf]
  %v48 = vld [vmem:[%s1 + $0x7c] sm:$0xf]
  %v49 = vld [vmem:[%s2] sm:$0x1]
  %v51 = vlaneseq
  %v52 = vshrl.u32 %v51, 7
  %v53 = vsub.s32 0, %v52
  %v54 = vrot.slane %v49, %v53
  %v58 = vunpack.c.l.b16 %v15
  %v59 = vunpack.c.h.b16 %v15
  %v60 = vunpack.c.l.b16 %v16
  %v61 = vunpack.c.h.b16 %v16
  %v62 = vpack.c.b16 %v60, %v58
  %v63 = vpack.c.b16 %v61, %v59
  %v98 = vunpack.c.l.b16 %v17
  %v99 = vunpack.c.l.b16 %v18
  %v100 = vunpack.c.l.b16 %v19
  %v101 = vunpack.c.l.b16 %v20
  %v102 = vunpack.c.l.b16 %v21
  %v103 = vunpack.c.l.b16 %v22
  %v104 = vunpack.c.l.b16 %v23
  %v105 = vunpack.c.l.b16 %v24
  %v106 = vunpack.c.l.b16 %v25
  %v107 = vunpack.c.l.b16 %v26
  %v108 = vunpack.c.l.b16 %v27
  %v109 = vunpack.c.l.b16 %v28
  %v110 = vunpack.c.l.b16 %v29
  %v111 = vunpack.c.l.b16 %v30
  %v112 = vunpack.c.l.b16 %v31
  %v113 = vunpack.c.l.b16 %v32
  %v114 = vunpack.c.l.b16 %v33
  %v115 = vunpack.c.l.b16 %v34
  %v116 = vunpack.c.l.b16 %v35
  %v117 = vunpack.c.l.b16 %v36
  %v118 = vunpack.c.l.b16 %v37
  %v119 = vunpack.c.l.b16 %v38
  %v120 = vunpack.c.l.b16 %v39
  %v121 = vunpack.c.l.b16 %v40
  %v122 = vunpack.c.l.b16 %v41
  %v123 = vunpack.c.l.b16 %v42
  %v124 = vunpack.c.l.b16 %v43
  %v125 = vunpack.c.l.b16 %v44
  %v126 = vunpack.c.l.b16 %v45
  %v127 = vunpack.c.l.b16 %v46
  %v128 = vunpack.c.l.b16 %v47
  %v129 = vunpack.c.l.b16 %v48
  %v130 = vpack.c.b16 %v99, %v98
  %v131 = vpack.c.b16 %v101, %v100
  %v132 = vpack.c.b16 %v103, %v102
  %v133 = vpack.c.b16 %v105, %v104
  %v134 = vpack.c.b16 %v107, %v106
  %v135 = vpack.c.b16 %v109, %v108
  %v136 = vpack.c.b16 %v111, %v110
  %v137 = vpack.c.b16 %v113, %v112
  %v138 = vpack.c.b16 %v115, %v114
  %v139 = vpack.c.b16 %v117, %v116
  %v140 = vpack.c.b16 %v119, %v118
  %v141 = vpack.c.b16 %v121, %v120
  %v142 = vpack.c.b16 %v123, %v122
  %v143 = vpack.c.b16 %v125, %v124
  %v144 = vpack.c.b16 %v127, %v126
  %v145 = vpack.c.b16 %v129, %v128
  %162 = vmatprep.subr.bf16.mxu0 0
  %163 = vmatpush1.bf16.msra.mxu0 %v137
  %164 = vmatprep.subr.bf16.mxu0 0
  %165 = vmatpush1.bf16.msra.mxu0 %v136
  %166 = vmatprep.subr.bf16.mxu0 0
  %167 = vmatpush1.bf16.msra.mxu0 %v135
  %168 = vmatprep.subr.bf16.mxu0 0
  %169 = vmatpush1.bf16.msra.mxu0 %v134
  %170 = vmatprep.subr.bf16.mxu0 0
  %171 = vmatpush1.bf16.msra.mxu0 %v133
  %172 = vmatprep.subr.bf16.mxu0 0
  %173 = vmatpush1.bf16.msra.mxu0 %v132
  %174 = vmatprep.subr.bf16.mxu0 0
  %175 = vmatpush1.bf16.msra.mxu0 %v131
  %176 = vmatprep.subr.bf16.mxu0 0
  %177 = vmatpush1.bf16.msra.mxu0 %v130
  %178 = vmatprep.subr.bf16.mxu0 0
  %179 = vmatpush2.bf16.msra.mxu0 %v145
  %180 = vmatprep.subr.bf16.mxu0 0
  %181 = vmatpush2.bf16.msra.mxu0 %v144
  %182 = vmatprep.subr.bf16.mxu0 0
  %183 = vmatpush2.bf16.msra.mxu0 %v143
  %184 = vmatprep.subr.bf16.mxu0 0
  %185 = vmatpush2.bf16.msra.mxu0 %v142
  %186 = vmatprep.subr.bf16.mxu0 0
  %187 = vmatpush2.bf16.msra.mxu0 %v141
  %188 = vmatprep.subr.bf16.mxu0 0
  %189 = vmatpush2.bf16.msra.mxu0 %v140
  %190 = vmatprep.subr.bf16.mxu0 0
  %191 = vmatpush2.bf16.msra.mxu0 %v139
  %192 = vmatprep.subr.bf16.mxu0 0
  %193 = vmatpush2.bf16.msra.mxu0 %v138
  %194 = vmatprep.mubr.bf16.mxu0 %v63
  %195 = vmatmul.mubr.bf16.gmra.mxu0 %v62
  %v196 = vpop.f32.mrf.mxu0
  %v197 = vadd.f32 %v54, %v196
  %v198 = vpop.f32.mrf.mxu0
  %v199 = vpop.f32.mrf.mxu0
  %v200 = vadd.f32 %v54, %v199
  %v201 = vpop.f32.mrf.mxu0
  %202 = vdwg.mxu0
  %v203 = vmax.f32 %v197, 0.0
  %v204 = vmax.f32 %v200, 0.0
  %v205 = vpack.c.bf16 %v204, %v203
  %v207 = vunpack.c.l.b16 %v205
  %v208 = vunpack.c.h.b16 %v205
  %v209 = vpack.c.b16 %v207, %v207
  %v210 = vpack.c.b16 %v208, %v208
  %213 = vst [vmem:[%s3] sm:$0xf] %v209
  %214 = vst [vmem:[%s3 + $0x4] sm:$0xf] %v210
  // Predicated region
  $region14: #{net_need_name_forward.46} parent=0 // pred_check
    _
  $region15: #{net_need_name_forward.46} parent=0 // pred_check_branch
    %216 = sbr.rel (0) target = $region17
  $region16: #{net_need_name_forward.46} parent=0 // pred_region
    _
  $region17: #{net_need_name_forward.46} parent=0 // pred_fallthru
    _
  // Predicated region
  $region18: #{net_need_name_forward.46} parent=0 // pred_check
    _
  $region19: #{net_need_name_forward.46} parent=0 // pred_check_branch
    %218 = sbr.rel (0) target = $region21
  $region20: #{net_need_name_forward.46} parent=0 // pred_region
    _
  $region21: #{net_need_name_forward.46} parent=0 // pred_fallthru
    _

// kernel: net_need_name_forward.49
$region0: #{net_need_name_forward.49}
  #allocation0 [shape = 'u32[]', space=smem, size = 0x4, offset = 0x4, fixed_abs, tag = 'smem constant byte address 0x4 - core index']
  #allocation1 [shape = 'u32[144,128]{1,0:T(1,128)}', space=vmem, size = 0x12000, scoped, tag = 'internal scratch']
  %s0 = inlined_call_operand.vmem [shape: bf16[16,128], index: 0, kind: input, shape index: {}]
  %s1 = inlined_call_operand.vmem [shape: bf16[128,128], index: 1, kind: input, shape index: {}]
  %s2 = inlined_call_operand.vmem [shape: f32[1,128], index: 2, kind: input, shape index: {}]
  %s3 = inlined_call_operand.vmem [shape: f32[16,128], index: 3, kind: output, shape index: {}]
  %s4 = sld [smem:[#allocation0]]
  $region22: #{net_need_name_forward.49} parent=0
    _
  %s6 = ssub.s32 1, %s4
  %s7 = scalar_select 0, %s6, %s4
  // Predicated region
  $region2: #{net_need_name_forward.49} parent=0 // pred_check
    _
  $region3: #{net_need_name_forward.49} parent=0 // pred_check_branch
    %9 = sbr.rel (0) target = $region5
  $region4: #{net_need_name_forward.49} parent=0 // pred_region
    _
  $region5: #{net_need_name_forward.49} parent=0 // pred_fallthru
    _
  // Predicated region
  $region6: #{net_need_name_forward.49} parent=0 // pred_check
    _
  $region7: #{net_need_name_forward.49} parent=0 // pred_check_branch
    %11 = sbr.rel (0) target = $region9
  $region8: #{net_need_name_forward.49} parent=0 // pred_region
    _
  $region9: #{net_need_name_forward.49} parent=0 // pred_fallthru
    _
  // Predicated region
  $region10: #{net_need_name_forward.49} parent=0 // pred_check
    _
  $region11: #{net_need_name_forward.49} parent=0 // pred_check_branch
    %13 = sbr.rel (0) target = $region13
  $region12: #{net_need_name_forward.49} parent=0 // pred_region
    _
  $region13: #{net_need_name_forward.49} parent=0 // pred_fallthru
    _
  %v15 = vld [vmem:[%s0] sm:$0xf]
  %v16 = vld [vmem:[%s0 + $0x4] sm:$0xf]
  %v17 = vld [vmem:[%s1] sm:$0xf]
  %v18 = vld [vmem:[%s1 + $0x4] sm:$0xf]
  %v19 = vld [vmem:[%s1 + $0x8] sm:$0xf]
  %v20 = vld [vmem:[%s1 + $0xc] sm:$0xf]
  %v21 = vld [vmem:[%s1 + $0x10] sm:$0xf]
  %v22 = vld [vmem:[%s1 + $0x14] sm:$0xf]
  %v23 = vld [vmem:[%s1 + $0x18] sm:$0xf]
  %v24 = vld [vmem:[%s1 + $0x1c] sm:$0xf]
  %v25 = vld [vmem:[%s1 + $0x20] sm:$0xf]
  %v26 = vld [vmem:[%s1 + $0x24] sm:$0xf]
  %v27 = vld [vmem:[%s1 + $0x28] sm:$0xf]
  %v28 = vld [vmem:[%s1 + $0x2c] sm:$0xf]
  %v29 = vld [vmem:[%s1 + $0x30] sm:$0xf]
  %v30 = vld [vmem:[%s1 + $0x34] sm:$0xf]
  %v31 = vld [vmem:[%s1 + $0x38] sm:$0xf]
  %v32 = vld [vmem:[%s1 + $0x3c] sm:$0xf]
  %v33 = vld [vmem:[%s2] sm:$0x1]
  %v35 = vlaneseq
  %v36 = vshrl.u32 %v35, 7
  %v37 = vsub.s32 0, %v36
  %v38 = vrot.slane %v33, %v37
  %v42 = vunpack.c.l.b16 %v15
  %v43 = vunpack.c.l.b16 %v16
  %v44 = vpack.c.b16 %v43, %v42
  %v62 = vunpack.c.l.b16 %v17
  %v63 = vunpack.c.l.b16 %v18
  %v64 = vunpack.c.l.b16 %v19
  %v65 = vunpack.c.l.b16 %v20
  %v66 = vunpack.c.l.b16 %v21
  %v67 = vunpack.c.l.b16 %v22
  %v68 = vunpack.c.l.b16 %v23
  %v69 = vunpack.c.l.b16 %v24
  %v70 = vunpack.c.l.b16 %v25
  %v71 = vunpack.c.l.b16 %v26
  %v72 = vunpack.c.l.b16 %v27
  %v73 = vunpack.c.l.b16 %v28
  %v74 = vunpack.c.l.b16 %v29
  %v75 = vunpack.c.l.b16 %v30
  %v76 = vunpack.c.l.b16 %v31
  %v77 = vunpack.c.l.b16 %v32
  %v78 = vpack.c.b16 %v63, %v62
  %v79 = vpack.c.b16 %v65, %v64
  %v80 = vpack.c.b16 %v67, %v66
  %v81 = vpack.c.b16 %v69, %v68
  %v82 = vpack.c.b16 %v71, %v70
  %v83 = vpack.c.b16 %v73, %v72
  %v84 = vpack.c.b16 %v75, %v74
  %v85 = vpack.c.b16 %v77, %v76
  %94 = vmatprep.subr.bf16.mxu0 0
  %95 = vmatpush1.bf16.msra.mxu0 %v85
  %96 = vmatprep.subr.bf16.mxu0 0
  %97 = vmatpush1.bf16.msra.mxu0 %v84
  %98 = vmatprep.subr.bf16.mxu0 0
  %99 = vmatpush1.bf16.msra.mxu0 %v83
  %100 = vmatprep.subr.bf16.mxu0 0
  %101 = vmatpush1.bf16.msra.mxu0 %v82
  %102 = vmatprep.subr.bf16.mxu0 0
  %103 = vmatpush1.bf16.msra.mxu0 %v81
  %104 = vmatprep.subr.bf16.mxu0 0
  %105 = vmatpush1.bf16.msra.mxu0 %v80
  %106 = vmatprep.subr.bf16.mxu0 0
  %107 = vmatpush1.bf16.msra.mxu0 %v79
  %108 = vmatprep.subr.bf16.mxu0 0
  %109 = vmatpush1.bf16.msra.mxu0 %v78
  %110 = vmatprep.subr.bf16.mxu0 0
  %111 = vmatpush2.bf16.msra.mxu0 0
  %112 = vmatprep.subr.bf16.mxu0 0
  %113 = vmatpush2.bf16.msra.mxu0 0
  %114 = vmatprep.subr.bf16.mxu0 0
  %115 = vmatpush2.bf16.msra.mxu0 0
  %116 = vmatprep.subr.bf16.mxu0 0
  %117 = vmatpush2.bf16.msra.mxu0 0
  %118 = vmatprep.subr.bf16.mxu0 0
  %119 = vmatpush2.bf16.msra.mxu0 0
  %120 = vmatprep.subr.bf16.mxu0 0
  %121 = vmatpush2.bf16.msra.mxu0 0
  %122 = vmatprep.subr.bf16.mxu0 0
  %123 = vmatpush2.bf16.msra.mxu0 0
  %124 = vmatprep.subr.bf16.mxu0 0
  %125 = vmatpush2.bf16.msra.mxu0 0
  %126 = vmatprep.mubr.bf16.mxu0 0
  %127 = vmatmul.mubr.bf16.gmra.mxu0 %v44
  %v128 = vpop.f32.mrf.mxu0
  %v129 = vadd.f32 %v38, %v128
  %v130 = vpop.f32.mrf.mxu0
  %v131 = vpop.f32.mrf.mxu0
  %v132 = vadd.f32 %v38, %v131
  %v133 = vpop.f32.mrf.mxu0
  %134 = vdwg.mxu0
  %135 = vst [vmem:[%s3] sm:$0xff] %v129
  %136 = vst [vmem:[%s3 + $0x8] sm:$0xff] %v132
  // Predicated region
  $region14: #{net_need_name_forward.49} parent=0 // pred_check
    _
  $region15: #{net_need_name_forward.49} parent=0 // pred_check_branch
    %138 = sbr.rel (0) target = $region17
  $region16: #{net_need_name_forward.49} parent=0 // pred_region
    _
  $region17: #{net_need_name_forward.49} parent=0 // pred_fallthru
    _
  // Predicated region
  $region18: #{net_need_name_forward.49} parent=0 // pred_check
    _
  $region19: #{net_need_name_forward.49} parent=0 // pred_check_branch
    %140 = sbr.rel (0) target = $region21
  $region20: #{net_need_name_forward.49} parent=0 // pred_region
    _
  $region21: #{net_need_name_forward.49} parent=0 // pred_fallthru
    _

// kernel: net_need_name_forward.51
$region0: #{net_need_name_forward.51}
  #allocation0 [shape = 'u32[]', space=smem, size = 0x4, offset = 0x4, fixed_abs, tag = 'smem constant byte address 0x4 - core index']
  #allocation1 [shape = 'u32[144,128]{1,0:T(1,128)}', space=vmem, size = 0x12000, scoped, tag = 'internal scratch']
  %s0 = inlined_call_operand.vmem [shape: bf16[16,12], index: 0, kind: input, shape index: {}]
  %s1 = inlined_call_operand.vmem [shape: f32[12,128], index: 1, kind: input, shape index: {}]
  %s2 = inlined_call_operand.vmem [shape: f32[1,128], index: 2, kind: input, shape index: {}]
  %s3 = inlined_call_operand.vmem [shape: f32[16,128], index: 3, kind: output, shape index: {}]
  %s4 = sld [smem:[#allocation0]]
  $region22: #{net_need_name_forward.51} parent=0
    _
  %s6 = ssub.s32 1, %s4
  %s7 = scalar_select 0, %s6, %s4
  // Predicated region
  $region2: #{net_need_name_forward.51} parent=0 // pred_check
    _
  $region3: #{net_need_name_forward.51} parent=0 // pred_check_branch
    %9 = sbr.rel (0) target = $region5
  $region4: #{net_need_name_forward.51} parent=0 // pred_region
    _
  $region5: #{net_need_name_forward.51} parent=0 // pred_fallthru
    _
  // Predicated region
  $region6: #{net_need_name_forward.51} parent=0 // pred_check
    _
  $region7: #{net_need_name_forward.51} parent=0 // pred_check_branch
    %11 = sbr.rel (0) target = $region9
  $region8: #{net_need_name_forward.51} parent=0 // pred_region
    _
  $region9: #{net_need_name_forward.51} parent=0 // pred_fallthru
    _
  // Predicated region
  $region10: #{net_need_name_forward.51} parent=0 // pred_check
    _
  $region11: #{net_need_name_forward.51} parent=0 // pred_check_branch
    %13 = sbr.rel (0) target = $region13
  $region12: #{net_need_name_forward.51} parent=0 // pred_region
    _
  $region13: #{net_need_name_forward.51} parent=0 // pred_fallthru
    _
  %v15 = vld [vmem:[%s0] sm:$0xf]
  %v16 = vld [vmem:[%s0 + $0x4] sm:$0xf]
  %v17 = vld [vmem:[%s1] sm:$0xff]
  %v18 = vld [vmem:[%s1 + $0x8] sm:$0xf]
  %v19 = vld [vmem:[%s2] sm:$0x1]
  %v21 = vlaneseq
  %v22 = vshrl.u32 %v21, 7
  %v23 = vsub.s32 0, %v22
  %v24 = vrot.slane %v19, %v23
  %v28 = vunpack.c.l.b16 %v15
  %v29 = vunpack.c.l.b16 %v16
  %v30 = vpack.c.b16 %v29, %v28
  %vm31 = vcmask 97280
  %v33 = vsel %vm31, %v30, 0
  %vm35 = vcmask 1043456
  %v37 = vsel %vm35, %v18, 0
  %39 = vmatprep.subr.mxu0 0.0
  %40 = vmatpush1.msra.mxu0 0.0
  %41 = vmatprep.subr.mxu0 0.0
  %42 = vmatpush1.msra.mxu0 0.0
  %43 = vmatprep.subr.mxu0 0.0
  %44 = vmatpush1.msra.mxu0 0.0
  %45 = vmatprep.subr.mxu0 0.0
  %46 = vmatpush1.msra.mxu0 0.0
  %47 = vmatprep.subr.mxu0 0.0
  %48 = vmatpush1.msra.mxu0 0.0
  %49 = vmatprep.subr.mxu0 0.0
  %50 = vmatpush1.msra.mxu0 0.0
  %51 = vmatprep.subr.mxu0 0.0
  %52 = vmatpush1.msra.mxu0 0.0
  %53 = vmatprep.subr.mxu0 0.0
  %54 = vmatpush1.msra.mxu0 0.0
  %55 = vmatprep.subr.mxu0 0.0
  %56 = vmatpush1.msra.mxu0 0.0
  %57 = vmatprep.subr.mxu0 0.0
  %58 = vmatpush1.msra.mxu0 0.0
  %59 = vmatprep.subr.mxu0 0.0
  %60 = vmatpush1.msra.mxu0 0.0
  %61 = vmatprep.subr.mxu0 0.0
  %62 = vmatpush1.msra.mxu0 0.0
  %63 = vmatprep.subr.mxu0 0.0
  %64 = vmatpush1.msra.mxu0 0.0
  %65 = vmatprep.subr.mxu0 0.0
  %66 = vmatpush1.msra.mxu0 0.0
  %67 = vmatprep.subr.mxu0 0.0
  %68 = vmatpush1.msra.mxu0 %v37
  %69 = vmatprep.subr.mxu0 0.0
  %70 = vmatpush1.msra.mxu0 %v17
  %71 = vmatprep.subr.mxu0 0.0
  %72 = vmatpush2.msra.mxu0 0.0
  %73 = vmatprep.subr.mxu0 0.0
  %74 = vmatpush2.msra.mxu0 0.0
  %75 = vmatprep.subr.mxu0 0.0
  %76 = vmatpush2.msra.mxu0 0.0
  %77 = vmatprep.subr.mxu0 0.0
  %78 = vmatpush2.msra.mxu0 0.0
  %79 = vmatprep.subr.mxu0 0.0
  %80 = vmatpush2.msra.mxu0 0.0
  %81 = vmatprep.subr.mxu0 0.0
  %82 = vmatpush2.msra.mxu0 0.0
  %83 = vmatprep.subr.mxu0 0.0
  %84 = vmatpush2.msra.mxu0 0.0
  %85 = vmatprep.subr.mxu0 0.0
  %86 = vmatpush2.msra.mxu0 0.0
  %87 = vmatprep.subr.mxu0 0.0
  %88 = vmatpush2.msra.mxu0 0.0
  %89 = vmatprep.subr.mxu0 0.0
  %90 = vmatpush2.msra.mxu0 0.0
  %91 = vmatprep.subr.mxu0 0.0
  %92 = vmatpush2.msra.mxu0 0.0
  %93 = vmatprep.subr.mxu0 0.0
  %94 = vmatpush2.msra.mxu0 0.0
  %95 = vmatprep.subr.mxu0 0.0
  %96 = vmatpush2.msra.mxu0 0.0
  %97 = vmatprep.subr.mxu0 0.0
  %98 = vmatpush2.msra.mxu0 0.0
  %99 = vmatprep.subr.mxu0 0.0
  %100 = vmatpush2.msra.mxu0 0.0
  %101 = vmatprep.subr.mxu0 0.0
  %102 = vmatpush2.msra.mxu0 0.0
  %103 = vmatprep.mubr.bf16.mxu0 0
  %104 = vmatmul.mubr.bf16.gmra.mxu0 %v33
  %v105 = vpop.f32.mrf.mxu0
  %v106 = vadd.f32 %v24, %v105
  %v107 = vpop.f32.mrf.mxu0
  %v108 = vpop.f32.mrf.mxu0
  %v109 = vadd.f32 %v24, %v108
  %v110 = vpop.f32.mrf.mxu0
  %111 = vdwg.mxu0
  %112 = vst [vmem:[%s3] sm:$0xff] %v106
  %113 = vst [vmem:[%s3 + $0x8] sm:$0xff] %v109
  // Predicated region
  $region14: #{net_need_name_forward.51} parent=0 // pred_check
    _
  $region15: #{net_need_name_forward.51} parent=0 // pred_check_branch
    %115 = sbr.rel (0) target = $region17
  $region16: #{net_need_name_forward.51} parent=0 // pred_region
    _
  $region17: #{net_need_name_forward.51} parent=0 // pred_fallthru
    _
  // Predicated region
  $region18: #{net_need_name_forward.51} parent=0 // pred_check
    _
  $region19: #{net_need_name_forward.51} parent=0 // pred_check_branch
    %117 = sbr.rel (0) target = $region21
  $region20: #{net_need_name_forward.51} parent=0 // pred_region
    _
  $region21: #{net_need_name_forward.51} parent=0 // pred_fallthru
    _

// kernel: net_need_name_forward.50
$region0: #{net_need_name_forward.50}
  #allocation0 [shape = 'u32[]', space=smem, size = 0x4, offset = 0x4, fixed_abs, tag = 'smem constant byte address 0x4 - core index']
  #allocation1 [shape = 'u32[144,128]{1,0:T(1,128)}', space=vmem, size = 0x12000, scoped, tag = 'internal scratch']
  %s0 = inlined_call_operand.vmem [shape: bf16[24,16], index: 0, kind: input, shape index: {}]
  %s1 = inlined_call_operand.vmem [shape: f32[16,128], index: 1, kind: input, shape index: {}]
  %s2 = inlined_call_operand.vmem [shape: f32[1,128], index: 2, kind: input, shape index: {}]
  %s3 = inlined_call_operand.vmem [shape: f32[24,128], index: 3, kind: output, shape index: {}]
  %s4 = sld [smem:[#allocation0]]
  $region22: #{net_need_name_forward.50} parent=0
    _
  %s6 = ssub.s32 1, %s4
  %s7 = scalar_select 0, %s6, %s4
  // Predicated region
  $region2: #{net_need_name_forward.50} parent=0 // pred_check
    _
  $region3: #{net_need_name_forward.50} parent=0 // pred_check_branch
    %9 = sbr.rel (0) target = $region5
  $region4: #{net_need_name_forward.50} parent=0 // pred_region
    _
  $region5: #{net_need_name_forward.50} parent=0 // pred_fallthru
    _
  // Predicated region
  $region6: #{net_need_name_forward.50} parent=0 // pred_check
    _
  $region7: #{net_need_name_forward.50} parent=0 // pred_check_branch
    %11 = sbr.rel (0) target = $region9
  $region8: #{net_need_name_forward.50} parent=0 // pred_region
    _
  $region9: #{net_need_name_forward.50} parent=0 // pred_fallthru
    _
  // Predicated region
  $region10: #{net_need_name_forward.50} parent=0 // pred_check
    _
  $region11: #{net_need_name_forward.50} parent=0 // pred_check_branch
    %13 = sbr.rel (0) target = $region13
  $region12: #{net_need_name_forward.50} parent=0 // pred_region
    _
  $region13: #{net_need_name_forward.50} parent=0 // pred_fallthru
    _
  %v15 = vld [vmem:[%s0] sm:$0xf]
  %v16 = vld [vmem:[%s0 + $0x4] sm:$0xf]
  %v17 = vld [vmem:[%s0 + $0x8] sm:$0xf]
  %v18 = vld [vmem:[%s1] sm:$0xff]
  %v19 = vld [vmem:[%s1 + $0x8] sm:$0xff]
  %v20 = vld [vmem:[%s2] sm:$0x1]
  %v22 = vlaneseq
  %v23 = vshrl.u32 %v22, 7
  %v24 = vsub.s32 0, %v23
  %v25 = vrot.slane %v20, %v24
  %v30 = vunpack.c.l.b16 %v15
  %v31 = vunpack.c.l.b16 %v16
  %v32 = vunpack.c.l.b16 %v17
  %v33 = vpack.c.b16 %v31, %v30
  %v34 = vpack.c.b16 %v32, %v32
  %vm35 = vcmask 130048
  %v37 = vsel %vm35, %v33, 0
  %v40 = vsel %vm35, %v34, 0
  %42 = vmatprep.subr.mxu0 0.0
  %43 = vmatpush1.msra.mxu0 0.0
  %44 = vmatprep.subr.mxu0 0.0
  %45 = vmatpush1.msra.mxu0 0.0
  %46 = vmatprep.subr.mxu0 0.0
  %47 = vmatpush1.msra.mxu0 0.0
  %48 = vmatprep.subr.mxu0 0.0
  %49 = vmatpush1.msra.mxu0 0.0
  %50 = vmatprep.subr.mxu0 0.0
  %51 = vmatpush1.msra.mxu0 0.0
  %52 = vmatprep.subr.mxu0 0.0
  %53 = vmatpush1.msra.mxu0 0.0
  %54 = vmatprep.subr.mxu0 0.0
  %55 = vmatpush1.msra.mxu0 0.0
  %56 = vmatprep.subr.mxu0 0.0
  %57 = vmatpush1.msra.mxu0 0.0
  %58 = vmatprep.subr.mxu0 0.0
  %59 = vmatpush1.msra.mxu0 0.0
  %60 = vmatprep.subr.mxu0 0.0
  %61 = vmatpush1.msra.mxu0 0.0
  %62 = vmatprep.subr.mxu0 0.0
  %63 = vmatpush1.msra.mxu0 0.0
  %64 = vmatprep.subr.mxu0 0.0
  %65 = vmatpush1.msra.mxu0 0.0
  %66 = vmatprep.subr.mxu0 0.0
  %67 = vmatpush1.msra.mxu0 0.0
  %68 = vmatprep.subr.mxu0 0.0
  %69 = vmatpush1.msra.mxu0 0.0
  %70 = vmatprep.subr.mxu0 0.0
  %71 = vmatpush1.msra.mxu0 %v19
  %72 = vmatprep.subr.mxu0 0.0
  %73 = vmatpush1.msra.mxu0 %v18
  %74 = vmatprep.subr.mxu0 0.0
  %75 = vmatpush2.msra.mxu0 0.0
  %76 = vmatprep.subr.mxu0 0.0
  %77 = vmatpush2.msra.mxu0 0.0
  %78 = vmatprep.subr.mxu0 0.0
  %79 = vmatpush2.msra.mxu0 0.0
  %80 = vmatprep.subr.mxu0 0.0
  %81 = vmatpush2.msra.mxu0 0.0
  %82 = vmatprep.subr.mxu0 0.0
  %83 = vmatpush2.msra.mxu0 0.0
  %84 = vmatprep.subr.mxu0 0.0
  %85 = vmatpush2.msra.mxu0 0.0
  %86 = vmatprep.subr.mxu0 0.0
  %87 = vmatpush2.msra.mxu0 0.0
  %88 = vmatprep.subr.mxu0 0.0
  %89 = vmatpush2.msra.mxu0 0.0
  %90 = vmatprep.subr.mxu0 0.0
  %91 = vmatpush2.msra.mxu0 0.0
  %92 = vmatprep.subr.mxu0 0.0
  %93 = vmatpush2.msra.mxu0 0.0
  %94 = vmatprep.subr.mxu0 0.0
  %95 = vmatpush2.msra.mxu0 0.0
  %96 = vmatprep.subr.mxu0 0.0
  %97 = vmatpush2.msra.mxu0 0.0
  %98 = vmatprep.subr.mxu0 0.0
  %99 = vmatpush2.msra.mxu0 0.0
  %100 = vmatprep.subr.mxu0 0.0
  %101 = vmatpush2.msra.mxu0 0.0
  %102 = vmatprep.subr.mxu0 0.0
  %103 = vmatpush2.msra.mxu0 0.0
  %104 = vmatprep.subr.mxu0 0.0
  %105 = vmatpush2.msra.mxu0 0.0
  %106 = vmatprep.mubr.bf16.mxu0 0
  %107 = vmatmul.mubr.bf16.gmra.mxu0 %v37
  %v108 = vpop.f32.mrf.mxu0
  %v109 = vadd.f32 %v25, %v108
  %v110 = vpop.f32.mrf.mxu0
  %v111 = vpop.f32.mrf.mxu0
  %v112 = vadd.f32 %v25, %v111
  %v113 = vpop.f32.mrf.mxu0
  %114 = vmatprep.mubr.bf16.mxu0 0
  %115 = vmatmul.mubr.bf16.gmra.mxu0 %v40
  %v116 = vpop.f32.mrf.mxu0
  %v117 = vadd.f32 %v25, %v116
  %v118 = vpop.f32.mrf.mxu0
  %v119 = vpop.f32.mrf.mxu0
  %v120 = vpop.f32.mrf.mxu0
  %121 = vdwg.mxu0
  %122 = vst [vmem:[%s3] sm:$0xff] %v109
  %123 = vst [vmem:[%s3 + $0x8] sm:$0xff] %v112
  %124 = vst [vmem:[%s3 + $0x10] sm:$0xff] %v117
  // Predicated region
  $region14: #{net_need_name_forward.50} parent=0 // pred_check
    _
  $region15: #{net_need_name_forward.50} parent=0 // pred_check_branch
    %126 = sbr.rel (0) target = $region17
  $region16: #{net_need_name_forward.50} parent=0 // pred_region
    _
  $region17: #{net_need_name_forward.50} parent=0 // pred_fallthru
    _
  // Predicated region
  $region18: #{net_need_name_forward.50} parent=0 // pred_check
    _
  $region19: #{net_need_name_forward.50} parent=0 // pred_check_branch
    %128 = sbr.rel (0) target = $region21
  $region20: #{net_need_name_forward.50} parent=0 // pred_region
    _
  $region21: #{net_need_name_forward.50} parent=0 // pred_fallthru
    _

</llo_original>
